<compile_context>
chip_gen: v6e
topology: v6e:2x2x1
jax: 0.10.0
libtpu: 0.0.40
codegen_flags: <defaults>
</compile_context>

<pallas_src>
import functools

import jax
import jax.numpy as jnp
from jax import lax
from jax.experimental import pallas as pl
from jax.experimental.pallas import tpu as pltpu


# ----------------------------- sizing helpers -----------------------------
def _vmem_capacity_bytes():
    """Physical VMEM per core; conservative 64 MiB (v7x) fallback."""
    try:
        info = pltpu.get_tpu_info()
        cap = getattr(info, "vmem_capacity_bytes", None)
        if cap and int(cap) >= 32 * (1 << 20):
            return int(cap)
    except Exception:
        pass
    return 64 * (1 << 20)


def _per_sample_vmem_bytes(H, W, C, conv_dtype, io_dtype, fused):
    """Rough per-sample VMEM footprint: scratches + double-buffered blocks + temps."""
    cb = jnp.dtype(conv_dtype).itemsize
    ib = jnp.dtype(io_dtype).itemsize
    HW = H * W
    pad = (H + 2) * (W + 2) * C * cb           # padded conv input scratch
    slab = HW * 9 * C * cb                     # im2col slab scratch
    state = HW * C * 4 if fused else 0         # resident f32 ODE state
    io = 2 * 2 * HW * C * ib                   # double-buffered in + out blocks
    temps = 4 * HW * C * 4                     # conv acc / GN / relu temporaries (f32)
    return int(1.3 * (pad + slab + state + io + temps))


def _choose_batch_block(n, per_sample_bytes, budget_bytes, max_block=64):
    """Largest divisor of n fitting the VMEM budget, preferring >= 2 grid steps."""
    cap = max(1, min(n, max_block, budget_bytes // max(per_sample_bytes, 1)))
    divisors = [d for d in range(1, n + 1) if n % d == 0 and d <= cap]
    best = max(divisors)
    if n // best < 2:                          # keep both v7x TensorCores busy
        for d in sorted(divisors, reverse=True):
            if n // d >= 2:
                return d
    return best


# ----------------------------- kernel building blocks -----------------------------
def _zero_halo(pad_ref, BN, H, W, C, conv_dtype):
    """Zero the 1-pixel halo once; the interior stores never touch it afterwards."""
    zr = jnp.zeros((BN, 1, W + 2, C), conv_dtype)
    zc = jnp.zeros((BN, H, 1, C), conv_dtype)
    pad_ref[:, 0:1, :, :] = zr
    pad_ref[:, H + 1:H + 2, :, :] = zr
    pad_ref[:, 1:H + 1, 0:1, :] = zc
    pad_ref[:, 1:H + 1, W + 1:W + 2, :] = zc


def _conv_gn_relu(pad_ref, slab_ref, w, bm, gamma, beta, gmat, *, BN, H, W, C, eps):
    """3x3 'same' conv (one im2col MXU matmul) + bias/time-map + GroupNorm + ReLU.

    Assumes pad_ref's interior already holds the layer input (conv dtype) and its
    halo is zero.  Returns the activated output as (BN, H*W, C) float32.
    """
    f32 = jnp.float32
    HW = H * W
    M = BN * HW

    # im2col slab built ONCE directly into persistent VMEM scratch (no concat copy).
    for k in range(9):
        dy, dx = divmod(k, 3)
        slab_ref[:, k * C:(k + 1) * C] = (
            pad_ref[:, dy:dy + H, dx:dx + W, :].reshape(M, C))

    acc = jnp.dot(slab_ref[...], w, preferred_element_type=f32)        # (M, C)
    a = acc.reshape(BN, HW, C) + bm[None]                              # + bias + t-map

    # Single-pass GroupNorm statistics via the constant group-pooling matmul (f32).
    ch_sum = jnp.sum(a, axis=1)                                        # (BN, C)
    ch_sq = jnp.sum(a * a, axis=1)                                     # (BN, C)
    mean_c = jnp.dot(ch_sum, gmat, preferred_element_type=f32)         # group mean
    var_c = jnp.dot(ch_sq, gmat, preferred_element_type=f32) - mean_c * mean_c
    scale = lax.rsqrt(var_c + eps) * gamma                             # (BN, C)
    y = (a - mean_c[:, None, :]) * scale[:, None, :] + beta
    return jnp.maximum(y, 0.0)                                         # (BN, HW, C)


# ----------------------------- fused Euler ODEBlock kernel -----------------------------
def _odeblock_kernel(x_ref, w1_ref, m1_ref, b1_ref, g1_ref, be1_ref,
                     w2_ref, m2_ref, b2_ref, g2_ref, be2_ref, gmat_ref,
                     o_ref, state_ref, pad_ref, slab_ref,
                     *, eps, conv_dtype, t0, dt, num_steps):
    BN, H, W, C = x_ref.shape
    HW = H * W
    f32 = jnp.float32
    cd = conv_dtype

    _zero_halo(pad_ref, BN, H, W, C, cd)       # halo stays zero for all Euler steps

    # Hoisted loop-invariant parameter loads.
    w1 = w1_ref[...]
    w2 = w2_ref[...]
    m1 = m1_ref[...]
    m2 = m2_ref[...]
    b1 = b1_ref[...]
    b2 = b2_ref[...]
    g1 = g1_ref[...]
    be1 = be1_ref[...]
    g2 = g2_ref[...]
    be2 = be2_ref[...]
    gmat = gmat_ref[...]

    # ODE state stays resident in VMEM (f32) across every Euler step: the only HBM
    # traffic per pallas_call is the initial x load and the final output store.
    state_ref[...] = x_ref[...].astype(f32).reshape(BN, HW, C)

    kw = dict(BN=BN, H=H, W=W, C=C, eps=eps)

    @pl.loop(0, num_steps)
    def _(i):
        t = jnp.float32(t0) + jnp.float32(dt) * i
        s = state_ref[...]

        # conv1 (+t, +bias) -> norm1 -> relu
        pad_ref[:, 1:H + 1, 1:W + 1, :] = s.reshape(BN, H, W, C).astype(cd)
        out1 = _conv_gn_relu(pad_ref, slab_ref, w1, t * m1 + b1, g1, be1, gmat, **kw)

        # conv2 (+t, +bias) -> norm2 -> relu
        pad_ref[:, 1:H + 1, 1:W + 1, :] = out1.reshape(BN, H, W, C).astype(cd)
        out2 = _conv_gn_relu(pad_ref, slab_ref, w2, t * m2 + b2, g2, be2, gmat, **kw)

        # fused Euler update
        state_ref[...] = s + jnp.float32(dt) * out2

    o_ref[...] = state_ref[...].reshape(BN, H, W, C).astype(o_ref.dtype)


# ----------------------------- single ODEfunc evaluation kernel -----------------------------
def _odefunc_kernel(x_ref, w1_ref, bm1_ref, g1_ref, be1_ref,
                    w2_ref, bm2_ref, g2_ref, be2_ref, gmat_ref,
                    o_ref, pad_ref, slab_ref, *, eps, conv_dtype):
    BN, H, W, C = x_ref.shape
    cd = conv_dtype

    _zero_halo(pad_ref, BN, H, W, C, cd)
    gmat = gmat_ref[...]
    kw = dict(BN=BN, H=H, W=W, C=C, eps=eps)

    pad_ref[:, 1:H + 1, 1:W + 1, :] = x_ref[...].astype(cd)
    out1 = _conv_gn_relu(pad_ref, slab_ref, w1_ref[...], bm1_ref[...],
                         g1_ref[...], be1_ref[...], gmat, **kw)

    pad_ref[:, 1:H + 1, 1:W + 1, :] = out1.reshape(BN, H, W, C).astype(cd)
    out2 = _conv_gn_relu(pad_ref, slab_ref, w2_ref[...], bm2_ref[...],
                         g2_ref[...], be2_ref[...], gmat, **kw)

    o_ref[...] = out2.reshape(BN, H, W, C).astype(o_ref.dtype)


# ----------------------------- host-side parameter prep -----------------------------
def _time_map(w_hwio_tchan, H, W):
    """Unscaled (H*W, Cout) map of ConcatConv2d's constant-t channel (conv of ones)."""
    ones = jnp.ones((1, H, W, 1), jnp.float32)
    m = lax.conv_general_dilated(
        ones, w_hwio_tchan.astype(jnp.float32), (1, 1), "SAME",
        dimension_numbers=("NHWC", "HWIO", "NHWC"))[0]                 # (H, W, Cout)
    return m.reshape(H * W, -1)


def _group_pool_matrix(C, groups, H, W):
    """(ch_sum @ gmat)[c] = mean over c's group (and over H*W)."""
    gs = C // groups
    gidx = jnp.arange(C) // gs
    return (gidx[:, None] == gidx[None, :]).astype(jnp.float32) / float(H * W * gs)


def _prep_params(params, C, H, W, conv_dtype):
    w1 = params["w1"]
    w2 = params["w2"]
    # ConcatConv2d weights (HWIO, 3x3x(C+1)xC): channel 0 is the time channel.
    w1x = w1[:, :, 1:, :].reshape(9 * C, C).astype(conv_dtype)
    w2x = w2[:, :, 1:, :].reshape(9 * C, C).astype(conv_dtype)
    m1 = _time_map(w1[:, :, 0:1, :], H, W)                             # (HW, C) f32
    m2 = _time_map(w2[:, :, 0:1, :], H, W)
    b1 = params["b1"].reshape(1, C).astype(jnp.float32)
    b2 = params["b2"].reshape(1, C).astype(jnp.float32)
    g1 = params["gamma1"].reshape(1, C).astype(jnp.float32)
    be1 = params["beta1"].reshape(1, C).astype(jnp.float32)
    g2 = params["gamma2"].reshape(1, C).astype(jnp.float32)
    be2 = params["beta2"].reshape(1, C).astype(jnp.float32)
    return w1x, m1, b1, g1, be1, w2x, m2, b2, g2, be2


def _specs(BN, H, W, C):
    xspec = pl.BlockSpec((BN, H, W, C), lambda b: (b, 0, 0, 0))
    wspec = pl.BlockSpec((9 * C, C), lambda b: (0, 0))
    mspec = pl.BlockSpec((H * W, C), lambda b: (0, 0))
    vspec = pl.BlockSpec((1, C), lambda b: (0, 0))
    gspec = pl.BlockSpec((C, C), lambda b: (0, 0))
    return xspec, wspec, mspec, vspec, gspec


# ----------------------------- public entry points -----------------------------
def odeblock_euler_nhwc(x_nhwc, params, *, groups, t0=0.0, t1=1.0, num_steps=4,
                        eps=1e-5, batch_block=None, conv_dtype=jnp.float32):
    """ODEBlock with method='euler', fully fused: all steps inside one pallas_call."""
    N, H, W, C = x_nhwc.shape
    assert C % groups == 0
    cap = _vmem_capacity_bytes()
    BN = batch_block if batch_block is not None else _choose_batch_block(
        N, _per_sample_vmem_bytes(H, W, C, conv_dtype, x_nhwc.dtype, fused=True),
        int(0.30 * cap))
    assert N % BN == 0, "batch block must divide the batch size"

    w1x, m1, b1, g1, be1, w2x, m2, b2, g2, be2 = _prep_params(params, C, H, W, conv_dtype)
    gmat = _group_pool_matrix(C, groups, H, W)
    dt = (float(t1) - float(t0)) / int(num_steps)

    xspec, wspec, mspec, vspec, gspec = _specs(BN, H, W, C)
    kernel = functools.partial(
        _odeblock_kernel, eps=float(eps), conv_dtype=conv_dtype,
        t0=float(t0), dt=float(dt), num_steps=int(num_steps))

    return pl.pallas_call(
        kernel,
        out_shape=jax.ShapeDtypeStruct((N, H, W, C), x_nhwc.dtype),
        grid_spec=pltpu.PrefetchScalarGridSpec(
            num_scalar_prefetch=0,
            grid=(N // BN,),
            in_specs=[xspec,
                      wspec, mspec, vspec, vspec, vspec,
                      wspec, mspec, vspec, vspec, vspec,
                      gspec],
            out_specs=xspec,
            scratch_shapes=[
                pltpu.VMEM((BN, H * W, C), jnp.float32),          # resident ODE state
                pltpu.VMEM((BN, H + 2, W + 2, C), conv_dtype),    # padded conv input
                pltpu.VMEM((BN * H * W, 9 * C), conv_dtype),      # im2col slab
            ]),
        compiler_params=pltpu.CompilerParams(
            dimension_semantics=("parallel",),
            vmem_limit_bytes=int(0.85 * cap)),
    )(x_nhwc, w1x, m1, b1, g1, be1, w2x, m2, b2, g2, be2, gmat)


def odefunc_nhwc(t, x_nhwc, params, *, groups, eps=1e-5, batch_block=None,
                 conv_dtype=jnp.float32):
    """Single ODEfunc forward f(t, x) in NHWC (one fused conv/GN/relu x2 kernel)."""
    N, H, W, C = x_nhwc.shape
    assert C % groups == 0
    cap = _vmem_capacity_bytes()
    BN = batch_block if batch_block is not None else _choose_batch_block(
        N, _per_sample_vmem_bytes(H, W, C, conv_dtype, x_nhwc.dtype, fused=False),
        int(0.30 * cap))
    assert N % BN == 0, "batch block must divide the batch size"

    w1x, m1, b1, g1, be1, w2x, m2, b2, g2, be2 = _prep_params(params, C, H, W, conv_dtype)
    tt = jnp.asarray(t, jnp.float32)
    bm1 = tt * m1 + b1                                                 # (HW, C) f32
    bm2 = tt * m2 + b2
    gmat = _group_pool_matrix(C, groups, H, W)

    xspec, wspec, mspec, vspec, gspec = _specs(BN, H, W, C)
    kernel = functools.partial(_odefunc_kernel, eps=float(eps), conv_dtype=conv_dtype)

    return pl.pallas_call(
        kernel,
        out_shape=jax.ShapeDtypeStruct((N, H, W, C), x_nhwc.dtype),
        grid_spec=pltpu.PrefetchScalarGridSpec(
            num_scalar_prefetch=0,
            grid=(N // BN,),
            in_specs=[xspec,
                      wspec, mspec, vspec, vspec,
                      wspec, mspec, vspec, vspec,
                      gspec],
            out_specs=xspec,
            scratch_shapes=[
                pltpu.VMEM((BN, H + 2, W + 2, C), conv_dtype),
                pltpu.VMEM((BN * H * W, 9 * C), conv_dtype),
            ]),
        compiler_params=pltpu.CompilerParams(
            dimension_semantics=("parallel",),
            vmem_limit_bytes=int(0.85 * cap)),
    )(x_nhwc, w1x, bm1, g1, be1, w2x, bm2, g2, be2, gmat)


def odefunc(t, x_nchw, params, *, groups, eps=1e-5, **kw):
    """ODEfunc.forward(t, x) with NCHW input/output (PyTorch parity)."""
    x_nhwc = jnp.transpose(x_nchw, (0, 2, 3, 1))
    out = odefunc_nhwc(t, x_nhwc, params, groups=groups, eps=eps, **kw)
    return jnp.transpose(out, (0, 3, 1, 2))


# ----------------------------- pure-JAX reference -----------------------------
def _ref_odefunc_nhwc(t, x, params, groups, eps=1e-5):
    def concat_conv(t, x, w, b):
        n, h, wd, _ = x.shape
        tt = jnp.full((n, h, wd, 1), t, x.dtype)
        xx = jnp.concatenate([tt, x], axis=-1)
        y = lax.conv_general_dilated(
            xx, w, (1, 1), "SAME", dimension_numbers=("NHWC", "HWIO", "NHWC"))
        return y + b.reshape(1, 1, 1, -1)

    def gn(x, gamma, beta):
        n, h, wd, c = x.shape
        gs = c // groups
        xg = x.reshape(n, h, wd, groups, gs)
        mean = jnp.mean(xg, axis=(1, 2, 4), keepdims=True)
        var = jnp.mean((xg - mean) ** 2, axis=(1, 2, 4), keepdims=True)
        y = (xg - mean) * lax.rsqrt(var + eps)
        return (y.reshape(n, h, wd, c) * gamma.reshape(1, 1, 1, c)
                + beta.reshape(1, 1, 1, c))

    out = jnp.maximum(gn(concat_conv(t, x, params["w1"], params["b1"]),
                         params["gamma1"], params["beta1"]), 0.0)
    out = jnp.maximum(gn(concat_conv(t, out, params["w2"], params["b2"]),
                         params["gamma2"], params["beta2"]), 0.0)
    return out


# ------------------------------------ main -------------------------------------
if __name__ == "__main__":
    # dim = 4 stands in for ODENet_MNIST's dim = 64 ; GroupNorm(min(32, 4)=4, 4)
    N, C, H, W = 2, 4, 16, 16
    groups = min(32, C)
    C1 = C + 1  # ConcatConv2d input channels (t channel + C)

    key = jax.random.PRNGKey(0)
    ks = jax.random.split(key, 9)
    x_nchw = jax.random.normal(ks[0], (N, C, H, W), dtype=jnp.float32)

    params = {
        # ConcatConv2d weights in HWIO layout (3, 3, C+1, C); channel 0 = t channel.
        "w1": 0.3 * jax.random.normal(ks[1], (3, 3, C1, C), dtype=jnp.float32),
        "b1": 0.1 * jax.random.normal(ks[2], (C,), dtype=jnp.float32),
        "w2": 0.3 * jax.random.normal(ks[3], (3, 3, C1, C), dtype=jnp.float32),
        "b2": 0.1 * jax.random.normal(ks[4], (C,), dtype=jnp.float32),
        # GroupNorm affine (perturbed from PyTorch's ones/zeros init so it is exercised)
        "gamma1": 1.0 + 0.1 * jax.random.normal(ks[5], (C,), dtype=jnp.float32),
        "beta1": 0.1 * jax.random.normal(ks[6], (C,), dtype=jnp.float32),
        "gamma2": 1.0 + 0.1 * jax.random.normal(ks[7], (C,), dtype=jnp.float32),
        "beta2": 0.1 * jax.random.normal(ks[8], (C,), dtype=jnp.float32),
    }

    t = 0.7  # nonzero so the ConcatConv2d time channel is actually exercised

    # --- single ODEfunc evaluation (NCHW, PyTorch parity, float32 path) ---
    out = odefunc(t, x_nchw, params, groups=groups)
    out = jax.block_until_ready(out)
    assert out.shape == (N, C, H, W)

    x_nhwc = jnp.transpose(x_nchw, (0, 2, 3, 1))
    ref = _ref_odefunc_nhwc(t, x_nhwc, params, groups)
    ref_nchw = jnp.transpose(ref, (0, 3, 1, 2))
    err = float(jnp.max(jnp.abs(out - ref_nchw)))
    assert err < 1e-4, f"odefunc mismatch vs reference: max_err={err}"

    # --- fully fused ODEBlock (fixed-step Euler), state resident in VMEM ---
    num_steps = 4
    y = odeblock_euler_nhwc(x_nhwc, params, groups=groups,
                            t0=0.0, t1=1.0, num_steps=num_steps)
    y = jax.block_until_ready(y)

    y_ref = x_nhwc
    dt = 1.0 / num_steps
    for i in range(num_steps):
        y_ref = y_ref + dt * _ref_odefunc_nhwc(i * dt, y_ref, params, groups)
    err2 = float(jnp.max(jnp.abs(y - y_ref)))
    assert err2 < 1e-3, f"euler ODEBlock mismatch vs reference: max_err={err2}"

    # --- bf16 MXU path (conv inputs in bf16, stats/state stay f32): loose tolerance ---
    y_bf16 = odeblock_euler_nhwc(x_nhwc, params, groups=groups, t0=0.0, t1=1.0,
                                 num_steps=num_steps, conv_dtype=jnp.bfloat16)
    y_bf16 = jax.block_until_ready(y_bf16)
    err3 = float(jnp.max(jnp.abs(y_bf16.astype(jnp.float32) - y)))
    assert err3 < 0.25, f"bf16 euler ODEBlock too far from f32 kernel: max_err={err3}"

    print("KERNEL_OK")
</pallas_src>

<mosaic_0001>
module attributes {stable_mosaic.version = 11 : i64} {
  func.func @_odefunc_kernel(%arg0: i32, %arg1: memref<1x16x16x4xf32, #tpu.memory_space<vmem>>, %arg2: memref<36x4xf32, #tpu.memory_space<vmem>>, %arg3: memref<256x4xf32, #tpu.memory_space<vmem>>, %arg4: memref<1x4xf32, #tpu.memory_space<vmem>>, %arg5: memref<1x4xf32, #tpu.memory_space<vmem>>, %arg6: memref<36x4xf32, #tpu.memory_space<vmem>>, %arg7: memref<256x4xf32, #tpu.memory_space<vmem>>, %arg8: memref<1x4xf32, #tpu.memory_space<vmem>>, %arg9: memref<1x4xf32, #tpu.memory_space<vmem>>, %arg10: memref<4x4xf32, #tpu.memory_space<vmem>>, %arg11: memref<1x16x16x4xf32, #tpu.memory_space<vmem>>, %arg12: memref<1x18x18x4xf32, #tpu.memory_space<vmem>>, %arg13: memref<256x36xf32, #tpu.memory_space<vmem>>) attributes {dimension_semantics = [#tpu.dimension_semantics<parallel>], iteration_bounds = array<i64: 2>, scalar_prefetch = 0 : i64, scratch_operands = 2 : i64, tpu.core_type = #tpu.core_type<tc>, window_params = [{transform_indices = @transform_0, window_bounds = array<i64: 1, 16, 16, 4>}, {pipeline_mode = #tpu.pipeline_mode<synchronous>, transform_indices = @transform_1, window_bounds = array<i64: 36, 4>}, {pipeline_mode = #tpu.pipeline_mode<synchronous>, transform_indices = @transform_2, window_bounds = array<i64: 256, 4>}, {pipeline_mode = #tpu.pipeline_mode<synchronous>, transform_indices = @transform_3, window_bounds = array<i64: 1, 4>}, {pipeline_mode = #tpu.pipeline_mode<synchronous>, transform_indices = @transform_4, window_bounds = array<i64: 1, 4>}, {pipeline_mode = #tpu.pipeline_mode<synchronous>, transform_indices = @transform_5, window_bounds = array<i64: 36, 4>}, {pipeline_mode = #tpu.pipeline_mode<synchronous>, transform_indices = @transform_6, window_bounds = array<i64: 256, 4>}, {pipeline_mode = #tpu.pipeline_mode<synchronous>, transform_indices = @transform_7, window_bounds = array<i64: 1, 4>}, {pipeline_mode = #tpu.pipeline_mode<synchronous>, transform_indices = @transform_8, window_bounds = array<i64: 1, 4>}, {pipeline_mode = #tpu.pipeline_mode<synchronous>, transform_indices = @transform_9, window_bounds = array<i64: 4, 4>}, {transform_indices = @transform_10, window_bounds = array<i64: 1, 16, 16, 4>}]} {
    %cst = arith.constant 0.000000e+00 : f32
    %0 = vector.broadcast %cst : f32 to vector<1x1x18x4xf32>
    %cst_0 = arith.constant 0.000000e+00 : f32
    %1 = vector.broadcast %cst_0 : f32 to vector<1x16x1x4xf32>
    %c0 = arith.constant 0 : index
    %c0_1 = arith.constant 0 : index
    %c0_2 = arith.constant 0 : index
    %c0_3 = arith.constant 0 : index
    %2 = vector.load %arg12[%c0, %c0_1, %c0_2, %c0_3] : memref<1x18x18x4xf32, #tpu.memory_space<vmem>>, vector<1x1x18x4xf32>
    tpu.vector_store %arg12[%c0, %c0_1, %c0_2, %c0_3], %0 {strides = array<i32>} : memref<1x18x18x4xf32, #tpu.memory_space<vmem>>, vector<1x1x18x4xf32>,
    %c0_4 = arith.constant 0 : index
    %c17 = arith.constant 17 : index
    %c0_5 = arith.constant 0 : index
    %c0_6 = arith.constant 0 : index
    %3 = vector.load %arg12[%c0_4, %c17, %c0_5, %c0_6] : memref<1x18x18x4xf32, #tpu.memory_space<vmem>>, vector<1x1x18x4xf32>
    tpu.vector_store %arg12[%c0_4, %c17, %c0_5, %c0_6], %0 {strides = array<i32>} : memref<1x18x18x4xf32, #tpu.memory_space<vmem>>, vector<1x1x18x4xf32>,
    %c0_7 = arith.constant 0 : index
    %c1 = arith.constant 1 : index
    %c0_8 = arith.constant 0 : index
    %c0_9 = arith.constant 0 : index
    %4 = vector.load %arg12[%c0_7, %c1, %c0_8, %c0_9] : memref<1x18x18x4xf32, #tpu.memory_space<vmem>>, vector<1x16x1x4xf32>
    tpu.vector_store %arg12[%c0_7, %c1, %c0_8, %c0_9], %1 {strides = array<i32>} : memref<1x18x18x4xf32, #tpu.memory_space<vmem>>, vector<1x16x1x4xf32>,
    %c0_10 = arith.constant 0 : index
    %c1_11 = arith.constant 1 : index
    %c17_12 = arith.constant 17 : index
    %c0_13 = arith.constant 0 : index
    %5 = vector.load %arg12[%c0_10, %c1_11, %c17_12, %c0_13] : memref<1x18x18x4xf32, #tpu.memory_space<vmem>>, vector<1x16x1x4xf32>
    tpu.vector_store %arg12[%c0_10, %c1_11, %c17_12, %c0_13], %1 {strides = array<i32>} : memref<1x18x18x4xf32, #tpu.memory_space<vmem>>, vector<1x16x1x4xf32>,
    %c0_14 = arith.constant 0 : index
    %c0_15 = arith.constant 0 : index
    %6 = vector.load %arg10[%c0_14, %c0_15] : memref<4x4xf32, #tpu.memory_space<vmem>>, vector<4x4xf32>
    %c0_16 = arith.constant 0 : index
    %c0_17 = arith.constant 0 : index
    %c0_18 = arith.constant 0 : index
    %c0_19 = arith.constant 0 : index
    %7 = vector.load %arg1[%c0_16, %c0_17, %c0_18, %c0_19] : memref<1x16x16x4xf32, #tpu.memory_space<vmem>>, vector<1x16x16x4xf32>
    %c0_20 = arith.constant 0 : index
    %c1_21 = arith.constant 1 : index
    %c1_22 = arith.constant 1 : index
    %c0_23 = arith.constant 0 : index
    %8 = vector.load %arg12[%c0_20, %c1_21, %c1_22, %c0_23] : memref<1x18x18x4xf32, #tpu.memory_space<vmem>>, vector<1x16x16x4xf32>
    tpu.vector_store %arg12[%c0_20, %c1_21, %c1_22, %c0_23], %7 {strides = array<i32>} : memref<1x18x18x4xf32, #tpu.memory_space<vmem>>, vector<1x16x16x4xf32>,
    %c0_24 = arith.constant 0 : index
    %c0_25 = arith.constant 0 : index
    %9 = vector.load %arg2[%c0_24, %c0_25] : memref<36x4xf32, #tpu.memory_space<vmem>>, vector<36x4xf32>
    %c0_26 = arith.constant 0 : index
    %c0_27 = arith.constant 0 : index
    %10 = vector.load %arg3[%c0_26, %c0_27] : memref<256x4xf32, #tpu.memory_space<vmem>>, vector<256x4xf32>
    %c0_28 = arith.constant 0 : index
    %c0_29 = arith.constant 0 : index
    %11 = vector.load %arg4[%c0_28, %c0_29] : memref<1x4xf32, #tpu.memory_space<vmem>>, vector<1x4xf32>
    %c0_30 = arith.constant 0 : index
    %c0_31 = arith.constant 0 : index
    %12 = vector.load %arg5[%c0_30, %c0_31] : memref<1x4xf32, #tpu.memory_space<vmem>>, vector<1x4xf32>
    %c0_32 = arith.constant 0 : index
    %c0_33 = arith.constant 0 : index
    %c0_34 = arith.constant 0 : index
    %c0_35 = arith.constant 0 : index
    %13 = vector.load %arg12[%c0_32, %c0_33, %c0_34, %c0_35] : memref<1x18x18x4xf32, #tpu.memory_space<vmem>>, vector<1x16x16x4xf32>
    %14 = vector.shape_cast %13 : vector<1x16x16x4xf32> to vector<256x4xf32>
    %c0_36 = arith.constant 0 : index
    %c0_37 = arith.constant 0 : index
    %15 = vector.load %arg13[%c0_36, %c0_37] : memref<256x36xf32, #tpu.memory_space<vmem>>, vector<256x4xf32>
    tpu.vector_store %arg13[%c0_36, %c0_37], %14 {strides = array<i32>} : memref<256x36xf32, #tpu.memory_space<vmem>>, vector<256x4xf32>,
    %c0_38 = arith.constant 0 : index
    %c0_39 = arith.constant 0 : index
    %c1_40 = arith.constant 1 : index
    %c0_41 = arith.constant 0 : index
    %16 = vector.load %arg12[%c0_38, %c0_39, %c1_40, %c0_41] : memref<1x18x18x4xf32, #tpu.memory_space<vmem>>, vector<1x16x16x4xf32>
    %17 = vector.shape_cast %16 : vector<1x16x16x4xf32> to vector<256x4xf32>
    %c0_42 = arith.constant 0 : index
    %c4 = arith.constant 4 : index
    %18 = vector.load %arg13[%c0_42, %c4] : memref<256x36xf32, #tpu.memory_space<vmem>>, vector<256x4xf32>
    tpu.vector_store %arg13[%c0_42, %c4], %17 {strides = array<i32>} : memref<256x36xf32, #tpu.memory_space<vmem>>, vector<256x4xf32>,
    %c0_43 = arith.constant 0 : index
    %c0_44 = arith.constant 0 : index
    %c2 = arith.constant 2 : index
    %c0_45 = arith.constant 0 : index
    %19 = vector.load %arg12[%c0_43, %c0_44, %c2, %c0_45] : memref<1x18x18x4xf32, #tpu.memory_space<vmem>>, vector<1x16x16x4xf32>
    %20 = vector.shape_cast %19 : vector<1x16x16x4xf32> to vector<256x4xf32>
    %c0_46 = arith.constant 0 : index
    %c8 = arith.constant 8 : index
    %21 = vector.load %arg13[%c0_46, %c8] : memref<256x36xf32, #tpu.memory_space<vmem>>, vector<256x4xf32>
    tpu.vector_store %arg13[%c0_46, %c8], %20 {strides = array<i32>} : memref<256x36xf32, #tpu.memory_space<vmem>>, vector<256x4xf32>,
    %c0_47 = arith.constant 0 : index
    %c1_48 = arith.constant 1 : index
    %c0_49 = arith.constant 0 : index
    %c0_50 = arith.constant 0 : index
    %22 = vector.load %arg12[%c0_47, %c1_48, %c0_49, %c0_50] : memref<1x18x18x4xf32, #tpu.memory_space<vmem>>, vector<1x16x16x4xf32>
    %23 = vector.shape_cast %22 : vector<1x16x16x4xf32> to vector<256x4xf32>
    %c0_51 = arith.constant 0 : index
    %c12 = arith.constant 12 : index
    %24 = vector.load %arg13[%c0_51, %c12] : memref<256x36xf32, #tpu.memory_space<vmem>>, vector<256x4xf32>
    tpu.vector_store %arg13[%c0_51, %c12], %23 {strides = array<i32>} : memref<256x36xf32, #tpu.memory_space<vmem>>, vector<256x4xf32>,
    %c0_52 = arith.constant 0 : index
    %c1_53 = arith.constant 1 : index
    %c1_54 = arith.constant 1 : index
    %c0_55 = arith.constant 0 : index
    %25 = vector.load %arg12[%c0_52, %c1_53, %c1_54, %c0_55] : memref<1x18x18x4xf32, #tpu.memory_space<vmem>>, vector<1x16x16x4xf32>
    %26 = vector.shape_cast %25 : vector<1x16x16x4xf32> to vector<256x4xf32>
    %c0_56 = arith.constant 0 : index
    %c16 = arith.constant 16 : index
    %27 = vector.load %arg13[%c0_56, %c16] : memref<256x36xf32, #tpu.memory_space<vmem>>, vector<256x4xf32>
    tpu.vector_store %arg13[%c0_56, %c16], %26 {strides = array<i32>} : memref<256x36xf32, #tpu.memory_space<vmem>>, vector<256x4xf32>,
    %c0_57 = arith.constant 0 : index
    %c1_58 = arith.constant 1 : index
    %c2_59 = arith.constant 2 : index
    %c0_60 = arith.constant 0 : index
    %28 = vector.load %arg12[%c0_57, %c1_58, %c2_59, %c0_60] : memref<1x18x18x4xf32, #tpu.memory_space<vmem>>, vector<1x16x16x4xf32>
    %29 = vector.shape_cast %28 : vector<1x16x16x4xf32> to vector<256x4xf32>
    %c0_61 = arith.constant 0 : index
    %c20 = arith.constant 20 : index
    %30 = vector.load %arg13[%c0_61, %c20] : memref<256x36xf32, #tpu.memory_space<vmem>>, vector<256x4xf32>
    tpu.vector_store %arg13[%c0_61, %c20], %29 {strides = array<i32>} : memref<256x36xf32, #tpu.memory_space<vmem>>, vector<256x4xf32>,
    %c0_62 = arith.constant 0 : index
    %c2_63 = arith.constant 2 : index
    %c0_64 = arith.constant 0 : index
    %c0_65 = arith.constant 0 : index
    %31 = vector.load %arg12[%c0_62, %c2_63, %c0_64, %c0_65] : memref<1x18x18x4xf32, #tpu.memory_space<vmem>>, vector<1x16x16x4xf32>
    %32 = vector.shape_cast %31 : vector<1x16x16x4xf32> to vector<256x4xf32>
    %c0_66 = arith.constant 0 : index
    %c24 = arith.constant 24 : index
    %33 = vector.load %arg13[%c0_66, %c24] : memref<256x36xf32, #tpu.memory_space<vmem>>, vector<256x4xf32>
    tpu.vector_store %arg13[%c0_66, %c24], %32 {strides = array<i32>} : memref<256x36xf32, #tpu.memory_space<vmem>>, vector<256x4xf32>,
    %c0_67 = arith.constant 0 : index
    %c2_68 = arith.constant 2 : index
    %c1_69 = arith.constant 1 : index
    %c0_70 = arith.constant 0 : index
    %34 = vector.load %arg12[%c0_67, %c2_68, %c1_69, %c0_70] : memref<1x18x18x4xf32, #tpu.memory_space<vmem>>, vector<1x16x16x4xf32>
    %35 = vector.shape_cast %34 : vector<1x16x16x4xf32> to vector<256x4xf32>
    %c0_71 = arith.constant 0 : index
    %c28 = arith.constant 28 : index
    %36 = vector.load %arg13[%c0_71, %c28] : memref<256x36xf32, #tpu.memory_space<vmem>>, vector<256x4xf32>
    tpu.vector_store %arg13[%c0_71, %c28], %35 {strides = array<i32>} : memref<256x36xf32, #tpu.memory_space<vmem>>, vector<256x4xf32>,
    %c0_72 = arith.constant 0 : index
    %c2_73 = arith.constant 2 : index
    %c2_74 = arith.constant 2 : index
    %c0_75 = arith.constant 0 : index
    %37 = vector.load %arg12[%c0_72, %c2_73, %c2_74, %c0_75] : memref<1x18x18x4xf32, #tpu.memory_space<vmem>>, vector<1x16x16x4xf32>
    %38 = vector.shape_cast %37 : vector<1x16x16x4xf32> to vector<256x4xf32>
    %c0_76 = arith.constant 0 : index
    %c32 = arith.constant 32 : index
    %39 = vector.load %arg13[%c0_76, %c32] : memref<256x36xf32, #tpu.memory_space<vmem>>, vector<256x4xf32>
    tpu.vector_store %arg13[%c0_76, %c32], %38 {strides = array<i32>} : memref<256x36xf32, #tpu.memory_space<vmem>>, vector<256x4xf32>,
    %c0_77 = arith.constant 0 : index
    %c0_78 = arith.constant 0 : index
    %40 = vector.load %arg13[%c0_77, %c0_78] : memref<256x36xf32, #tpu.memory_space<vmem>>, vector<256x36xf32>
    %cst_79 = arith.constant dense<0.000000e+00> : vector<256x4xf32>
    %41 = tpu.matmul %40, %9, %cst_79 {dimension_numbers = #tpu.dot_dimension_numbers<[1], [0], [0], [1], [0, 0, 1, 1], [], []>} : vector<256x36xf32>, vector<36x4xf32>, vector<256x4xf32> -> vector<256x4xf32>
    %42 = vector.shape_cast %41 : vector<256x4xf32> to vector<1x256x4xf32>
    %43 = vector.shape_cast %10 : vector<256x4xf32> to vector<1x256x4xf32>
    %44 = arith.addf %42, %43 : vector<1x256x4xf32>
    %cst_80 = arith.constant dense<0.000000e+00> : vector<1x4xf32>
    %45 = vector.multi_reduction <add>, %44, %cst_80 [1] : vector<1x256x4xf32> to vector<1x4xf32>
    %46 = arith.mulf %44, %44 : vector<1x256x4xf32>
    %cst_81 = arith.constant dense<0.000000e+00> : vector<1x4xf32>
    %47 = vector.multi_reduction <add>, %46, %cst_81 [1] : vector<1x256x4xf32> to vector<1x4xf32>
    %cst_82 = arith.constant dense<0.000000e+00> : vector<1x4xf32>
    %48 = tpu.matmul %45, %6, %cst_82 {dimension_numbers = #tpu.dot_dimension_numbers<[1], [0], [0], [1], [0, 0, 1, 1], [], []>} : vector<1x4xf32>, vector<4x4xf32>, vector<1x4xf32> -> vector<1x4xf32>
    %cst_83 = arith.constant dense<0.000000e+00> : vector<1x4xf32>
    %49 = tpu.matmul %47, %6, %cst_83 {dimension_numbers = #tpu.dot_dimension_numbers<[1], [0], [0], [1], [0, 0, 1, 1], [], []>} : vector<1x4xf32>, vector<4x4xf32>, vector<1x4xf32> -> vector<1x4xf32>
    %50 = arith.mulf %48, %48 : vector<1x4xf32>
    %51 = arith.subf %49, %50 : vector<1x4xf32>
    %cst_84 = arith.constant 9.99999974E-6 : f32
    %52 = vector.broadcast %cst_84 : f32 to vector<1x4xf32>
    %53 = arith.addf %51, %52 : vector<1x4xf32>
    %54 = math.rsqrt %53 : vector<1x4xf32>
    %55 = arith.mulf %54, %11 : vector<1x4xf32>
    %56 = vector.shape_cast %48 : vector<1x4xf32> to vector<1x1x4xf32>
    %57 = vector.broadcast %56 : vector<1x1x4xf32> to vector<1x256x4xf32>
    %58 = arith.subf %44, %57 : vector<1x256x4xf32>
    %59 = vector.shape_cast %55 : vector<1x4xf32> to vector<1x1x4xf32>
    %60 = vector.broadcast %59 : vector<1x1x4xf32> to vector<1x256x4xf32>
    %61 = arith.mulf %58, %60 : vector<1x256x4xf32>
    %62 = vector.shape_cast %12 : vector<1x4xf32> to vector<1x1x4xf32>
    %63 = vector.broadcast %62 : vector<1x1x4xf32> to vector<1x256x4xf32>
    %64 = arith.addf %61, %63 : vector<1x256x4xf32>
    %cst_85 = arith.constant 0.000000e+00 : f32
    %65 = vector.broadcast %cst_85 : f32 to vector<1x256x4xf32>
    %66 = arith.maximumf %64, %65 : vector<1x256x4xf32>
    %67 = vector.shape_cast %66 : vector<1x256x4xf32> to vector<1x16x16x4xf32>
    %c0_86 = arith.constant 0 : index
    %c1_87 = arith.constant 1 : index
    %c1_88 = arith.constant 1 : index
    %c0_89 = arith.constant 0 : index
    %68 = vector.load %arg12[%c0_86, %c1_87, %c1_88, %c0_89] : memref<1x18x18x4xf32, #tpu.memory_space<vmem>>, vector<1x16x16x4xf32>
    tpu.vector_store %arg12[%c0_86, %c1_87, %c1_88, %c0_89], %67 {strides = array<i32>} : memref<1x18x18x4xf32, #tpu.memory_space<vmem>>, vector<1x16x16x4xf32>,
    %c0_90 = arith.constant 0 : index
    %c0_91 = arith.constant 0 : index
    %69 = vector.load %arg6[%c0_90, %c0_91] : memref<36x4xf32, #tpu.memory_space<vmem>>, vector<36x4xf32>
    %c0_92 = arith.constant 0 : index
    %c0_93 = arith.constant 0 : index
    %70 = vector.load %arg7[%c0_92, %c0_93] : memref<256x4xf32, #tpu.memory_space<vmem>>, vector<256x4xf32>
    %c0_94 = arith.constant 0 : index
    %c0_95 = arith.constant 0 : index
    %71 = vector.load %arg8[%c0_94, %c0_95] : memref<1x4xf32, #tpu.memory_space<vmem>>, vector<1x4xf32>
    %c0_96 = arith.constant 0 : index
    %c0_97 = arith.constant 0 : index
    %72 = vector.load %arg9[%c0_96, %c0_97] : memref<1x4xf32, #tpu.memory_space<vmem>>, vector<1x4xf32>
    %c0_98 = arith.constant 0 : index
    %c0_99 = arith.constant 0 : index
    %c0_100 = arith.constant 0 : index
    %c0_101 = arith.constant 0 : index
    %73 = vector.load %arg12[%c0_98, %c0_99, %c0_100, %c0_101] : memref<1x18x18x4xf32, #tpu.memory_space<vmem>>, vector<1x16x16x4xf32>
    %74 = vector.shape_cast %73 : vector<1x16x16x4xf32> to vector<256x4xf32>
    %c0_102 = arith.constant 0 : index
    %c0_103 = arith.constant 0 : index
    %75 = vector.load %arg13[%c0_102, %c0_103] : memref<256x36xf32, #tpu.memory_space<vmem>>, vector<256x4xf32>
    tpu.vector_store %arg13[%c0_102, %c0_103], %74 {strides = array<i32>} : memref<256x36xf32, #tpu.memory_space<vmem>>, vector<256x4xf32>,
    %c0_104 = arith.constant 0 : index
    %c0_105 = arith.constant 0 : index
    %c1_106 = arith.constant 1 : index
    %c0_107 = arith.constant 0 : index
    %76 = vector.load %arg12[%c0_104, %c0_105, %c1_106, %c0_107] : memref<1x18x18x4xf32, #tpu.memory_space<vmem>>, vector<1x16x16x4xf32>
    %77 = vector.shape_cast %76 : vector<1x16x16x4xf32> to vector<256x4xf32>
    %c0_108 = arith.constant 0 : index
    %c4_109 = arith.constant 4 : index
    %78 = vector.load %arg13[%c0_108, %c4_109] : memref<256x36xf32, #tpu.memory_space<vmem>>, vector<256x4xf32>
    tpu.vector_store %arg13[%c0_108, %c4_109], %77 {strides = array<i32>} : memref<256x36xf32, #tpu.memory_space<vmem>>, vector<256x4xf32>,
    %c0_110 = arith.constant 0 : index
    %c0_111 = arith.constant 0 : index
    %c2_112 = arith.constant 2 : index
    %c0_113 = arith.constant 0 : index
    %79 = vector.load %arg12[%c0_110, %c0_111, %c2_112, %c0_113] : memref<1x18x18x4xf32, #tpu.memory_space<vmem>>, vector<1x16x16x4xf32>
    %80 = vector.shape_cast %79 : vector<1x16x16x4xf32> to vector<256x4xf32>
    %c0_114 = arith.constant 0 : index
    %c8_115 = arith.constant 8 : index
    %81 = vector.load %arg13[%c0_114, %c8_115] : memref<256x36xf32, #tpu.memory_space<vmem>>, vector<256x4xf32>
    tpu.vector_store %arg13[%c0_114, %c8_115], %80 {strides = array<i32>} : memref<256x36xf32, #tpu.memory_space<vmem>>, vector<256x4xf32>,
    %c0_116 = arith.constant 0 : index
    %c1_117 = arith.constant 1 : index
    %c0_118 = arith.constant 0 : index
    %c0_119 = arith.constant 0 : index
    %82 = vector.load %arg12[%c0_116, %c1_117, %c0_118, %c0_119] : memref<1x18x18x4xf32, #tpu.memory_space<vmem>>, vector<1x16x16x4xf32>
    %83 = vector.shape_cast %82 : vector<1x16x16x4xf32> to vector<256x4xf32>
    %c0_120 = arith.constant 0 : index
    %c12_121 = arith.constant 12 : index
    %84 = vector.load %arg13[%c0_120, %c12_121] : memref<256x36xf32, #tpu.memory_space<vmem>>, vector<256x4xf32>
    tpu.vector_store %arg13[%c0_120, %c12_121], %83 {strides = array<i32>} : memref<256x36xf32, #tpu.memory_space<vmem>>, vector<256x4xf32>,
    %c0_122 = arith.constant 0 : index
    %c1_123 = arith.constant 1 : index
    %c1_124 = arith.constant 1 : index
    %c0_125 = arith.constant 0 : index
    %85 = vector.load %arg12[%c0_122, %c1_123, %c1_124, %c0_125] : memref<1x18x18x4xf32, #tpu.memory_space<vmem>>, vector<1x16x16x4xf32>
    %86 = vector.shape_cast %85 : vector<1x16x16x4xf32> to vector<256x4xf32>
    %c0_126 = arith.constant 0 : index
    %c16_127 = arith.constant 16 : index
    %87 = vector.load %arg13[%c0_126, %c16_127] : memref<256x36xf32, #tpu.memory_space<vmem>>, vector<256x4xf32>
    tpu.vector_store %arg13[%c0_126, %c16_127], %86 {strides = array<i32>} : memref<256x36xf32, #tpu.memory_space<vmem>>, vector<256x4xf32>,
    %c0_128 = arith.constant 0 : index
    %c1_129 = arith.constant 1 : index
    %c2_130 = arith.constant 2 : index
    %c0_131 = arith.constant 0 : index
    %88 = vector.load %arg12[%c0_128, %c1_129, %c2_130, %c0_131] : memref<1x18x18x4xf32, #tpu.memory_space<vmem>>, vector<1x16x16x4xf32>
    %89 = vector.shape_cast %88 : vector<1x16x16x4xf32> to vector<256x4xf32>
    %c0_132 = arith.constant 0 : index
    %c20_133 = arith.constant 20 : index
    %90 = vector.load %arg13[%c0_132, %c20_133] : memref<256x36xf32, #tpu.memory_space<vmem>>, vector<256x4xf32>
    tpu.vector_store %arg13[%c0_132, %c20_133], %89 {strides = array<i32>} : memref<256x36xf32, #tpu.memory_space<vmem>>, vector<256x4xf32>,
    %c0_134 = arith.constant 0 : index
    %c2_135 = arith.constant 2 : index
    %c0_136 = arith.constant 0 : index
    %c0_137 = arith.constant 0 : index
    %91 = vector.load %arg12[%c0_134, %c2_135, %c0_136, %c0_137] : memref<1x18x18x4xf32, #tpu.memory_space<vmem>>, vector<1x16x16x4xf32>
    %92 = vector.shape_cast %91 : vector<1x16x16x4xf32> to vector<256x4xf32>
    %c0_138 = arith.constant 0 : index
    %c24_139 = arith.constant 24 : index
    %93 = vector.load %arg13[%c0_138, %c24_139] : memref<256x36xf32, #tpu.memory_space<vmem>>, vector<256x4xf32>
    tpu.vector_store %arg13[%c0_138, %c24_139], %92 {strides = array<i32>} : memref<256x36xf32, #tpu.memory_space<vmem>>, vector<256x4xf32>,
    %c0_140 = arith.constant 0 : index
    %c2_141 = arith.constant 2 : index
    %c1_142 = arith.constant 1 : index
    %c0_143 = arith.constant 0 : index
    %94 = vector.load %arg12[%c0_140, %c2_141, %c1_142, %c0_143] : memref<1x18x18x4xf32, #tpu.memory_space<vmem>>, vector<1x16x16x4xf32>
    %95 = vector.shape_cast %94 : vector<1x16x16x4xf32> to vector<256x4xf32>
    %c0_144 = arith.constant 0 : index
    %c28_145 = arith.constant 28 : index
    %96 = vector.load %arg13[%c0_144, %c28_145] : memref<256x36xf32, #tpu.memory_space<vmem>>, vector<256x4xf32>
    tpu.vector_store %arg13[%c0_144, %c28_145], %95 {strides = array<i32>} : memref<256x36xf32, #tpu.memory_space<vmem>>, vector<256x4xf32>,
    %c0_146 = arith.constant 0 : index
    %c2_147 = arith.constant 2 : index
    %c2_148 = arith.constant 2 : index
    %c0_149 = arith.constant 0 : index
    %97 = vector.load %arg12[%c0_146, %c2_147, %c2_148, %c0_149] : memref<1x18x18x4xf32, #tpu.memory_space<vmem>>, vector<1x16x16x4xf32>
    %98 = vector.shape_cast %97 : vector<1x16x16x4xf32> to vector<256x4xf32>
    %c0_150 = arith.constant 0 : index
    %c32_151 = arith.constant 32 : index
    %99 = vector.load %arg13[%c0_150, %c32_151] : memref<256x36xf32, #tpu.memory_space<vmem>>, vector<256x4xf32>
    tpu.vector_store %arg13[%c0_150, %c32_151], %98 {strides = array<i32>} : memref<256x36xf32, #tpu.memory_space<vmem>>, vector<256x4xf32>,
    %c0_152 = arith.constant 0 : index
    %c0_153 = arith.constant 0 : index
    %100 = vector.load %arg13[%c0_152, %c0_153] : memref<256x36xf32, #tpu.memory_space<vmem>>, vector<256x36xf32>
    %cst_154 = arith.constant dense<0.000000e+00> : vector<256x4xf32>
    %101 = tpu.matmul %100, %69, %cst_154 {dimension_numbers = #tpu.dot_dimension_numbers<[1], [0], [0], [1], [0, 0, 1, 1], [], []>} : vector<256x36xf32>, vector<36x4xf32>, vector<256x4xf32> -> vector<256x4xf32>
    %102 = vector.shape_cast %101 : vector<256x4xf32> to vector<1x256x4xf32>
    %103 = vector.shape_cast %70 : vector<256x4xf32> to vector<1x256x4xf32>
    %104 = arith.addf %102, %103 : vector<1x256x4xf32>
    %cst_155 = arith.constant dense<0.000000e+00> : vector<1x4xf32>
    %105 = vector.multi_reduction <add>, %104, %cst_155 [1] : vector<1x256x4xf32> to vector<1x4xf32>
    %106 = arith.mulf %104, %104 : vector<1x256x4xf32>
    %cst_156 = arith.constant dense<0.000000e+00> : vector<1x4xf32>
    %107 = vector.multi_reduction <add>, %106, %cst_156 [1] : vector<1x256x4xf32> to vector<1x4xf32>
    %cst_157 = arith.constant dense<0.000000e+00> : vector<1x4xf32>
    %108 = tpu.matmul %105, %6, %cst_157 {dimension_numbers = #tpu.dot_dimension_numbers<[1], [0], [0], [1], [0, 0, 1, 1], [], []>} : vector<1x4xf32>, vector<4x4xf32>, vector<1x4xf32> -> vector<1x4xf32>
    %cst_158 = arith.constant dense<0.000000e+00> : vector<1x4xf32>
    %109 = tpu.matmul %107, %6, %cst_158 {dimension_numbers = #tpu.dot_dimension_numbers<[1], [0], [0], [1], [0, 0, 1, 1], [], []>} : vector<1x4xf32>, vector<4x4xf32>, vector<1x4xf32> -> vector<1x4xf32>
    %110 = arith.mulf %108, %108 : vector<1x4xf32>
    %111 = arith.subf %109, %110 : vector<1x4xf32>
    %cst_159 = arith.constant 9.99999974E-6 : f32
    %112 = vector.broadcast %cst_159 : f32 to vector<1x4xf32>
    %113 = arith.addf %111, %112 : vector<1x4xf32>
    %114 = math.rsqrt %113 : vector<1x4xf32>
    %115 = arith.mulf %114, %71 : vector<1x4xf32>
    %116 = vector.shape_cast %108 : vector<1x4xf32> to vector<1x1x4xf32>
    %117 = vector.broadcast %116 : vector<1x1x4xf32> to vector<1x256x4xf32>
    %118 = arith.subf %104, %117 : vector<1x256x4xf32>
    %119 = vector.shape_cast %115 : vector<1x4xf32> to vector<1x1x4xf32>
    %120 = vector.broadcast %119 : vector<1x1x4xf32> to vector<1x256x4xf32>
    %121 = arith.mulf %118, %120 : vector<1x256x4xf32>
    %122 = vector.shape_cast %72 : vector<1x4xf32> to vector<1x1x4xf32>
    %123 = vector.broadcast %122 : vector<1x1x4xf32> to vector<1x256x4xf32>
    %124 = arith.addf %121, %123 : vector<1x256x4xf32>
    %cst_160 = arith.constant 0.000000e+00 : f32
    %125 = vector.broadcast %cst_160 : f32 to vector<1x256x4xf32>
    %126 = arith.maximumf %124, %125 : vector<1x256x4xf32>
    %127 = vector.shape_cast %126 : vector<1x256x4xf32> to vector<1x16x16x4xf32>
    %c0_161 = arith.constant 0 : index
    %c0_162 = arith.constant 0 : index
    %c0_163 = arith.constant 0 : index
    %c0_164 = arith.constant 0 : index
    %128 = vector.load %arg11[%c0_161, %c0_162, %c0_163, %c0_164] : memref<1x16x16x4xf32, #tpu.memory_space<vmem>>, vector<1x16x16x4xf32>
    tpu.vector_store %arg11[%c0_161, %c0_162, %c0_163, %c0_164], %127 {strides = array<i32>} : memref<1x16x16x4xf32, #tpu.memory_space<vmem>>, vector<1x16x16x4xf32>,
    return
  }
  func.func @transform_0(%arg0: i32) -> (i32, i32, i32, i32) {
    %c0_i32 = arith.constant 0 : i32
    %c0_i32_0 = arith.constant 0 : i32
    %c0_i32_1 = arith.constant 0 : i32
    %c0_i32_2 = arith.constant 0 : i32
    return %arg0, %c0_i32, %c0_i32_0, %c0_i32_1 : i32, i32, i32, i32
  }
  func.func @transform_1(%arg0: i32) -> (i32, i32) {
    %c0_i32 = arith.constant 0 : i32
    %c0_i32_0 = arith.constant 0 : i32
    %c0_i32_1 = arith.constant 0 : i32
    return %c0_i32, %c0_i32_0 : i32, i32
  }
  func.func @transform_2(%arg0: i32) -> (i32, i32) {
    %c0_i32 = arith.constant 0 : i32
    %c0_i32_0 = arith.constant 0 : i32
    %c0_i32_1 = arith.constant 0 : i32
    return %c0_i32, %c0_i32_0 : i32, i32
  }
  func.func @transform_3(%arg0: i32) -> (i32, i32) {
    %c0_i32 = arith.constant 0 : i32
    %c0_i32_0 = arith.constant 0 : i32
    %c0_i32_1 = arith.constant 0 : i32
    return %c0_i32, %c0_i32_0 : i32, i32
  }
  func.func @transform_4(%arg0: i32) -> (i32, i32) {
    %c0_i32 = arith.constant 0 : i32
    %c0_i32_0 = arith.constant 0 : i32
    %c0_i32_1 = arith.constant 0 : i32
    return %c0_i32, %c0_i32_0 : i32, i32
  }
  func.func @transform_5(%arg0: i32) -> (i32, i32) {
    %c0_i32 = arith.constant 0 : i32
    %c0_i32_0 = arith.constant 0 : i32
    %c0_i32_1 = arith.constant 0 : i32
    return %c0_i32, %c0_i32_0 : i32, i32
  }
  func.func @transform_6(%arg0: i32) -> (i32, i32) {
    %c0_i32 = arith.constant 0 : i32
    %c0_i32_0 = arith.constant 0 : i32
    %c0_i32_1 = arith.constant 0 : i32
    return %c0_i32, %c0_i32_0 : i32, i32
  }
  func.func @transform_7(%arg0: i32) -> (i32, i32) {
    %c0_i32 = arith.constant 0 : i32
    %c0_i32_0 = arith.constant 0 : i32
    %c0_i32_1 = arith.constant 0 : i32
    return %c0_i32, %c0_i32_0 : i32, i32
  }
  func.func @transform_8(%arg0: i32) -> (i32, i32) {
    %c0_i32 = arith.constant 0 : i32
    %c0_i32_0 = arith.constant 0 : i32
    %c0_i32_1 = arith.constant 0 : i32
    return %c0_i32, %c0_i32_0 : i32, i32
  }
  func.func @transform_9(%arg0: i32) -> (i32, i32) {
    %c0_i32 = arith.constant 0 : i32
    %c0_i32_0 = arith.constant 0 : i32
    %c0_i32_1 = arith.constant 0 : i32
    return %c0_i32, %c0_i32_0 : i32, i32
  }
  func.func @transform_10(%arg0: i32) -> (i32, i32, i32, i32) {
    %c0_i32 = arith.constant 0 : i32
    %c0_i32_0 = arith.constant 0 : i32
    %c0_i32_1 = arith.constant 0 : i32
    %c0_i32_2 = arith.constant 0 : i32
    return %arg0, %c0_i32, %c0_i32_0, %c0_i32_1 : i32, i32, i32, i32
  }
}

</mosaic_0001>

<llo_original>
// kernel: tpu_custom_call.1
$region0: #{tpu_custom_call.1}
  #allocation0 [shape = 'u32[]', space=smem, size = 0x4, offset = 0x4, fixed_abs, tag = 'smem constant byte address 0x4 - core index']
  #allocation1 [shape = 'u32[144,128]{1,0:T(1,128)}', space=vmem, size = 0x12000, scoped, tag = 'internal scratch']
  #allocation2 [shape = 'f32[1,18,18,4]{3,2,1,0:T(8,128)}', space=vmem, size = 0x36000, scoped, tag = 'scratch operand']
  #allocation3 [shape = 'f32[256,36]{1,0:T(8,128)}', space=vmem, size = 0x20000, scoped, tag = 'scratch operand']
  %s0 = inlined_call_operand.vmem [shape: f32[2,16,16,4], index: 0, kind: input, shape index: {}]
  %s1 = inlined_call_operand.vmem [shape: f32[36,4], index: 1, kind: input, shape index: {}]
  %s2 = inlined_call_operand.vmem [shape: f32[256,4], index: 2, kind: input, shape index: {}]
  %s3 = inlined_call_operand.vmem [shape: f32[1,4], index: 3, kind: input, shape index: {}]
  %s4 = inlined_call_operand.vmem [shape: f32[1,4], index: 4, kind: input, shape index: {}]
  %s5 = inlined_call_operand.vmem [shape: f32[36,4], index: 5, kind: input, shape index: {}]
  %s6 = inlined_call_operand.vmem [shape: f32[256,4], index: 6, kind: input, shape index: {}]
  %s7 = inlined_call_operand.vmem [shape: f32[1,4], index: 7, kind: input, shape index: {}]
  %s8 = inlined_call_operand.vmem [shape: f32[1,4], index: 8, kind: input, shape index: {}]
  %s9 = inlined_call_operand.vmem [shape: f32[4,4], index: 9, kind: input, shape index: {}]
  %s10 = inlined_call_operand.vmem [shape: f32[2,16,16,4], index: 10, kind: output, shape index: {}]
  %s11 = sld [smem:[#allocation0]]
  $region73: #{tpu_custom_call.1} parent=0
    _
  %s13 = ssub.s32 1, %s11
  %s14 = scalar_select 0, %s13, %s11
  loop: start=0, step=1, limit=4
  $region2: #{tpu_custom_call.1} parent=0 // loop_pre_header
    _
  $region3: #{tpu_custom_call.1} parent=0 // loop_header
    %s16 = sphi 0, %s20
    %p17 = scmp.ge.s32.totalorder %s16, 4
    %s26 = sphi 0, %s28
    %s29 = sphi 0, %s26
    %s30 = sphi 0, %s29
    %s46 = sphi 0, %s30
    %s50 = sphi 0, %s50
    %s52 = sphi 0, %s50
    %s53 = sphi 0, %s52
    %s67 = sphi 0, %s53
    %s71 = sphi 0, %s71
    %s73 = sphi 0, %s71
    %s74 = sphi 0, %s73
    %s88 = sphi 0, %s74
    %s92 = sphi 0, %s92
    %s94 = sphi 0, %s92
    %s95 = sphi 0, %s94
    %s109 = sphi 0, %s95
    %s113 = sphi 0, %s113
    %s115 = sphi 0, %s113
    %s116 = sphi 0, %s115
    %s130 = sphi 0, %s116
    %s134 = sphi 0, %s134
    %s136 = sphi 0, %s134
    %s137 = sphi 0, %s136
    %s151 = sphi 0, %s137
    %s155 = sphi 0, %s155
    %s157 = sphi 0, %s155
    %s158 = sphi 0, %s157
    %s172 = sphi 0, %s158
    %s176 = sphi 0, %s176
    %s178 = sphi 0, %s176
    %s179 = sphi 0, %s178
    %s193 = sphi 0, %s179
    %s197 = sphi 0, %s197
    %s199 = sphi 0, %s197
    %s200 = sphi 0, %s199
    %s214 = sphi 0, %s200
    %s218 = sphi 0, %s218
    %s220 = sphi 0, %s218
    %s221 = sphi 0, %s220
    %s235 = sphi 0, %s221
    %s241 = sphi 0, %s243
    %s244 = sphi 0, %s241
    %s245 = sphi 0, %s244
    %s261 = sphi 0, %s245
  $region4: #{tpu_custom_call.1} parent=0 // loop_header_branch
    %19 = sbr.rel (%p17) target = $region8
  $region5: #{tpu_custom_call.1} parent=0 // loop_body
    %s21 = ssub.s32 %s16, 1
    %s22 = ssub.s32 %s16, 2
    %s23 = sadd.s32 %s16, 1
    %s24 = ssub.s32 %s16, %s23
    %p25 = scmp.eq.s32.totalorder %s24, 0
    %s27 = sadd.s32 %s26, 1
    %s28 = scalar_select %p25, %s26, %s27
    %p31 = pneg %p25
    %p32 = scmp.eq.s32.totalorder %s16, 1
    %p33 = por %p31, %p32
    %p34 = scmp.ne.s32.totalorder %s26, %s29
    %p35 = scmp.eq.s32.totalorder %s16, 0
    %p36 = por %p34, %p35
    %p37 = scmp.ne.s32.totalorder %s26, %s29
    %p38 = scmp.eq.s32.totalorder %s21, 1
    %p39 = por %p37, %p38
    %p40 = scmp.ne.s32.totalorder %s29, %s30
    %p41 = scmp.eq.s32.totalorder %s21, 0
    %p42 = por %p40, %p41
    %p43 = scmp.ne.s32.totalorder %s29, %s30
    %p44 = scmp.eq.s32.totalorder %s22, 1
    %p45 = por %p43, %p44
    %p47 = scmp.ne.s32.totalorder %s30, %s46
    %p48 = scmp.eq.s32.totalorder %s22, 0
    %p49 = por %p47, %p48
    %s51 = sadd.s32 %s50, 1
    %p54 = scmp.eq.s32.totalorder %s16, 1
    %p55 = scmp.ne.s32.totalorder %s50, %s52
    %p56 = scmp.eq.s32.totalorder %s16, 0
    %p57 = por %p55, %p56
    %p58 = scmp.ne.s32.totalorder %s50, %s52
    %p59 = scmp.eq.s32.totalorder %s21, 1
    %p60 = por %p58, %p59
    %p61 = scmp.ne.s32.totalorder %s52, %s53
    %p62 = scmp.eq.s32.totalorder %s21, 0
    %p63 = por %p61, %p62
    %p64 = scmp.ne.s32.totalorder %s52, %s53
    %p65 = scmp.eq.s32.totalorder %s22, 1
    %p66 = por %p64, %p65
    %p68 = scmp.ne.s32.totalorder %s53, %s67
    %p69 = scmp.eq.s32.totalorder %s22, 0
    %p70 = por %p68, %p69
    %s72 = sadd.s32 %s71, 1
    %p75 = scmp.eq.s32.totalorder %s16, 1
    %p76 = scmp.ne.s32.totalorder %s71, %s73
    %p77 = scmp.eq.s32.totalorder %s16, 0
    %p78 = por %p76, %p77
    %p79 = scmp.ne.s32.totalorder %s71, %s73
    %p80 = scmp.eq.s32.totalorder %s21, 1
    %p81 = por %p79, %p80
    %p82 = scmp.ne.s32.totalorder %s73, %s74
    %p83 = scmp.eq.s32.totalorder %s21, 0
    %p84 = por %p82, %p83
    %p85 = scmp.ne.s32.totalorder %s73, %s74
    %p86 = scmp.eq.s32.totalorder %s22, 1
    %p87 = por %p85, %p86
    %p89 = scmp.ne.s32.totalorder %s74, %s88
    %p90 = scmp.eq.s32.totalorder %s22, 0
    %p91 = por %p89, %p90
    %s93 = sadd.s32 %s92, 1
    %p96 = scmp.eq.s32.totalorder %s16, 1
    %p97 = scmp.ne.s32.totalorder %s92, %s94
    %p98 = scmp.eq.s32.totalorder %s16, 0
    %p99 = por %p97, %p98
    %p100 = scmp.ne.s32.totalorder %s92, %s94
    %p101 = scmp.eq.s32.totalorder %s21, 1
    %p102 = por %p100, %p101
    %p103 = scmp.ne.s32.totalorder %s94, %s95
    %p104 = scmp.eq.s32.totalorder %s21, 0
    %p105 = por %p103, %p104
    %p106 = scmp.ne.s32.totalorder %s94, %s95
    %p107 = scmp.eq.s32.totalorder %s22, 1
    %p108 = por %p106, %p107
    %p110 = scmp.ne.s32.totalorder %s95, %s109
    %p111 = scmp.eq.s32.totalorder %s22, 0
    %p112 = por %p110, %p111
    %s114 = sadd.s32 %s113, 1
    %p117 = scmp.eq.s32.totalorder %s16, 1
    %p118 = scmp.ne.s32.totalorder %s113, %s115
    %p119 = scmp.eq.s32.totalorder %s16, 0
    %p120 = por %p118, %p119
    %p121 = scmp.ne.s32.totalorder %s113, %s115
    %p122 = scmp.eq.s32.totalorder %s21, 1
    %p123 = por %p121, %p122
    %p124 = scmp.ne.s32.totalorder %s115, %s116
    %p125 = scmp.eq.s32.totalorder %s21, 0
    %p126 = por %p124, %p125
    %p127 = scmp.ne.s32.totalorder %s115, %s116
    %p128 = scmp.eq.s32.totalorder %s22, 1
    %p129 = por %p127, %p128
    %p131 = scmp.ne.s32.totalorder %s116, %s130
    %p132 = scmp.eq.s32.totalorder %s22, 0
    %p133 = por %p131, %p132
    %s135 = sadd.s32 %s134, 1
    %p138 = scmp.eq.s32.totalorder %s16, 1
    %p139 = scmp.ne.s32.totalorder %s134, %s136
    %p140 = scmp.eq.s32.totalorder %s16, 0
    %p141 = por %p139, %p140
    %p142 = scmp.ne.s32.totalorder %s134, %s136
    %p143 = scmp.eq.s32.totalorder %s21, 1
    %p144 = por %p142, %p143
    %p145 = scmp.ne.s32.totalorder %s136, %s137
    %p146 = scmp.eq.s32.totalorder %s21, 0
    %p147 = por %p145, %p146
    %p148 = scmp.ne.s32.totalorder %s136, %s137
    %p149 = scmp.eq.s32.totalorder %s22, 1
    %p150 = por %p148, %p149
    %p152 = scmp.ne.s32.totalorder %s137, %s151
    %p153 = scmp.eq.s32.totalorder %s22, 0
    %p154 = por %p152, %p153
    %s156 = sadd.s32 %s155, 1
    %p159 = scmp.eq.s32.totalorder %s16, 1
    %p160 = scmp.ne.s32.totalorder %s155, %s157
    %p161 = scmp.eq.s32.totalorder %s16, 0
    %p162 = por %p160, %p161
    %p163 = scmp.ne.s32.totalorder %s155, %s157
    %p164 = scmp.eq.s32.totalorder %s21, 1
    %p165 = por %p163, %p164
    %p166 = scmp.ne.s32.totalorder %s157, %s158
    %p167 = scmp.eq.s32.totalorder %s21, 0
    %p168 = por %p166, %p167
    %p169 = scmp.ne.s32.totalorder %s157, %s158
    %p170 = scmp.eq.s32.totalorder %s22, 1
    %p171 = por %p169, %p170
    %p173 = scmp.ne.s32.totalorder %s158, %s172
    %p174 = scmp.eq.s32.totalorder %s22, 0
    %p175 = por %p173, %p174
    %s177 = sadd.s32 %s176, 1
    %p180 = scmp.eq.s32.totalorder %s16, 1
    %p181 = scmp.ne.s32.totalorder %s176, %s178
    %p182 = scmp.eq.s32.totalorder %s16, 0
    %p183 = por %p181, %p182
    %p184 = scmp.ne.s32.totalorder %s176, %s178
    %p185 = scmp.eq.s32.totalorder %s21, 1
    %p186 = por %p184, %p185
    %p187 = scmp.ne.s32.totalorder %s178, %s179
    %p188 = scmp.eq.s32.totalorder %s21, 0
    %p189 = por %p187, %p188
    %p190 = scmp.ne.s32.totalorder %s178, %s179
    %p191 = scmp.eq.s32.totalorder %s22, 1
    %p192 = por %p190, %p191
    %p194 = scmp.ne.s32.totalorder %s179, %s193
    %p195 = scmp.eq.s32.totalorder %s22, 0
    %p196 = por %p194, %p195
    %s198 = sadd.s32 %s197, 1
    %p201 = scmp.eq.s32.totalorder %s16, 1
    %p202 = scmp.ne.s32.totalorder %s197, %s199
    %p203 = scmp.eq.s32.totalorder %s16, 0
    %p204 = por %p202, %p203
    %p205 = scmp.ne.s32.totalorder %s197, %s199
    %p206 = scmp.eq.s32.totalorder %s21, 1
    %p207 = por %p205, %p206
    %p208 = scmp.ne.s32.totalorder %s199, %s200
    %p209 = scmp.eq.s32.totalorder %s21, 0
    %p210 = por %p208, %p209
    %p211 = scmp.ne.s32.totalorder %s199, %s200
    %p212 = scmp.eq.s32.totalorder %s22, 1
    %p213 = por %p211, %p212
    %p215 = scmp.ne.s32.totalorder %s200, %s214
    %p216 = scmp.eq.s32.totalorder %s22, 0
    %p217 = por %p215, %p216
    %s219 = sadd.s32 %s218, 1
    %p222 = scmp.eq.s32.totalorder %s16, 1
    %p223 = scmp.ne.s32.totalorder %s218, %s220
    %p224 = scmp.eq.s32.totalorder %s16, 0
    %p225 = por %p223, %p224
    %p226 = scmp.ne.s32.totalorder %s218, %s220
    %p227 = scmp.eq.s32.totalorder %s21, 1
    %p228 = por %p226, %p227
    %p229 = scmp.ne.s32.totalorder %s220, %s221
    %p230 = scmp.eq.s32.totalorder %s21, 0
    %p231 = por %p229, %p230
    %p232 = scmp.ne.s32.totalorder %s220, %s221
    %p233 = scmp.eq.s32.totalorder %s22, 1
    %p234 = por %p232, %p233
    %p236 = scmp.ne.s32.totalorder %s221, %s235
    %p237 = scmp.eq.s32.totalorder %s22, 0
    %p238 = por %p236, %p237
    %s239 = ssub.s32 %s16, %s23
    %p240 = scmp.eq.s32.totalorder %s239, 0
    %s242 = sadd.s32 %s241, 1
    %s243 = scalar_select %p240, %s241, %s242
    %p246 = pneg %p240
    %p247 = scmp.eq.s32.totalorder %s16, 1
    %p248 = por %p246, %p247
    %p249 = scmp.ne.s32.totalorder %s241, %s244
    %p250 = scmp.eq.s32.totalorder %s16, 0
    %p251 = por %p249, %p250
    %p252 = scmp.ne.s32.totalorder %s241, %s244
    %p253 = scmp.eq.s32.totalorder %s21, 1
    %p254 = por %p252, %p253
    %p255 = scmp.ne.s32.totalorder %s244, %s245
    %p256 = scmp.eq.s32.totalorder %s21, 0
    %p257 = por %p255, %p256
    %p258 = scmp.ne.s32.totalorder %s244, %s245
    %p259 = scmp.eq.s32.totalorder %s22, 1
    %p260 = por %p258, %p259
    %p262 = scmp.ne.s32.totalorder %s245, %s261
    %p263 = scmp.eq.s32.totalorder %s22, 0
    %p264 = por %p262, %p263
    %p265 = scmp.le.s32.totalorder 1, %s16
    %p266 = scmp.lt.s32.totalorder %s16, 3
    %p267 = pnand %p265, %p266
    %p268 = pneg %p267
    // Predicated region
    $region9: #{tpu_custom_call.1} parent=5 // pred_check
      _
    $region10: #{tpu_custom_call.1} parent=5 // pred_check_branch
      %270 = sbr.rel (%p267) target = $region12
    $region11: #{tpu_custom_call.1} parent=5 // pred_region
      %s271 = ssub.s32 %s16, 1
      // Predicated region
      $region13: #{tpu_custom_call.1} parent=11 // pred_check
        %p272 = pneg %p63
      $region14: #{tpu_custom_call.1} parent=11 // pred_check_branch
        %274 = sbr.rel (%p272) target = $region16
      $region15: #{tpu_custom_call.1} parent=11 // pred_region
        _
      $region16: #{tpu_custom_call.1} parent=11 // pred_fallthru
        _
      // Predicated region
      $region17: #{tpu_custom_call.1} parent=11 // pred_check
        %p275 = pneg %p84
      $region18: #{tpu_custom_call.1} parent=11 // pred_check_branch
        %277 = sbr.rel (%p275) target = $region20
      $region19: #{tpu_custom_call.1} parent=11 // pred_region
        _
      $region20: #{tpu_custom_call.1} parent=11 // pred_fallthru
        _
      // Predicated region
      $region21: #{tpu_custom_call.1} parent=11 // pred_check
        %p278 = pneg %p105
      $region22: #{tpu_custom_call.1} parent=11 // pred_check_branch
        %280 = sbr.rel (%p278) target = $region24
      $region23: #{tpu_custom_call.1} parent=11 // pred_region
        _
      $region24: #{tpu_custom_call.1} parent=11 // pred_fallthru
        _
      // Predicated region
      $region25: #{tpu_custom_call.1} parent=11 // pred_check
        %p281 = pneg %p126
      $region26: #{tpu_custom_call.1} parent=11 // pred_check_branch
        %283 = sbr.rel (%p281) target = $region28
      $region27: #{tpu_custom_call.1} parent=11 // pred_region
        _
      $region28: #{tpu_custom_call.1} parent=11 // pred_fallthru
        _
      // Predicated region
      $region29: #{tpu_custom_call.1} parent=11 // pred_check
        %p284 = pneg %p147
      $region30: #{tpu_custom_call.1} parent=11 // pred_check_branch
        %286 = sbr.rel (%p284) target = $region32
      $region31: #{tpu_custom_call.1} parent=11 // pred_region
        _
      $region32: #{tpu_custom_call.1} parent=11 // pred_fallthru
        _
      // Predicated region
      $region33: #{tpu_custom_call.1} parent=11 // pred_check
        %p287 = pneg %p168
      $region34: #{tpu_custom_call.1} parent=11 // pred_check_branch
        %289 = sbr.rel (%p287) target = $region36
      $region35: #{tpu_custom_call.1} parent=11 // pred_region
        _
      $region36: #{tpu_custom_call.1} parent=11 // pred_fallthru
        _
      // Predicated region
      $region37: #{tpu_custom_call.1} parent=11 // pred_check
        %p290 = pneg %p189
      $region38: #{tpu_custom_call.1} parent=11 // pred_check_branch
        %292 = sbr.rel (%p290) target = $region40
      $region39: #{tpu_custom_call.1} parent=11 // pred_region
        _
      $region40: #{tpu_custom_call.1} parent=11 // pred_fallthru
        _
      // Predicated region
      $region41: #{tpu_custom_call.1} parent=11 // pred_check
        %p293 = pneg %p210
      $region42: #{tpu_custom_call.1} parent=11 // pred_check_branch
        %295 = sbr.rel (%p293) target = $region44
      $region43: #{tpu_custom_call.1} parent=11 // pred_region
        _
      $region44: #{tpu_custom_call.1} parent=11 // pred_fallthru
        _
      // Predicated region
      $region45: #{tpu_custom_call.1} parent=11 // pred_check
        %p296 = pneg %p231
      $region46: #{tpu_custom_call.1} parent=11 // pred_check_branch
        %298 = sbr.rel (%p296) target = $region48
      $region47: #{tpu_custom_call.1} parent=11 // pred_region
        _
      $region48: #{tpu_custom_call.1} parent=11 // pred_fallthru
        _
    $region12: #{tpu_custom_call.1} parent=5 // pred_fallthru
      _
    %p299 = scmp.lt.s32.totalorder %s16, 2
    // Predicated region
    $region49: #{tpu_custom_call.1} parent=5 // pred_check
      %p300 = pneg %p299
    $region50: #{tpu_custom_call.1} parent=5 // pred_check_branch
      %302 = sbr.rel (%p300) target = $region52
    $region51: #{tpu_custom_call.1} parent=5 // pred_region
      // Predicated region
      $region53: #{tpu_custom_call.1} parent=51 // pred_check
        %p303 = pneg %p36
      $region54: #{tpu_custom_call.1} parent=51 // pred_check_branch
        %305 = sbr.rel (%p303) target = $region56
      $region55: #{tpu_custom_call.1} parent=51 // pred_region
        %p306 = scmp.lt.s32.totalorder %s16, 1
        %s307 = scalar_select %p306, %s16, 1
        %s308 = smul.addr %s307, 32
        %s309 = smul.addr %s308, 8
        %s310 = scalar_lea.vmem %s0, %s309
      $region56: #{tpu_custom_call.1} parent=51 // pred_fallthru
        _
    $region52: #{tpu_custom_call.1} parent=5 // pred_fallthru
      _
    %p311 = scmp.le.s32.totalorder 1, %s16
    %p312 = scmp.lt.s32.totalorder %s16, 3
    %p313 = pnand %p311, %p312
    %p314 = pneg %p313
    // Predicated region
    $region57: #{tpu_custom_call.1} parent=5 // pred_check
      _
    $region58: #{tpu_custom_call.1} parent=5 // pred_check_branch
      %316 = sbr.rel (%p313) target = $region60
    $region59: #{tpu_custom_call.1} parent=5 // pred_region
      %s317 = ssub.s32 %s16, 1
      %p318 = scmp.lt.s32.totalorder %s21, 1
      %s319 = scalar_select %p318, %s21, 1
      %s320 = smul.addr %s319, 32
      %s321 = smul.addr %s320, 8
      %s322 = scalar_lea.vmem %s0, %s321
      %p323 = pneg %p42
      %p324 = pneg %p39
      %p325 = pneg %p63
      %p326 = pneg %p60
      %p327 = pneg %p84
      %p328 = pneg %p81
      %p329 = pneg %p105
      %p330 = pneg %p102
      %p331 = pneg %p126
      %p332 = pneg %p123
      %p333 = pneg %p147
      %p334 = pneg %p144
      %p335 = pneg %p168
      %p336 = pneg %p165
      %p337 = pneg %p189
      %p338 = pneg %p186
      %p339 = pneg %p210
      %p340 = pneg %p207
      %p341 = pneg %p231
      %p342 = pneg %p228
      %p343 = pneg %p257
      %p344 = pneg %p254
      %p345 = scmp.lt.s32.totalorder %s21, 1
      %s346 = scalar_select %p345, %s21, 1
      %s347 = smul.addr %s346, 32
      %s348 = smul.addr %s347, 8
      %s349 = scalar_lea.vmem %s10, %s348
      %p350 = scmp.lt.s32.totalorder %s21, 1
      %s351 = scalar_select %p350, %s21, 1
      %s352 = smul.addr %s351, 32
      %s353 = smul.addr %s352, 8
      %s354 = scalar_lea.vmem %s0, %s353
      %p355 = scmp.lt.s32.totalorder %s21, 1
      %s356 = scalar_select %p355, %s21, 1
      %s357 = smul.addr %s356, 32
      %s358 = smul.addr %s357, 8
      %s359 = scalar_lea.vmem %s10, %s358
      %vm360 = vcmask 31744
      %361 = vst.msk [vmem:[#allocation2] sm:$0xff] %vm360, 0.0
      %362 = vst.msk [vmem:[#allocation2 + $0x8] sm:$0xff] %vm360, 0.0
      %vm363 = vcmask 25600
      %364 = vst.msk [vmem:[#allocation2 + $0x10] sm:$0x3] %vm363, 0.0
      %s365 = scalar_lea.vmem [#allocation2], 408
      %366 = vst.msk [vmem:[%s365] sm:$0xff] %vm360, 0.0
      %367 = vst.msk [vmem:[%s365 + $0x8] sm:$0xff] %vm360, 0.0
      %368 = vst.msk [vmem:[%s365 + $0x10] sm:$0x3] %vm363, 0.0
      %s369 = scalar_lea.vmem [#allocation2], 24
      %vm370 = vcmask 24576
      %371 = vst.msk [vmem:[%s369] sm:$0x1] %vm370, 0.0
      %372 = vst.msk [vmem:[%s369 + $0x18] sm:$0x1] %vm370, 0.0
      %373 = vst.msk [vmem:[%s369 + $0x30] sm:$0x1] %vm370, 0.0
      %374 = vst.msk [vmem:[%s369 + $0x48] sm:$0x1] %vm370, 0.0
      %375 = vst.msk [vmem:[%s369 + $0x60] sm:$0x1] %vm370, 0.0
      %376 = vst.msk [vmem:[%s369 + $0x78] sm:$0x1] %vm370, 0.0
      %377 = vst.msk [vmem:[%s369 + $0x90] sm:$0x1] %vm370, 0.0
      %378 = vst.msk [vmem:[%s369 + $0xa8] sm:$0x1] %vm370, 0.0
      %379 = vst.msk [vmem:[%s369 + $0xc0] sm:$0x1] %vm370, 0.0
      %380 = vst.msk [vmem:[%s369 + $0xd8] sm:$0x1] %vm370, 0.0
      %381 = vst.msk [vmem:[%s369 + $0xf0] sm:$0x1] %vm370, 0.0
      %382 = vst.msk [vmem:[%s369 + $0x108] sm:$0x1] %vm370, 0.0
      %383 = vst.msk [vmem:[%s369 + $0x120] sm:$0x1] %vm370, 0.0
      %384 = vst.msk [vmem:[%s369 + $0x138] sm:$0x1] %vm370, 0.0
      %385 = vst.msk [vmem:[%s369 + $0x150] sm:$0x1] %vm370, 0.0
      %386 = vst.msk [vmem:[%s369 + $0x168] sm:$0x1] %vm370, 0.0
      %387 = vst.msk [vmem:[%s369 + $0x11] sm:$0x1] %vm370, 0.0
      %388 = vst.msk [vmem:[%s369 + $0x29] sm:$0x1] %vm370, 0.0
      %389 = vst.msk [vmem:[%s369 + $0x41] sm:$0x1] %vm370, 0.0
      %390 = vst.msk [vmem:[%s369 + $0x59] sm:$0x1] %vm370, 0.0
      %391 = vst.msk [vmem:[%s369 + $0x71] sm:$0x1] %vm370, 0.0
      %392 = vst.msk [vmem:[%s369 + $0x89] sm:$0x1] %vm370, 0.0
      %393 = vst.msk [vmem:[%s369 + $0xa1] sm:$0x1] %vm370, 0.0
      %394 = vst.msk [vmem:[%s369 + $0xb9] sm:$0x1] %vm370, 0.0
      %395 = vst.msk [vmem:[%s369 + $0xd1] sm:$0x1] %vm370, 0.0
      %396 = vst.msk [vmem:[%s369 + $0xe9] sm:$0x1] %vm370, 0.0
      %397 = vst.msk [vmem:[%s369 + $0x101] sm:$0x1] %vm370, 0.0
      %398 = vst.msk [vmem:[%s369 + $0x119] sm:$0x1] %vm370, 0.0
      %399 = vst.msk [vmem:[%s369 + $0x131] sm:$0x1] %vm370, 0.0
      %400 = vst.msk [vmem:[%s369 + $0x149] sm:$0x1] %vm370, 0.0
      %401 = vst.msk [vmem:[%s369 + $0x161] sm:$0x1] %vm370, 0.0
      %402 = vst.msk [vmem:[%s369 + $0x179] sm:$0x1] %vm370, 0.0
      %v403 = vld [vmem:[%s9] sm:$0xf]
      %v404 = vld [vmem:[%s354] sm:$0xff]
      %v405 = vld [vmem:[%s354 + $0x8] sm:$0xff]
      %v406 = vld [vmem:[%s354 + $0x10] sm:$0xff]
      %v407 = vld [vmem:[%s354 + $0x18] sm:$0xff]
      %v408 = vld [vmem:[%s354 + $0x20] sm:$0xff]
      %v409 = vld [vmem:[%s354 + $0x28] sm:$0xff]
      %v410 = vld [vmem:[%s354 + $0x30] sm:$0xff]
      %v411 = vld [vmem:[%s354 + $0x38] sm:$0xff]
      %v412 = vld [vmem:[%s354 + $0x40] sm:$0xff]
      %v413 = vld [vmem:[%s354 + $0x48] sm:$0xff]
      %v414 = vld [vmem:[%s354 + $0x50] sm:$0xff]
      %v415 = vld [vmem:[%s354 + $0x58] sm:$0xff]
      %v416 = vld [vmem:[%s354 + $0x60] sm:$0xff]
      %v417 = vld [vmem:[%s354 + $0x68] sm:$0xff]
      %v418 = vld [vmem:[%s354 + $0x70] sm:$0xff]
      %v419 = vld [vmem:[%s354 + $0x78] sm:$0xff]
      %v420 = vld [vmem:[%s354 + $0x80] sm:$0xff]
      %v421 = vld [vmem:[%s354 + $0x88] sm:$0xff]
      %v422 = vld [vmem:[%s354 + $0x90] sm:$0xff]
      %v423 = vld [vmem:[%s354 + $0x98] sm:$0xff]
      %v424 = vld [vmem:[%s354 + $0xa0] sm:$0xff]
      %v425 = vld [vmem:[%s354 + $0xa8] sm:$0xff]
      %v426 = vld [vmem:[%s354 + $0xb0] sm:$0xff]
      %v427 = vld [vmem:[%s354 + $0xb8] sm:$0xff]
      %v428 = vld [vmem:[%s354 + $0xc0] sm:$0xff]
      %v429 = vld [vmem:[%s354 + $0xc8] sm:$0xff]
      %v430 = vld [vmem:[%s354 + $0xd0] sm:$0xff]
      %v431 = vld [vmem:[%s354 + $0xd8] sm:$0xff]
      %v432 = vld [vmem:[%s354 + $0xe0] sm:$0xff]
      %v433 = vld [vmem:[%s354 + $0xe8] sm:$0xff]
      %v434 = vld [vmem:[%s354 + $0xf0] sm:$0xff]
      %v435 = vld [vmem:[%s354 + $0xf8] sm:$0xff]
      %436 = vst.msk [vmem:[%s369 + $0x1] sm:$0xff] %vm360, %v404
      %437 = vst.msk [vmem:[%s369 + $0x9] sm:$0xff] %vm360, %v405
      %438 = vst.msk [vmem:[%s369 + $0x19] sm:$0xff] %vm360, %v406
      %439 = vst.msk [vmem:[%s369 + $0x21] sm:$0xff] %vm360, %v407
      %440 = vst.msk [vmem:[%s369 + $0x31] sm:$0xff] %vm360, %v408
      %441 = vst.msk [vmem:[%s369 + $0x39] sm:$0xff] %vm360, %v409
      %442 = vst.msk [vmem:[%s369 + $0x49] sm:$0xff] %vm360, %v410
      %443 = vst.msk [vmem:[%s369 + $0x51] sm:$0xff] %vm360, %v411
      %444 = vst.msk [vmem:[%s369 + $0x61] sm:$0xff] %vm360, %v412
      %445 = vst.msk [vmem:[%s369 + $0x69] sm:$0xff] %vm360, %v413
      %446 = vst.msk [vmem:[%s369 + $0x79] sm:$0xff] %vm360, %v414
      %447 = vst.msk [vmem:[%s369 + $0x81] sm:$0xff] %vm360, %v415
      %448 = vst.msk [vmem:[%s369 + $0x91] sm:$0xff] %vm360, %v416
      %449 = vst.msk [vmem:[%s369 + $0x99] sm:$0xff] %vm360, %v417
      %450 = vst.msk [vmem:[%s369 + $0xa9] sm:$0xff] %vm360, %v418
      %451 = vst.msk [vmem:[%s369 + $0xb1] sm:$0xff] %vm360, %v419
      %452 = vst.msk [vmem:[%s369 + $0xc1] sm:$0xff] %vm360, %v420
      %453 = vst.msk [vmem:[%s369 + $0xc9] sm:$0xff] %vm360, %v421
      %454 = vst.msk [vmem:[%s369 + $0xd9] sm:$0xff] %vm360, %v422
      %455 = vst.msk [vmem:[%s369 + $0xe1] sm:$0xff] %vm360, %v423
      %456 = vst.msk [vmem:[%s369 + $0xf1] sm:$0xff] %vm360, %v424
      %457 = vst.msk [vmem:[%s369 + $0xf9] sm:$0xff] %vm360, %v425
      %458 = vst.msk [vmem:[%s369 + $0x109] sm:$0xff] %vm360, %v426
      %459 = vst.msk [vmem:[%s369 + $0x111] sm:$0xff] %vm360, %v427
      %460 = vst.msk [vmem:[%s369 + $0x121] sm:$0xff] %vm360, %v428
      %461 = vst.msk [vmem:[%s369 + $0x129] sm:$0xff] %vm360, %v429
      %462 = vst.msk [vmem:[%s369 + $0x139] sm:$0xff] %vm360, %v430
      %463 = vst.msk [vmem:[%s369 + $0x141] sm:$0xff] %vm360, %v431
      %464 = vst.msk [vmem:[%s369 + $0x151] sm:$0xff] %vm360, %v432
      %465 = vst.msk [vmem:[%s369 + $0x159] sm:$0xff] %vm360, %v433
      %466 = vst.msk [vmem:[%s369 + $0x169] sm:$0xff] %vm360, %v434
      %467 = vst.msk [vmem:[%s369 + $0x171] sm:$0xff] %vm360, %v435
      %v468 = vld [vmem:[%s1] sm:$0xff]
      %v469 = vld [vmem:[%s1 + $0x8] sm:$0xff]
      %v470 = vld [vmem:[%s1 + $0x10] sm:$0xff]
      %v471 = vld [vmem:[%s1 + $0x18] sm:$0xff]
      %v472 = vld [vmem:[%s1 + $0x20] sm:$0xf]
      %v473 = vld [vmem:[%s2] sm:$0xff]
      %v474 = vld [vmem:[%s2 + $0x8] sm:$0xff]
      %v475 = vld [vmem:[%s2 + $0x10] sm:$0xff]
      %v476 = vld [vmem:[%s2 + $0x18] sm:$0xff]
      %v477 = vld [vmem:[%s2 + $0x20] sm:$0xff]
      %v478 = vld [vmem:[%s2 + $0x28] sm:$0xff]
      %v479 = vld [vmem:[%s2 + $0x30] sm:$0xff]
      %v480 = vld [vmem:[%s2 + $0x38] sm:$0xff]
      %v481 = vld [vmem:[%s2 + $0x40] sm:$0xff]
      %v482 = vld [vmem:[%s2 + $0x48] sm:$0xff]
      %v483 = vld [vmem:[%s2 + $0x50] sm:$0xff]
      %v484 = vld [vmem:[%s2 + $0x58] sm:$0xff]
      %v485 = vld [vmem:[%s2 + $0x60] sm:$0xff]
      %v486 = vld [vmem:[%s2 + $0x68] sm:$0xff]
      %v487 = vld [vmem:[%s2 + $0x70] sm:$0xff]
      %v488 = vld [vmem:[%s2 + $0x78] sm:$0xff]
      %v489 = vld [vmem:[%s2 + $0x80] sm:$0xff]
      %v490 = vld [vmem:[%s2 + $0x88] sm:$0xff]
      %v491 = vld [vmem:[%s2 + $0x90] sm:$0xff]
      %v492 = vld [vmem:[%s2 + $0x98] sm:$0xff]
      %v493 = vld [vmem:[%s2 + $0xa0] sm:$0xff]
      %v494 = vld [vmem:[%s2 + $0xa8] sm:$0xff]
      %v495 = vld [vmem:[%s2 + $0xb0] sm:$0xff]
      %v496 = vld [vmem:[%s2 + $0xb8] sm:$0xff]
      %v497 = vld [vmem:[%s2 + $0xc0] sm:$0xff]
      %v498 = vld [vmem:[%s2 + $0xc8] sm:$0xff]
      %v499 = vld [vmem:[%s2 + $0xd0] sm:$0xff]
      %v500 = vld [vmem:[%s2 + $0xd8] sm:$0xff]
      %v501 = vld [vmem:[%s2 + $0xe0] sm:$0xff]
      %v502 = vld [vmem:[%s2 + $0xe8] sm:$0xff]
      %v503 = vld [vmem:[%s2 + $0xf0] sm:$0xff]
      %v504 = vld [vmem:[%s2 + $0xf8] sm:$0xff]
      %v505 = vld [vmem:[%s3] sm:$0x1]
      %v506 = vld [vmem:[%s4] sm:$0x1]
      %v507 = vld [vmem:[#allocation2] sm:$0xff]
      %v508 = vld [vmem:[#allocation2 + $0x8] sm:$0xff]
      %v509 = vld [vmem:[#allocation2 + $0x18] sm:$0xff]
      %v510 = vld [vmem:[#allocation2 + $0x20] sm:$0xff]
      %v511 = vld [vmem:[#allocation2 + $0x30] sm:$0xff]
      %v512 = vld [vmem:[#allocation2 + $0x38] sm:$0xff]
      %v513 = vld [vmem:[#allocation2 + $0x48] sm:$0xff]
      %v514 = vld [vmem:[#allocation2 + $0x50] sm:$0xff]
      %v515 = vld [vmem:[#allocation2 + $0x60] sm:$0xff]
      %v516 = vld [vmem:[#allocation2 + $0x68] sm:$0xff]
      %v517 = vld [vmem:[#allocation2 + $0x78] sm:$0xff]
      %v518 = vld [vmem:[#allocation2 + $0x80] sm:$0xff]
      %v519 = vld [vmem:[#allocation2 + $0x90] sm:$0xff]
      %v520 = vld [vmem:[#allocation2 + $0x98] sm:$0xff]
      %v521 = vld [vmem:[#allocation2 + $0xa8] sm:$0xff]
      %v522 = vld [vmem:[#allocation2 + $0xb0] sm:$0xff]
      %v523 = vld [vmem:[#allocation2 + $0xc0] sm:$0xff]
      %v524 = vld [vmem:[#allocation2 + $0xc8] sm:$0xff]
      %v525 = vld [vmem:[#allocation2 + $0xd8] sm:$0xff]
      %v526 = vld [vmem:[#allocation2 + $0xe0] sm:$0xff]
      %v527 = vld [vmem:[#allocation2 + $0xf0] sm:$0xff]
      %v528 = vld [vmem:[#allocation2 + $0xf8] sm:$0xff]
      %v529 = vld [vmem:[#allocation2 + $0x108] sm:$0xff]
      %v530 = vld [vmem:[#allocation2 + $0x110] sm:$0xff]
      %v531 = vld [vmem:[#allocation2 + $0x120] sm:$0xff]
      %v532 = vld [vmem:[#allocation2 + $0x128] sm:$0xff]
      %v533 = vld [vmem:[#allocation2 + $0x138] sm:$0xff]
      %v534 = vld [vmem:[#allocation2 + $0x140] sm:$0xff]
      %v535 = vld [vmem:[#allocation2 + $0x150] sm:$0xff]
      %v536 = vld [vmem:[#allocation2 + $0x158] sm:$0xff]
      %v537 = vld [vmem:[#allocation2 + $0x168] sm:$0xff]
      %v538 = vld [vmem:[#allocation2 + $0x170] sm:$0xff]
      %539 = vst.msk [vmem:[#allocation3] sm:$0xff] %vm360, %v507
      %540 = vst.msk [vmem:[#allocation3 + $0x8] sm:$0xff] %vm360, %v508
      %541 = vst.msk [vmem:[#allocation3 + $0x10] sm:$0xff] %vm360, %v509
      %542 = vst.msk [vmem:[#allocation3 + $0x18] sm:$0xff] %vm360, %v510
      %543 = vst.msk [vmem:[#allocation3 + $0x20] sm:$0xff] %vm360, %v511
      %544 = vst.msk [vmem:[#allocation3 + $0x28] sm:$0xff] %vm360, %v512
      %545 = vst.msk [vmem:[#allocation3 + $0x30] sm:$0xff] %vm360, %v513
      %546 = vst.msk [vmem:[#allocation3 + $0x38] sm:$0xff] %vm360, %v514
      %547 = vst.msk [vmem:[#allocation3 + $0x40] sm:$0xff] %vm360, %v515
      %548 = vst.msk [vmem:[#allocation3 + $0x48] sm:$0xff] %vm360, %v516
      %549 = vst.msk [vmem:[#allocation3 + $0x50] sm:$0xff] %vm360, %v517
      %550 = vst.msk [vmem:[#allocation3 + $0x58] sm:$0xff] %vm360, %v518
      %551 = vst.msk [vmem:[#allocation3 + $0x60] sm:$0xff] %vm360, %v519
      %552 = vst.msk [vmem:[#allocation3 + $0x68] sm:$0xff] %vm360, %v520
      %553 = vst.msk [vmem:[#allocation3 + $0x70] sm:$0xff] %vm360, %v521
      %554 = vst.msk [vmem:[#allocation3 + $0x78] sm:$0xff] %vm360, %v522
      %555 = vst.msk [vmem:[#allocation3 + $0x80] sm:$0xff] %vm360, %v523
      %556 = vst.msk [vmem:[#allocation3 + $0x88] sm:$0xff] %vm360, %v524
      %557 = vst.msk [vmem:[#allocation3 + $0x90] sm:$0xff] %vm360, %v525
      %558 = vst.msk [vmem:[#allocation3 + $0x98] sm:$0xff] %vm360, %v526
      %559 = vst.msk [vmem:[#allocation3 + $0xa0] sm:$0xff] %vm360, %v527
      %560 = vst.msk [vmem:[#allocation3 + $0xa8] sm:$0xff] %vm360, %v528
      %561 = vst.msk [vmem:[#allocation3 + $0xb0] sm:$0xff] %vm360, %v529
      %562 = vst.msk [vmem:[#allocation3 + $0xb8] sm:$0xff] %vm360, %v530
      %563 = vst.msk [vmem:[#allocation3 + $0xc0] sm:$0xff] %vm360, %v531
      %564 = vst.msk [vmem:[#allocation3 + $0xc8] sm:$0xff] %vm360, %v532
      %565 = vst.msk [vmem:[#allocation3 + $0xd0] sm:$0xff] %vm360, %v533
      %566 = vst.msk [vmem:[#allocation3 + $0xd8] sm:$0xff] %vm360, %v534
      %567 = vst.msk [vmem:[#allocation3 + $0xe0] sm:$0xff] %vm360, %v535
      %568 = vst.msk [vmem:[#allocation3 + $0xe8] sm:$0xff] %vm360, %v536
      %569 = vst.msk [vmem:[#allocation3 + $0xf0] sm:$0xff] %vm360, %v537
      %570 = vst.msk [vmem:[#allocation3 + $0xf8] sm:$0xff] %vm360, %v538
      %v571 = vld [vmem:[#allocation2 + $0x1] sm:$0xff]
      %v572 = vld [vmem:[#allocation2 + $0x9] sm:$0xff]
      %v573 = vld [vmem:[#allocation2 + $0x19] sm:$0xff]
      %v574 = vld [vmem:[#allocation2 + $0x21] sm:$0xff]
      %v575 = vld [vmem:[#allocation2 + $0x31] sm:$0xff]
      %v576 = vld [vmem:[#allocation2 + $0x39] sm:$0xff]
      %v577 = vld [vmem:[#allocation2 + $0x49] sm:$0xff]
      %v578 = vld [vmem:[#allocation2 + $0x51] sm:$0xff]
      %v579 = vld [vmem:[#allocation2 + $0x61] sm:$0xff]
      %v580 = vld [vmem:[#allocation2 + $0x69] sm:$0xff]
      %v581 = vld [vmem:[#allocation2 + $0x79] sm:$0xff]
      %v582 = vld [vmem:[#allocation2 + $0x81] sm:$0xff]
      %v583 = vld [vmem:[#allocation2 + $0x91] sm:$0xff]
      %v584 = vld [vmem:[#allocation2 + $0x99] sm:$0xff]
      %v585 = vld [vmem:[#allocation2 + $0xa9] sm:$0xff]
      %v586 = vld [vmem:[#allocation2 + $0xb1] sm:$0xff]
      %v587 = vld [vmem:[#allocation2 + $0xc1] sm:$0xff]
      %v588 = vld [vmem:[#allocation2 + $0xc9] sm:$0xff]
      %v589 = vld [vmem:[#allocation2 + $0xd9] sm:$0xff]
      %v590 = vld [vmem:[#allocation2 + $0xe1] sm:$0xff]
      %v591 = vld [vmem:[#allocation2 + $0xf1] sm:$0xff]
      %v592 = vld [vmem:[#allocation2 + $0xf9] sm:$0xff]
      %v593 = vld [vmem:[#allocation2 + $0x109] sm:$0xff]
      %v594 = vld [vmem:[#allocation2 + $0x111] sm:$0xff]
      %v595 = vld [vmem:[#allocation2 + $0x121] sm:$0xff]
      %v596 = vld [vmem:[#allocation2 + $0x129] sm:$0xff]
      %v597 = vld [vmem:[#allocation2 + $0x139] sm:$0xff]
      %v598 = vld [vmem:[#allocation2 + $0x141] sm:$0xff]
      %v599 = vld [vmem:[#allocation2 + $0x151] sm:$0xff]
      %v600 = vld [vmem:[#allocation2 + $0x159] sm:$0xff]
      %v601 = vld [vmem:[#allocation2 + $0x169] sm:$0xff]
      %v602 = vld [vmem:[#allocation2 + $0x171] sm:$0xff]
      %635 = vrot.lane.b32.xlu0 %v571, 4
      %v636 = vpop.permute.xlu0 %635
      %637 = vrot.lane.b32.xlu0 %v572, 4
      %v638 = vpop.permute.xlu0 %637
      %639 = vrot.lane.b32.xlu0 %v573, 4
      %v640 = vpop.permute.xlu0 %639
      %641 = vrot.lane.b32.xlu0 %v574, 4
      %v642 = vpop.permute.xlu0 %641
      %643 = vrot.lane.b32.xlu0 %v575, 4
      %v644 = vpop.permute.xlu0 %643
      %645 = vrot.lane.b32.xlu0 %v576, 4
      %v646 = vpop.permute.xlu0 %645
      %647 = vrot.lane.b32.xlu0 %v577, 4
      %v648 = vpop.permute.xlu0 %647
      %649 = vrot.lane.b32.xlu0 %v578, 4
      %v650 = vpop.permute.xlu0 %649
      %651 = vrot.lane.b32.xlu0 %v579, 4
      %v652 = vpop.permute.xlu0 %651
      %653 = vrot.lane.b32.xlu0 %v580, 4
      %v654 = vpop.permute.xlu0 %653
      %655 = vrot.lane.b32.xlu0 %v581, 4
      %v656 = vpop.permute.xlu0 %655
      %657 = vrot.lane.b32.xlu0 %v582, 4
      %v658 = vpop.permute.xlu0 %657
      %659 = vrot.lane.b32.xlu0 %v583, 4
      %v660 = vpop.permute.xlu0 %659
      %661 = vrot.lane.b32.xlu0 %v584, 4
      %v662 = vpop.permute.xlu0 %661
      %663 = vrot.lane.b32.xlu0 %v585, 4
      %v664 = vpop.permute.xlu0 %663
      %665 = vrot.lane.b32.xlu0 %v586, 4
      %v666 = vpop.permute.xlu0 %665
      %667 = vrot.lane.b32.xlu0 %v587, 4
      %v668 = vpop.permute.xlu0 %667
      %669 = vrot.lane.b32.xlu0 %v588, 4
      %v670 = vpop.permute.xlu0 %669
      %671 = vrot.lane.b32.xlu0 %v589, 4
      %v672 = vpop.permute.xlu0 %671
      %673 = vrot.lane.b32.xlu0 %v590, 4
      %v674 = vpop.permute.xlu0 %673
      %675 = vrot.lane.b32.xlu0 %v591, 4
      %v676 = vpop.permute.xlu0 %675
      %677 = vrot.lane.b32.xlu0 %v592, 4
      %v678 = vpop.permute.xlu0 %677
      %679 = vrot.lane.b32.xlu0 %v593, 4
      %v680 = vpop.permute.xlu0 %679
      %681 = vrot.lane.b32.xlu0 %v594, 4
      %v682 = vpop.permute.xlu0 %681
      %683 = vrot.lane.b32.xlu0 %v595, 4
      %v684 = vpop.permute.xlu0 %683
      %685 = vrot.lane.b32.xlu0 %v596, 4
      %v686 = vpop.permute.xlu0 %685
      %687 = vrot.lane.b32.xlu0 %v597, 4
      %v688 = vpop.permute.xlu0 %687
      %689 = vrot.lane.b32.xlu0 %v598, 4
      %v690 = vpop.permute.xlu0 %689
      %691 = vrot.lane.b32.xlu0 %v599, 4
      %v692 = vpop.permute.xlu0 %691
      %693 = vrot.lane.b32.xlu0 %v600, 4
      %v694 = vpop.permute.xlu0 %693
      %695 = vrot.lane.b32.xlu0 %v601, 4
      %v696 = vpop.permute.xlu0 %695
      %697 = vrot.lane.b32.xlu0 %v602, 4
      %v698 = vpop.permute.xlu0 %697
      %vm731 = vcmask 64544
      %732 = vst.msk [vmem:[#allocation3] sm:$0xff] %vm731, %v636
      %733 = vst.msk [vmem:[#allocation3 + $0x8] sm:$0xff] %vm731, %v638
      %734 = vst.msk [vmem:[#allocation3 + $0x10] sm:$0xff] %vm731, %v640
      %735 = vst.msk [vmem:[#allocation3 + $0x18] sm:$0xff] %vm731, %v642
      %736 = vst.msk [vmem:[#allocation3 + $0x20] sm:$0xff] %vm731, %v644
      %737 = vst.msk [vmem:[#allocation3 + $0x28] sm:$0xff] %vm731, %v646
      %738 = vst.msk [vmem:[#allocation3 + $0x30] sm:$0xff] %vm731, %v648
      %739 = vst.msk [vmem:[#allocation3 + $0x38] sm:$0xff] %vm731, %v650
      %740 = vst.msk [vmem:[#allocation3 + $0x40] sm:$0xff] %vm731, %v652
      %741 = vst.msk [vmem:[#allocation3 + $0x48] sm:$0xff] %vm731, %v654
      %742 = vst.msk [vmem:[#allocation3 + $0x50] sm:$0xff] %vm731, %v656
      %743 = vst.msk [vmem:[#allocation3 + $0x58] sm:$0xff] %vm731, %v658
      %744 = vst.msk [vmem:[#allocation3 + $0x60] sm:$0xff] %vm731, %v660
      %745 = vst.msk [vmem:[#allocation3 + $0x68] sm:$0xff] %vm731, %v662
      %746 = vst.msk [vmem:[#allocation3 + $0x70] sm:$0xff] %vm731, %v664
      %747 = vst.msk [vmem:[#allocation3 + $0x78] sm:$0xff] %vm731, %v666
      %748 = vst.msk [vmem:[#allocation3 + $0x80] sm:$0xff] %vm731, %v668
      %749 = vst.msk [vmem:[#allocation3 + $0x88] sm:$0xff] %vm731, %v670
      %750 = vst.msk [vmem:[#allocation3 + $0x90] sm:$0xff] %vm731, %v672
      %751 = vst.msk [vmem:[#allocation3 + $0x98] sm:$0xff] %vm731, %v674
      %752 = vst.msk [vmem:[#allocation3 + $0xa0] sm:$0xff] %vm731, %v676
      %753 = vst.msk [vmem:[#allocation3 + $0xa8] sm:$0xff] %vm731, %v678
      %754 = vst.msk [vmem:[#allocation3 + $0xb0] sm:$0xff] %vm731, %v680
      %755 = vst.msk [vmem:[#allocation3 + $0xb8] sm:$0xff] %vm731, %v682
      %756 = vst.msk [vmem:[#allocation3 + $0xc0] sm:$0xff] %vm731, %v684
      %757 = vst.msk [vmem:[#allocation3 + $0xc8] sm:$0xff] %vm731, %v686
      %758 = vst.msk [vmem:[#allocation3 + $0xd0] sm:$0xff] %vm731, %v688
      %759 = vst.msk [vmem:[#allocation3 + $0xd8] sm:$0xff] %vm731, %v690
      %760 = vst.msk [vmem:[#allocation3 + $0xe0] sm:$0xff] %vm731, %v692
      %761 = vst.msk [vmem:[#allocation3 + $0xe8] sm:$0xff] %vm731, %v694
      %762 = vst.msk [vmem:[#allocation3 + $0xf0] sm:$0xff] %vm731, %v696
      %763 = vst.msk [vmem:[#allocation3 + $0xf8] sm:$0xff] %vm731, %v698
      %v764 = vld [vmem:[#allocation2 + $0x2] sm:$0xff]
      %v765 = vld [vmem:[#allocation2 + $0xa] sm:$0xff]
      %v766 = vld [vmem:[#allocation2 + $0x1a] sm:$0xff]
      %v767 = vld [vmem:[#allocation2 + $0x22] sm:$0xff]
      %v768 = vld [vmem:[#allocation2 + $0x32] sm:$0xff]
      %v769 = vld [vmem:[#allocation2 + $0x3a] sm:$0xff]
      %v770 = vld [vmem:[#allocation2 + $0x4a] sm:$0xff]
      %v771 = vld [vmem:[#allocation2 + $0x52] sm:$0xff]
      %v772 = vld [vmem:[#allocation2 + $0x62] sm:$0xff]
      %v773 = vld [vmem:[#allocation2 + $0x6a] sm:$0xff]
      %v774 = vld [vmem:[#allocation2 + $0x7a] sm:$0xff]
      %v775 = vld [vmem:[#allocation2 + $0x82] sm:$0xff]
      %v776 = vld [vmem:[#allocation2 + $0x92] sm:$0xff]
      %v777 = vld [vmem:[#allocation2 + $0x9a] sm:$0xff]
      %v778 = vld [vmem:[#allocation2 + $0xaa] sm:$0xff]
      %v779 = vld [vmem:[#allocation2 + $0xb2] sm:$0xff]
      %v780 = vld [vmem:[#allocation2 + $0xc2] sm:$0xff]
      %v781 = vld [vmem:[#allocation2 + $0xca] sm:$0xff]
      %v782 = vld [vmem:[#allocation2 + $0xda] sm:$0xff]
      %v783 = vld [vmem:[#allocation2 + $0xe2] sm:$0xff]
      %v784 = vld [vmem:[#allocation2 + $0xf2] sm:$0xff]
      %v785 = vld [vmem:[#allocation2 + $0xfa] sm:$0xff]
      %v786 = vld [vmem:[#allocation2 + $0x10a] sm:$0xff]
      %v787 = vld [vmem:[#allocation2 + $0x112] sm:$0xff]
      %v788 = vld [vmem:[#allocation2 + $0x122] sm:$0xff]
      %v789 = vld [vmem:[#allocation2 + $0x12a] sm:$0xff]
      %v790 = vld [vmem:[#allocation2 + $0x13a] sm:$0xff]
      %v791 = vld [vmem:[#allocation2 + $0x142] sm:$0xff]
      %v792 = vld [vmem:[#allocation2 + $0x152] sm:$0xff]
      %v793 = vld [vmem:[#allocation2 + $0x15a] sm:$0xff]
      %v794 = vld [vmem:[#allocation2 + $0x16a] sm:$0xff]
      %v795 = vld [vmem:[#allocation2 + $0x172] sm:$0xff]
      %828 = vrot.lane.b32.xlu0 %v764, 8
      %v829 = vpop.permute.xlu0 %828
      %830 = vrot.lane.b32.xlu0 %v765, 8
      %v831 = vpop.permute.xlu0 %830
      %832 = vrot.lane.b32.xlu0 %v766, 8
      %v833 = vpop.permute.xlu0 %832
      %834 = vrot.lane.b32.xlu0 %v767, 8
      %v835 = vpop.permute.xlu0 %834
      %836 = vrot.lane.b32.xlu0 %v768, 8
      %v837 = vpop.permute.xlu0 %836
      %838 = vrot.lane.b32.xlu0 %v769, 8
      %v839 = vpop.permute.xlu0 %838
      %840 = vrot.lane.b32.xlu0 %v770, 8
      %v841 = vpop.permute.xlu0 %840
      %842 = vrot.lane.b32.xlu0 %v771, 8
      %v843 = vpop.permute.xlu0 %842
      %844 = vrot.lane.b32.xlu0 %v772, 8
      %v845 = vpop.permute.xlu0 %844
      %846 = vrot.lane.b32.xlu0 %v773, 8
      %v847 = vpop.permute.xlu0 %846
      %848 = vrot.lane.b32.xlu0 %v774, 8
      %v849 = vpop.permute.xlu0 %848
      %850 = vrot.lane.b32.xlu0 %v775, 8
      %v851 = vpop.permute.xlu0 %850
      %852 = vrot.lane.b32.xlu0 %v776, 8
      %v853 = vpop.permute.xlu0 %852
      %854 = vrot.lane.b32.xlu0 %v777, 8
      %v855 = vpop.permute.xlu0 %854
      %856 = vrot.lane.b32.xlu0 %v778, 8
      %v857 = vpop.permute.xlu0 %856
      %858 = vrot.lane.b32.xlu0 %v779, 8
      %v859 = vpop.permute.xlu0 %858
      %860 = vrot.lane.b32.xlu0 %v780, 8
      %v861 = vpop.permute.xlu0 %860
      %862 = vrot.lane.b32.xlu0 %v781, 8
      %v863 = vpop.permute.xlu0 %862
      %864 = vrot.lane.b32.xlu0 %v782, 8
      %v865 = vpop.permute.xlu0 %864
      %866 = vrot.lane.b32.xlu0 %v783, 8
      %v867 = vpop.permute.xlu0 %866
      %868 = vrot.lane.b32.xlu0 %v784, 8
      %v869 = vpop.permute.xlu0 %868
      %870 = vrot.lane.b32.xlu0 %v785, 8
      %v871 = vpop.permute.xlu0 %870
      %872 = vrot.lane.b32.xlu0 %v786, 8
      %v873 = vpop.permute.xlu0 %872
      %874 = vrot.lane.b32.xlu0 %v787, 8
      %v875 = vpop.permute.xlu0 %874
      %876 = vrot.lane.b32.xlu0 %v788, 8
      %v877 = vpop.permute.xlu0 %876
      %878 = vrot.lane.b32.xlu0 %v789, 8
      %v879 = vpop.permute.xlu0 %878
      %880 = vrot.lane.b32.xlu0 %v790, 8
      %v881 = vpop.permute.xlu0 %880
      %882 = vrot.lane.b32.xlu0 %v791, 8
      %v883 = vpop.permute.xlu0 %882
      %884 = vrot.lane.b32.xlu0 %v792, 8
      %v885 = vpop.permute.xlu0 %884
      %886 = vrot.lane.b32.xlu0 %v793, 8
      %v887 = vpop.permute.xlu0 %886
      %888 = vrot.lane.b32.xlu0 %v794, 8
      %v889 = vpop.permute.xlu0 %888
      %890 = vrot.lane.b32.xlu0 %v795, 8
      %v891 = vpop.permute.xlu0 %890
      %vm924 = vcmask 97344
      %925 = vst.msk [vmem:[#allocation3] sm:$0xff] %vm924, %v829
      %926 = vst.msk [vmem:[#allocation3 + $0x8] sm:$0xff] %vm924, %v831
      %927 = vst.msk [vmem:[#allocation3 + $0x10] sm:$0xff] %vm924, %v833
      %928 = vst.msk [vmem:[#allocation3 + $0x18] sm:$0xff] %vm924, %v835
      %929 = vst.msk [vmem:[#allocation3 + $0x20] sm:$0xff] %vm924, %v837
      %930 = vst.msk [vmem:[#allocation3 + $0x28] sm:$0xff] %vm924, %v839
      %931 = vst.msk [vmem:[#allocation3 + $0x30] sm:$0xff] %vm924, %v841
      %932 = vst.msk [vmem:[#allocation3 + $0x38] sm:$0xff] %vm924, %v843
      %933 = vst.msk [vmem:[#allocation3 + $0x40] sm:$0xff] %vm924, %v845
      %934 = vst.msk [vmem:[#allocation3 + $0x48] sm:$0xff] %vm924, %v847
      %935 = vst.msk [vmem:[#allocation3 + $0x50] sm:$0xff] %vm924, %v849
      %936 = vst.msk [vmem:[#allocation3 + $0x58] sm:$0xff] %vm924, %v851
      %937 = vst.msk [vmem:[#allocation3 + $0x60] sm:$0xff] %vm924, %v853
      %938 = vst.msk [vmem:[#allocation3 + $0x68] sm:$0xff] %vm924, %v855
      %939 = vst.msk [vmem:[#allocation3 + $0x70] sm:$0xff] %vm924, %v857
      %940 = vst.msk [vmem:[#allocation3 + $0x78] sm:$0xff] %vm924, %v859
      %941 = vst.msk [vmem:[#allocation3 + $0x80] sm:$0xff] %vm924, %v861
      %942 = vst.msk [vmem:[#allocation3 + $0x88] sm:$0xff] %vm924, %v863
      %943 = vst.msk [vmem:[#allocation3 + $0x90] sm:$0xff] %vm924, %v865
      %944 = vst.msk [vmem:[#allocation3 + $0x98] sm:$0xff] %vm924, %v867
      %945 = vst.msk [vmem:[#allocation3 + $0xa0] sm:$0xff] %vm924, %v869
      %946 = vst.msk [vmem:[#allocation3 + $0xa8] sm:$0xff] %vm924, %v871
      %947 = vst.msk [vmem:[#allocation3 + $0xb0] sm:$0xff] %vm924, %v873
      %948 = vst.msk [vmem:[#allocation3 + $0xb8] sm:$0xff] %vm924, %v875
      %949 = vst.msk [vmem:[#allocation3 + $0xc0] sm:$0xff] %vm924, %v877
      %950 = vst.msk [vmem:[#allocation3 + $0xc8] sm:$0xff] %vm924, %v879
      %951 = vst.msk [vmem:[#allocation3 + $0xd0] sm:$0xff] %vm924, %v881
      %952 = vst.msk [vmem:[#allocation3 + $0xd8] sm:$0xff] %vm924, %v883
      %953 = vst.msk [vmem:[#allocation3 + $0xe0] sm:$0xff] %vm924, %v885
      %954 = vst.msk [vmem:[#allocation3 + $0xe8] sm:$0xff] %vm924, %v887
      %955 = vst.msk [vmem:[#allocation3 + $0xf0] sm:$0xff] %vm924, %v889
      %956 = vst.msk [vmem:[#allocation3 + $0xf8] sm:$0xff] %vm924, %v891
      %v957 = vld [vmem:[%s369] sm:$0xff]
      %v958 = vld [vmem:[%s369 + $0x8] sm:$0xff]
      %v959 = vld [vmem:[%s369 + $0x18] sm:$0xff]
      %v960 = vld [vmem:[%s369 + $0x20] sm:$0xff]
      %v961 = vld [vmem:[%s369 + $0x30] sm:$0xff]
      %v962 = vld [vmem:[%s369 + $0x38] sm:$0xff]
      %v963 = vld [vmem:[%s369 + $0x48] sm:$0xff]
      %v964 = vld [vmem:[%s369 + $0x50] sm:$0xff]
      %v965 = vld [vmem:[%s369 + $0x60] sm:$0xff]
      %v966 = vld [vmem:[%s369 + $0x68] sm:$0xff]
      %v967 = vld [vmem:[%s369 + $0x78] sm:$0xff]
      %v968 = vld [vmem:[%s369 + $0x80] sm:$0xff]
      %v969 = vld [vmem:[%s369 + $0x90] sm:$0xff]
      %v970 = vld [vmem:[%s369 + $0x98] sm:$0xff]
      %v971 = vld [vmem:[%s369 + $0xa8] sm:$0xff]
      %v972 = vld [vmem:[%s369 + $0xb0] sm:$0xff]
      %v973 = vld [vmem:[%s369 + $0xc0] sm:$0xff]
      %v974 = vld [vmem:[%s369 + $0xc8] sm:$0xff]
      %v975 = vld [vmem:[%s369 + $0xd8] sm:$0xff]
      %v976 = vld [vmem:[%s369 + $0xe0] sm:$0xff]
      %v977 = vld [vmem:[%s369 + $0xf0] sm:$0xff]
      %v978 = vld [vmem:[%s369 + $0xf8] sm:$0xff]
      %v979 = vld [vmem:[%s369 + $0x108] sm:$0xff]
      %v980 = vld [vmem:[%s369 + $0x110] sm:$0xff]
      %v981 = vld [vmem:[%s369 + $0x120] sm:$0xff]
      %v982 = vld [vmem:[%s369 + $0x128] sm:$0xff]
      %v983 = vld [vmem:[%s369 + $0x138] sm:$0xff]
      %v984 = vld [vmem:[%s369 + $0x140] sm:$0xff]
      %v985 = vld [vmem:[%s369 + $0x150] sm:$0xff]
      %v986 = vld [vmem:[%s369 + $0x158] sm:$0xff]
      %v987 = vld [vmem:[%s369 + $0x168] sm:$0xff]
      %v988 = vld [vmem:[%s369 + $0x170] sm:$0xff]
      %1021 = vrot.lane.b32.xlu0 %v957, 12
      %v1022 = vpop.permute.xlu0 %1021
      %1023 = vrot.lane.b32.xlu0 %v958, 12
      %v1024 = vpop.permute.xlu0 %1023
      %1025 = vrot.lane.b32.xlu0 %v959, 12
      %v1026 = vpop.permute.xlu0 %1025
      %1027 = vrot.lane.b32.xlu0 %v960, 12
      %v1028 = vpop.permute.xlu0 %1027
      %1029 = vrot.lane.b32.xlu0 %v961, 12
      %v1030 = vpop.permute.xlu0 %1029
      %1031 = vrot.lane.b32.xlu0 %v962, 12
      %v1032 = vpop.permute.xlu0 %1031
      %1033 = vrot.lane.b32.xlu0 %v963, 12
      %v1034 = vpop.permute.xlu0 %1033
      %1035 = vrot.lane.b32.xlu0 %v964, 12
      %v1036 = vpop.permute.xlu0 %1035
      %1037 = vrot.lane.b32.xlu0 %v965, 12
      %v1038 = vpop.permute.xlu0 %1037
      %1039 = vrot.lane.b32.xlu0 %v966, 12
      %v1040 = vpop.permute.xlu0 %1039
      %1041 = vrot.lane.b32.xlu0 %v967, 12
      %v1042 = vpop.permute.xlu0 %1041
      %1043 = vrot.lane.b32.xlu0 %v968, 12
      %v1044 = vpop.permute.xlu0 %1043
      %1045 = vrot.lane.b32.xlu0 %v969, 12
      %v1046 = vpop.permute.xlu0 %1045
      %1047 = vrot.lane.b32.xlu0 %v970, 12
      %v1048 = vpop.permute.xlu0 %1047
      %1049 = vrot.lane.b32.xlu0 %v971, 12
      %v1050 = vpop.permute.xlu0 %1049
      %1051 = vrot.lane.b32.xlu0 %v972, 12
      %v1052 = vpop.permute.xlu0 %1051
      %1053 = vrot.lane.b32.xlu0 %v973, 12
      %v1054 = vpop.permute.xlu0 %1053
      %1055 = vrot.lane.b32.xlu0 %v974, 12
      %v1056 = vpop.permute.xlu0 %1055
      %1057 = vrot.lane.b32.xlu0 %v975, 12
      %v1058 = vpop.permute.xlu0 %1057
      %1059 = vrot.lane.b32.xlu0 %v976, 12
      %v1060 = vpop.permute.xlu0 %1059
      %1061 = vrot.lane.b32.xlu0 %v977, 12
      %v1062 = vpop.permute.xlu0 %1061
      %1063 = vrot.lane.b32.xlu0 %v978, 12
      %v1064 = vpop.permute.xlu0 %1063
      %1065 = vrot.lane.b32.xlu0 %v979, 12
      %v1066 = vpop.permute.xlu0 %1065
      %1067 = vrot.lane.b32.xlu0 %v980, 12
      %v1068 = vpop.permute.xlu0 %1067
      %1069 = vrot.lane.b32.xlu0 %v981, 12
      %v1070 = vpop.permute.xlu0 %1069
      %1071 = vrot.lane.b32.xlu0 %v982, 12
      %v1072 = vpop.permute.xlu0 %1071
      %1073 = vrot.lane.b32.xlu0 %v983, 12
      %v1074 = vpop.permute.xlu0 %1073
      %1075 = vrot.lane.b32.xlu0 %v984, 12
      %v1076 = vpop.permute.xlu0 %1075
      %1077 = vrot.lane.b32.xlu0 %v985, 12
      %v1078 = vpop.permute.xlu0 %1077
      %1079 = vrot.lane.b32.xlu0 %v986, 12
      %v1080 = vpop.permute.xlu0 %1079
      %1081 = vrot.lane.b32.xlu0 %v987, 12
      %v1082 = vpop.permute.xlu0 %1081
      %1083 = vrot.lane.b32.xlu0 %v988, 12
      %v1084 = vpop.permute.xlu0 %1083
      %vm1117 = vcmask 130144
      %1118 = vst.msk [vmem:[#allocation3] sm:$0xff] %vm1117, %v1022
      %1119 = vst.msk [vmem:[#allocation3 + $0x8] sm:$0xff] %vm1117, %v1024
      %1120 = vst.msk [vmem:[#allocation3 + $0x10] sm:$0xff] %vm1117, %v1026
      %1121 = vst.msk [vmem:[#allocation3 + $0x18] sm:$0xff] %vm1117, %v1028
      %1122 = vst.msk [vmem:[#allocation3 + $0x20] sm:$0xff] %vm1117, %v1030
      %1123 = vst.msk [vmem:[#allocation3 + $0x28] sm:$0xff] %vm1117, %v1032
      %1124 = vst.msk [vmem:[#allocation3 + $0x30] sm:$0xff] %vm1117, %v1034
      %1125 = vst.msk [vmem:[#allocation3 + $0x38] sm:$0xff] %vm1117, %v1036
      %1126 = vst.msk [vmem:[#allocation3 + $0x40] sm:$0xff] %vm1117, %v1038
      %1127 = vst.msk [vmem:[#allocation3 + $0x48] sm:$0xff] %vm1117, %v1040
      %1128 = vst.msk [vmem:[#allocation3 + $0x50] sm:$0xff] %vm1117, %v1042
      %1129 = vst.msk [vmem:[#allocation3 + $0x58] sm:$0xff] %vm1117, %v1044
      %1130 = vst.msk [vmem:[#allocation3 + $0x60] sm:$0xff] %vm1117, %v1046
      %1131 = vst.msk [vmem:[#allocation3 + $0x68] sm:$0xff] %vm1117, %v1048
      %1132 = vst.msk [vmem:[#allocation3 + $0x70] sm:$0xff] %vm1117, %v1050
      %1133 = vst.msk [vmem:[#allocation3 + $0x78] sm:$0xff] %vm1117, %v1052
      %1134 = vst.msk [vmem:[#allocation3 + $0x80] sm:$0xff] %vm1117, %v1054
      %1135 = vst.msk [vmem:[#allocation3 + $0x88] sm:$0xff] %vm1117, %v1056
      %1136 = vst.msk [vmem:[#allocation3 + $0x90] sm:$0xff] %vm1117, %v1058
      %1137 = vst.msk [vmem:[#allocation3 + $0x98] sm:$0xff] %vm1117, %v1060
      %1138 = vst.msk [vmem:[#allocation3 + $0xa0] sm:$0xff] %vm1117, %v1062
      %1139 = vst.msk [vmem:[#allocation3 + $0xa8] sm:$0xff] %vm1117, %v1064
      %1140 = vst.msk [vmem:[#allocation3 + $0xb0] sm:$0xff] %vm1117, %v1066
      %1141 = vst.msk [vmem:[#allocation3 + $0xb8] sm:$0xff] %vm1117, %v1068
      %1142 = vst.msk [vmem:[#allocation3 + $0xc0] sm:$0xff] %vm1117, %v1070
      %1143 = vst.msk [vmem:[#allocation3 + $0xc8] sm:$0xff] %vm1117, %v1072
      %1144 = vst.msk [vmem:[#allocation3 + $0xd0] sm:$0xff] %vm1117, %v1074
      %1145 = vst.msk [vmem:[#allocation3 + $0xd8] sm:$0xff] %vm1117, %v1076
      %1146 = vst.msk [vmem:[#allocation3 + $0xe0] sm:$0xff] %vm1117, %v1078
      %1147 = vst.msk [vmem:[#allocation3 + $0xe8] sm:$0xff] %vm1117, %v1080
      %1148 = vst.msk [vmem:[#allocation3 + $0xf0] sm:$0xff] %vm1117, %v1082
      %1149 = vst.msk [vmem:[#allocation3 + $0xf8] sm:$0xff] %vm1117, %v1084
      %v1150 = vld [vmem:[%s369 + $0x1] sm:$0xff]
      %v1151 = vld [vmem:[%s369 + $0x9] sm:$0xff]
      %v1152 = vld [vmem:[%s369 + $0x19] sm:$0xff]
      %v1153 = vld [vmem:[%s369 + $0x21] sm:$0xff]
      %v1154 = vld [vmem:[%s369 + $0x31] sm:$0xff]
      %v1155 = vld [vmem:[%s369 + $0x39] sm:$0xff]
      %v1156 = vld [vmem:[%s369 + $0x49] sm:$0xff]
      %v1157 = vld [vmem:[%s369 + $0x51] sm:$0xff]
      %v1158 = vld [vmem:[%s369 + $0x61] sm:$0xff]
      %v1159 = vld [vmem:[%s369 + $0x69] sm:$0xff]
      %v1160 = vld [vmem:[%s369 + $0x79] sm:$0xff]
      %v1161 = vld [vmem:[%s369 + $0x81] sm:$0xff]
      %v1162 = vld [vmem:[%s369 + $0x91] sm:$0xff]
      %v1163 = vld [vmem:[%s369 + $0x99] sm:$0xff]
      %v1164 = vld [vmem:[%s369 + $0xa9] sm:$0xff]
      %v1165 = vld [vmem:[%s369 + $0xb1] sm:$0xff]
      %v1166 = vld [vmem:[%s369 + $0xc1] sm:$0xff]
      %v1167 = vld [vmem:[%s369 + $0xc9] sm:$0xff]
      %v1168 = vld [vmem:[%s369 + $0xd9] sm:$0xff]
      %v1169 = vld [vmem:[%s369 + $0xe1] sm:$0xff]
      %v1170 = vld [vmem:[%s369 + $0xf1] sm:$0xff]
      %v1171 = vld [vmem:[%s369 + $0xf9] sm:$0xff]
      %v1172 = vld [vmem:[%s369 + $0x109] sm:$0xff]
      %v1173 = vld [vmem:[%s369 + $0x111] sm:$0xff]
      %v1174 = vld [vmem:[%s369 + $0x121] sm:$0xff]
      %v1175 = vld [vmem:[%s369 + $0x129] sm:$0xff]
      %v1176 = vld [vmem:[%s369 + $0x139] sm:$0xff]
      %v1177 = vld [vmem:[%s369 + $0x141] sm:$0xff]
      %v1178 = vld [vmem:[%s369 + $0x151] sm:$0xff]
      %v1179 = vld [vmem:[%s369 + $0x159] sm:$0xff]
      %v1180 = vld [vmem:[%s369 + $0x169] sm:$0xff]
      %v1181 = vld [vmem:[%s369 + $0x171] sm:$0xff]
      %1214 = vrot.lane.b32.xlu0 %v1150, 16
      %v1215 = vpop.permute.xlu0 %1214
      %1216 = vrot.lane.b32.xlu0 %v1151, 16
      %v1217 = vpop.permute.xlu0 %1216
      %1218 = vrot.lane.b32.xlu0 %v1152, 16
      %v1219 = vpop.permute.xlu0 %1218
      %1220 = vrot.lane.b32.xlu0 %v1153, 16
      %v1221 = vpop.permute.xlu0 %1220
      %1222 = vrot.lane.b32.xlu0 %v1154, 16
      %v1223 = vpop.permute.xlu0 %1222
      %1224 = vrot.lane.b32.xlu0 %v1155, 16
      %v1225 = vpop.permute.xlu0 %1224
      %1226 = vrot.lane.b32.xlu0 %v1156, 16
      %v1227 = vpop.permute.xlu0 %1226
      %1228 = vrot.lane.b32.xlu0 %v1157, 16
      %v1229 = vpop.permute.xlu0 %1228
      %1230 = vrot.lane.b32.xlu0 %v1158, 16
      %v1231 = vpop.permute.xlu0 %1230
      %1232 = vrot.lane.b32.xlu0 %v1159, 16
      %v1233 = vpop.permute.xlu0 %1232
      %1234 = vrot.lane.b32.xlu0 %v1160, 16
      %v1235 = vpop.permute.xlu0 %1234
      %1236 = vrot.lane.b32.xlu0 %v1161, 16
      %v1237 = vpop.permute.xlu0 %1236
      %1238 = vrot.lane.b32.xlu0 %v1162, 16
      %v1239 = vpop.permute.xlu0 %1238
      %1240 = vrot.lane.b32.xlu0 %v1163, 16
      %v1241 = vpop.permute.xlu0 %1240
      %1242 = vrot.lane.b32.xlu0 %v1164, 16
      %v1243 = vpop.permute.xlu0 %1242
      %1244 = vrot.lane.b32.xlu0 %v1165, 16
      %v1245 = vpop.permute.xlu0 %1244
      %1246 = vrot.lane.b32.xlu0 %v1166, 16
      %v1247 = vpop.permute.xlu0 %1246
      %1248 = vrot.lane.b32.xlu0 %v1167, 16
      %v1249 = vpop.permute.xlu0 %1248
      %1250 = vrot.lane.b32.xlu0 %v1168, 16
      %v1251 = vpop.permute.xlu0 %1250
      %1252 = vrot.lane.b32.xlu0 %v1169, 16
      %v1253 = vpop.permute.xlu0 %1252
      %1254 = vrot.lane.b32.xlu0 %v1170, 16
      %v1255 = vpop.permute.xlu0 %1254
      %1256 = vrot.lane.b32.xlu0 %v1171, 16
      %v1257 = vpop.permute.xlu0 %1256
      %1258 = vrot.lane.b32.xlu0 %v1172, 16
      %v1259 = vpop.permute.xlu0 %1258
      %1260 = vrot.lane.b32.xlu0 %v1173, 16
      %v1261 = vpop.permute.xlu0 %1260
      %1262 = vrot.lane.b32.xlu0 %v1174, 16
      %v1263 = vpop.permute.xlu0 %1262
      %1264 = vrot.lane.b32.xlu0 %v1175, 16
      %v1265 = vpop.permute.xlu0 %1264
      %1266 = vrot.lane.b32.xlu0 %v1176, 16
      %v1267 = vpop.permute.xlu0 %1266
      %1268 = vrot.lane.b32.xlu0 %v1177, 16
      %v1269 = vpop.permute.xlu0 %1268
      %1270 = vrot.lane.b32.xlu0 %v1178, 16
      %v1271 = vpop.permute.xlu0 %1270
      %1272 = vrot.lane.b32.xlu0 %v1179, 16
      %v1273 = vpop.permute.xlu0 %1272
      %1274 = vrot.lane.b32.xlu0 %v1180, 16
      %v1275 = vpop.permute.xlu0 %1274
      %1276 = vrot.lane.b32.xlu0 %v1181, 16
      %v1277 = vpop.permute.xlu0 %1276
      %vm1310 = vcmask 162944
      %1311 = vst.msk [vmem:[#allocation3] sm:$0xff] %vm1310, %v1215
      %1312 = vst.msk [vmem:[#allocation3 + $0x8] sm:$0xff] %vm1310, %v1217
      %1313 = vst.msk [vmem:[#allocation3 + $0x10] sm:$0xff] %vm1310, %v1219
      %1314 = vst.msk [vmem:[#allocation3 + $0x18] sm:$0xff] %vm1310, %v1221
      %1315 = vst.msk [vmem:[#allocation3 + $0x20] sm:$0xff] %vm1310, %v1223
      %1316 = vst.msk [vmem:[#allocation3 + $0x28] sm:$0xff] %vm1310, %v1225
      %1317 = vst.msk [vmem:[#allocation3 + $0x30] sm:$0xff] %vm1310, %v1227
      %1318 = vst.msk [vmem:[#allocation3 + $0x38] sm:$0xff] %vm1310, %v1229
      %1319 = vst.msk [vmem:[#allocation3 + $0x40] sm:$0xff] %vm1310, %v1231
      %1320 = vst.msk [vmem:[#allocation3 + $0x48] sm:$0xff] %vm1310, %v1233
      %1321 = vst.msk [vmem:[#allocation3 + $0x50] sm:$0xff] %vm1310, %v1235
      %1322 = vst.msk [vmem:[#allocation3 + $0x58] sm:$0xff] %vm1310, %v1237
      %1323 = vst.msk [vmem:[#allocation3 + $0x60] sm:$0xff] %vm1310, %v1239
      %1324 = vst.msk [vmem:[#allocation3 + $0x68] sm:$0xff] %vm1310, %v1241
      %1325 = vst.msk [vmem:[#allocation3 + $0x70] sm:$0xff] %vm1310, %v1243
      %1326 = vst.msk [vmem:[#allocation3 + $0x78] sm:$0xff] %vm1310, %v1245
      %1327 = vst.msk [vmem:[#allocation3 + $0x80] sm:$0xff] %vm1310, %v1247
      %1328 = vst.msk [vmem:[#allocation3 + $0x88] sm:$0xff] %vm1310, %v1249
      %1329 = vst.msk [vmem:[#allocation3 + $0x90] sm:$0xff] %vm1310, %v1251
      %1330 = vst.msk [vmem:[#allocation3 + $0x98] sm:$0xff] %vm1310, %v1253
      %1331 = vst.msk [vmem:[#allocation3 + $0xa0] sm:$0xff] %vm1310, %v1255
      %1332 = vst.msk [vmem:[#allocation3 + $0xa8] sm:$0xff] %vm1310, %v1257
      %1333 = vst.msk [vmem:[#allocation3 + $0xb0] sm:$0xff] %vm1310, %v1259
      %1334 = vst.msk [vmem:[#allocation3 + $0xb8] sm:$0xff] %vm1310, %v1261
      %1335 = vst.msk [vmem:[#allocation3 + $0xc0] sm:$0xff] %vm1310, %v1263
      %1336 = vst.msk [vmem:[#allocation3 + $0xc8] sm:$0xff] %vm1310, %v1265
      %1337 = vst.msk [vmem:[#allocation3 + $0xd0] sm:$0xff] %vm1310, %v1267
      %1338 = vst.msk [vmem:[#allocation3 + $0xd8] sm:$0xff] %vm1310, %v1269
      %1339 = vst.msk [vmem:[#allocation3 + $0xe0] sm:$0xff] %vm1310, %v1271
      %1340 = vst.msk [vmem:[#allocation3 + $0xe8] sm:$0xff] %vm1310, %v1273
      %1341 = vst.msk [vmem:[#allocation3 + $0xf0] sm:$0xff] %vm1310, %v1275
      %1342 = vst.msk [vmem:[#allocation3 + $0xf8] sm:$0xff] %vm1310, %v1277
      %v1343 = vld [vmem:[%s369 + $0x2] sm:$0xff]
      %v1344 = vld [vmem:[%s369 + $0xa] sm:$0xff]
      %v1345 = vld [vmem:[%s369 + $0x1a] sm:$0xff]
      %v1346 = vld [vmem:[%s369 + $0x22] sm:$0xff]
      %v1347 = vld [vmem:[%s369 + $0x32] sm:$0xff]
      %v1348 = vld [vmem:[%s369 + $0x3a] sm:$0xff]
      %v1349 = vld [vmem:[%s369 + $0x4a] sm:$0xff]
      %v1350 = vld [vmem:[%s369 + $0x52] sm:$0xff]
      %v1351 = vld [vmem:[%s369 + $0x62] sm:$0xff]
      %v1352 = vld [vmem:[%s369 + $0x6a] sm:$0xff]
      %v1353 = vld [vmem:[%s369 + $0x7a] sm:$0xff]
      %v1354 = vld [vmem:[%s369 + $0x82] sm:$0xff]
      %v1355 = vld [vmem:[%s369 + $0x92] sm:$0xff]
      %v1356 = vld [vmem:[%s369 + $0x9a] sm:$0xff]
      %v1357 = vld [vmem:[%s369 + $0xaa] sm:$0xff]
      %v1358 = vld [vmem:[%s369 + $0xb2] sm:$0xff]
      %v1359 = vld [vmem:[%s369 + $0xc2] sm:$0xff]
      %v1360 = vld [vmem:[%s369 + $0xca] sm:$0xff]
      %v1361 = vld [vmem:[%s369 + $0xda] sm:$0xff]
      %v1362 = vld [vmem:[%s369 + $0xe2] sm:$0xff]
      %v1363 = vld [vmem:[%s369 + $0xf2] sm:$0xff]
      %v1364 = vld [vmem:[%s369 + $0xfa] sm:$0xff]
      %v1365 = vld [vmem:[%s369 + $0x10a] sm:$0xff]
      %v1366 = vld [vmem:[%s369 + $0x112] sm:$0xff]
      %v1367 = vld [vmem:[%s369 + $0x122] sm:$0xff]
      %v1368 = vld [vmem:[%s369 + $0x12a] sm:$0xff]
      %v1369 = vld [vmem:[%s369 + $0x13a] sm:$0xff]
      %v1370 = vld [vmem:[%s369 + $0x142] sm:$0xff]
      %v1371 = vld [vmem:[%s369 + $0x152] sm:$0xff]
      %v1372 = vld [vmem:[%s369 + $0x15a] sm:$0xff]
      %v1373 = vld [vmem:[%s369 + $0x16a] sm:$0xff]
      %v1374 = vld [vmem:[%s369 + $0x172] sm:$0xff]
      %1407 = vrot.lane.b32.xlu0 %v1343, 20
      %v1408 = vpop.permute.xlu0 %1407
      %1409 = vrot.lane.b32.xlu0 %v1344, 20
      %v1410 = vpop.permute.xlu0 %1409
      %1411 = vrot.lane.b32.xlu0 %v1345, 20
      %v1412 = vpop.permute.xlu0 %1411
      %1413 = vrot.lane.b32.xlu0 %v1346, 20
      %v1414 = vpop.permute.xlu0 %1413
      %1415 = vrot.lane.b32.xlu0 %v1347, 20
      %v1416 = vpop.permute.xlu0 %1415
      %1417 = vrot.lane.b32.xlu0 %v1348, 20
      %v1418 = vpop.permute.xlu0 %1417
      %1419 = vrot.lane.b32.xlu0 %v1349, 20
      %v1420 = vpop.permute.xlu0 %1419
      %1421 = vrot.lane.b32.xlu0 %v1350, 20
      %v1422 = vpop.permute.xlu0 %1421
      %1423 = vrot.lane.b32.xlu0 %v1351, 20
      %v1424 = vpop.permute.xlu0 %1423
      %1425 = vrot.lane.b32.xlu0 %v1352, 20
      %v1426 = vpop.permute.xlu0 %1425
      %1427 = vrot.lane.b32.xlu0 %v1353, 20
      %v1428 = vpop.permute.xlu0 %1427
      %1429 = vrot.lane.b32.xlu0 %v1354, 20
      %v1430 = vpop.permute.xlu0 %1429
      %1431 = vrot.lane.b32.xlu0 %v1355, 20
      %v1432 = vpop.permute.xlu0 %1431
      %1433 = vrot.lane.b32.xlu0 %v1356, 20
      %v1434 = vpop.permute.xlu0 %1433
      %1435 = vrot.lane.b32.xlu0 %v1357, 20
      %v1436 = vpop.permute.xlu0 %1435
      %1437 = vrot.lane.b32.xlu0 %v1358, 20
      %v1438 = vpop.permute.xlu0 %1437
      %1439 = vrot.lane.b32.xlu0 %v1359, 20
      %v1440 = vpop.permute.xlu0 %1439
      %1441 = vrot.lane.b32.xlu0 %v1360, 20
      %v1442 = vpop.permute.xlu0 %1441
      %1443 = vrot.lane.b32.xlu0 %v1361, 20
      %v1444 = vpop.permute.xlu0 %1443
      %1445 = vrot.lane.b32.xlu0 %v1362, 20
      %v1446 = vpop.permute.xlu0 %1445
      %1447 = vrot.lane.b32.xlu0 %v1363, 20
      %v1448 = vpop.permute.xlu0 %1447
      %1449 = vrot.lane.b32.xlu0 %v1364, 20
      %v1450 = vpop.permute.xlu0 %1449
      %1451 = vrot.lane.b32.xlu0 %v1365, 20
      %v1452 = vpop.permute.xlu0 %1451
      %1453 = vrot.lane.b32.xlu0 %v1366, 20
      %v1454 = vpop.permute.xlu0 %1453
      %1455 = vrot.lane.b32.xlu0 %v1367, 20
      %v1456 = vpop.permute.xlu0 %1455
      %1457 = vrot.lane.b32.xlu0 %v1368, 20
      %v1458 = vpop.permute.xlu0 %1457
      %1459 = vrot.lane.b32.xlu0 %v1369, 20
      %v1460 = vpop.permute.xlu0 %1459
      %1461 = vrot.lane.b32.xlu0 %v1370, 20
      %v1462 = vpop.permute.xlu0 %1461
      %1463 = vrot.lane.b32.xlu0 %v1371, 20
      %v1464 = vpop.permute.xlu0 %1463
      %1465 = vrot.lane.b32.xlu0 %v1372, 20
      %v1466 = vpop.permute.xlu0 %1465
      %1467 = vrot.lane.b32.xlu0 %v1373, 20
      %v1468 = vpop.permute.xlu0 %1467
      %1469 = vrot.lane.b32.xlu0 %v1374, 20
      %v1470 = vpop.permute.xlu0 %1469
      %vm1503 = vcmask 195744
      %1504 = vst.msk [vmem:[#allocation3] sm:$0xff] %vm1503, %v1408
      %1505 = vst.msk [vmem:[#allocation3 + $0x8] sm:$0xff] %vm1503, %v1410
      %1506 = vst.msk [vmem:[#allocation3 + $0x10] sm:$0xff] %vm1503, %v1412
      %1507 = vst.msk [vmem:[#allocation3 + $0x18] sm:$0xff] %vm1503, %v1414
      %1508 = vst.msk [vmem:[#allocation3 + $0x20] sm:$0xff] %vm1503, %v1416
      %1509 = vst.msk [vmem:[#allocation3 + $0x28] sm:$0xff] %vm1503, %v1418
      %1510 = vst.msk [vmem:[#allocation3 + $0x30] sm:$0xff] %vm1503, %v1420
      %1511 = vst.msk [vmem:[#allocation3 + $0x38] sm:$0xff] %vm1503, %v1422
      %1512 = vst.msk [vmem:[#allocation3 + $0x40] sm:$0xff] %vm1503, %v1424
      %1513 = vst.msk [vmem:[#allocation3 + $0x48] sm:$0xff] %vm1503, %v1426
      %1514 = vst.msk [vmem:[#allocation3 + $0x50] sm:$0xff] %vm1503, %v1428
      %1515 = vst.msk [vmem:[#allocation3 + $0x58] sm:$0xff] %vm1503, %v1430
      %1516 = vst.msk [vmem:[#allocation3 + $0x60] sm:$0xff] %vm1503, %v1432
      %1517 = vst.msk [vmem:[#allocation3 + $0x68] sm:$0xff] %vm1503, %v1434
      %1518 = vst.msk [vmem:[#allocation3 + $0x70] sm:$0xff] %vm1503, %v1436
      %1519 = vst.msk [vmem:[#allocation3 + $0x78] sm:$0xff] %vm1503, %v1438
      %1520 = vst.msk [vmem:[#allocation3 + $0x80] sm:$0xff] %vm1503, %v1440
      %1521 = vst.msk [vmem:[#allocation3 + $0x88] sm:$0xff] %vm1503, %v1442
      %1522 = vst.msk [vmem:[#allocation3 + $0x90] sm:$0xff] %vm1503, %v1444
      %1523 = vst.msk [vmem:[#allocation3 + $0x98] sm:$0xff] %vm1503, %v1446
      %1524 = vst.msk [vmem:[#allocation3 + $0xa0] sm:$0xff] %vm1503, %v1448
      %1525 = vst.msk [vmem:[#allocation3 + $0xa8] sm:$0xff] %vm1503, %v1450
      %1526 = vst.msk [vmem:[#allocation3 + $0xb0] sm:$0xff] %vm1503, %v1452
      %1527 = vst.msk [vmem:[#allocation3 + $0xb8] sm:$0xff] %vm1503, %v1454
      %1528 = vst.msk [vmem:[#allocation3 + $0xc0] sm:$0xff] %vm1503, %v1456
      %1529 = vst.msk [vmem:[#allocation3 + $0xc8] sm:$0xff] %vm1503, %v1458
      %1530 = vst.msk [vmem:[#allocation3 + $0xd0] sm:$0xff] %vm1503, %v1460
      %1531 = vst.msk [vmem:[#allocation3 + $0xd8] sm:$0xff] %vm1503, %v1462
      %1532 = vst.msk [vmem:[#allocation3 + $0xe0] sm:$0xff] %vm1503, %v1464
      %1533 = vst.msk [vmem:[#allocation3 + $0xe8] sm:$0xff] %vm1503, %v1466
      %1534 = vst.msk [vmem:[#allocation3 + $0xf0] sm:$0xff] %vm1503, %v1468
      %1535 = vst.msk [vmem:[#allocation3 + $0xf8] sm:$0xff] %vm1503, %v1470
      %s1536 = scalar_lea.vmem [#allocation2], 48
      %v1537 = vld [vmem:[%s1536] sm:$0xff]
      %v1538 = vld [vmem:[%s1536 + $0x8] sm:$0xff]
      %v1539 = vld [vmem:[%s1536 + $0x18] sm:$0xff]
      %v1540 = vld [vmem:[%s1536 + $0x20] sm:$0xff]
      %v1541 = vld [vmem:[%s1536 + $0x30] sm:$0xff]
      %v1542 = vld [vmem:[%s1536 + $0x38] sm:$0xff]
      %v1543 = vld [vmem:[%s1536 + $0x48] sm:$0xff]
      %v1544 = vld [vmem:[%s1536 + $0x50] sm:$0xff]
      %v1545 = vld [vmem:[%s1536 + $0x60] sm:$0xff]
      %v1546 = vld [vmem:[%s1536 + $0x68] sm:$0xff]
      %v1547 = vld [vmem:[%s1536 + $0x78] sm:$0xff]
      %v1548 = vld [vmem:[%s1536 + $0x80] sm:$0xff]
      %v1549 = vld [vmem:[%s1536 + $0x90] sm:$0xff]
      %v1550 = vld [vmem:[%s1536 + $0x98] sm:$0xff]
      %v1551 = vld [vmem:[%s1536 + $0xa8] sm:$0xff]
      %v1552 = vld [vmem:[%s1536 + $0xb0] sm:$0xff]
      %v1553 = vld [vmem:[%s1536 + $0xc0] sm:$0xff]
      %v1554 = vld [vmem:[%s1536 + $0xc8] sm:$0xff]
      %v1555 = vld [vmem:[%s1536 + $0xd8] sm:$0xff]
      %v1556 = vld [vmem:[%s1536 + $0xe0] sm:$0xff]
      %v1557 = vld [vmem:[%s1536 + $0xf0] sm:$0xff]
      %v1558 = vld [vmem:[%s1536 + $0xf8] sm:$0xff]
      %v1559 = vld [vmem:[%s1536 + $0x108] sm:$0xff]
      %v1560 = vld [vmem:[%s1536 + $0x110] sm:$0xff]
      %v1561 = vld [vmem:[%s1536 + $0x120] sm:$0xff]
      %v1562 = vld [vmem:[%s1536 + $0x128] sm:$0xff]
      %v1563 = vld [vmem:[%s1536 + $0x138] sm:$0xff]
      %v1564 = vld [vmem:[%s1536 + $0x140] sm:$0xff]
      %v1565 = vld [vmem:[%s1536 + $0x150] sm:$0xff]
      %v1566 = vld [vmem:[%s1536 + $0x158] sm:$0xff]
      %v1567 = vld [vmem:[%s1536 + $0x168] sm:$0xff]
      %v1568 = vld [vmem:[%s1536 + $0x170] sm:$0xff]
      %1601 = vrot.lane.b32.xlu0 %v1537, 24
      %v1602 = vpop.permute.xlu0 %1601
      %1603 = vrot.lane.b32.xlu0 %v1538, 24
      %v1604 = vpop.permute.xlu0 %1603
      %1605 = vrot.lane.b32.xlu0 %v1539, 24
      %v1606 = vpop.permute.xlu0 %1605
      %1607 = vrot.lane.b32.xlu0 %v1540, 24
      %v1608 = vpop.permute.xlu0 %1607
      %1609 = vrot.lane.b32.xlu0 %v1541, 24
      %v1610 = vpop.permute.xlu0 %1609
      %1611 = vrot.lane.b32.xlu0 %v1542, 24
      %v1612 = vpop.permute.xlu0 %1611
      %1613 = vrot.lane.b32.xlu0 %v1543, 24
      %v1614 = vpop.permute.xlu0 %1613
      %1615 = vrot.lane.b32.xlu0 %v1544, 24
      %v1616 = vpop.permute.xlu0 %1615
      %1617 = vrot.lane.b32.xlu0 %v1545, 24
      %v1618 = vpop.permute.xlu0 %1617
      %1619 = vrot.lane.b32.xlu0 %v1546, 24
      %v1620 = vpop.permute.xlu0 %1619
      %1621 = vrot.lane.b32.xlu0 %v1547, 24
      %v1622 = vpop.permute.xlu0 %1621
      %1623 = vrot.lane.b32.xlu0 %v1548, 24
      %v1624 = vpop.permute.xlu0 %1623
      %1625 = vrot.lane.b32.xlu0 %v1549, 24
      %v1626 = vpop.permute.xlu0 %1625
      %1627 = vrot.lane.b32.xlu0 %v1550, 24
      %v1628 = vpop.permute.xlu0 %1627
      %1629 = vrot.lane.b32.xlu0 %v1551, 24
      %v1630 = vpop.permute.xlu0 %1629
      %1631 = vrot.lane.b32.xlu0 %v1552, 24
      %v1632 = vpop.permute.xlu0 %1631
      %1633 = vrot.lane.b32.xlu0 %v1553, 24
      %v1634 = vpop.permute.xlu0 %1633
      %1635 = vrot.lane.b32.xlu0 %v1554, 24
      %v1636 = vpop.permute.xlu0 %1635
      %1637 = vrot.lane.b32.xlu0 %v1555, 24
      %v1638 = vpop.permute.xlu0 %1637
      %1639 = vrot.lane.b32.xlu0 %v1556, 24
      %v1640 = vpop.permute.xlu0 %1639
      %1641 = vrot.lane.b32.xlu0 %v1557, 24
      %v1642 = vpop.permute.xlu0 %1641
      %1643 = vrot.lane.b32.xlu0 %v1558, 24
      %v1644 = vpop.permute.xlu0 %1643
      %1645 = vrot.lane.b32.xlu0 %v1559, 24
      %v1646 = vpop.permute.xlu0 %1645
      %1647 = vrot.lane.b32.xlu0 %v1560, 24
      %v1648 = vpop.permute.xlu0 %1647
      %1649 = vrot.lane.b32.xlu0 %v1561, 24
      %v1650 = vpop.permute.xlu0 %1649
      %1651 = vrot.lane.b32.xlu0 %v1562, 24
      %v1652 = vpop.permute.xlu0 %1651
      %1653 = vrot.lane.b32.xlu0 %v1563, 24
      %v1654 = vpop.permute.xlu0 %1653
      %1655 = vrot.lane.b32.xlu0 %v1564, 24
      %v1656 = vpop.permute.xlu0 %1655
      %1657 = vrot.lane.b32.xlu0 %v1565, 24
      %v1658 = vpop.permute.xlu0 %1657
      %1659 = vrot.lane.b32.xlu0 %v1566, 24
      %v1660 = vpop.permute.xlu0 %1659
      %1661 = vrot.lane.b32.xlu0 %v1567, 24
      %v1662 = vpop.permute.xlu0 %1661
      %1663 = vrot.lane.b32.xlu0 %v1568, 24
      %v1664 = vpop.permute.xlu0 %1663
      %vm1697 = vcmask 228544
      %1698 = vst.msk [vmem:[#allocation3] sm:$0xff] %vm1697, %v1602
      %1699 = vst.msk [vmem:[#allocation3 + $0x8] sm:$0xff] %vm1697, %v1604
      %1700 = vst.msk [vmem:[#allocation3 + $0x10] sm:$0xff] %vm1697, %v1606
      %1701 = vst.msk [vmem:[#allocation3 + $0x18] sm:$0xff] %vm1697, %v1608
      %1702 = vst.msk [vmem:[#allocation3 + $0x20] sm:$0xff] %vm1697, %v1610
      %1703 = vst.msk [vmem:[#allocation3 + $0x28] sm:$0xff] %vm1697, %v1612
      %1704 = vst.msk [vmem:[#allocation3 + $0x30] sm:$0xff] %vm1697, %v1614
      %1705 = vst.msk [vmem:[#allocation3 + $0x38] sm:$0xff] %vm1697, %v1616
      %1706 = vst.msk [vmem:[#allocation3 + $0x40] sm:$0xff] %vm1697, %v1618
      %1707 = vst.msk [vmem:[#allocation3 + $0x48] sm:$0xff] %vm1697, %v1620
      %1708 = vst.msk [vmem:[#allocation3 + $0x50] sm:$0xff] %vm1697, %v1622
      %1709 = vst.msk [vmem:[#allocation3 + $0x58] sm:$0xff] %vm1697, %v1624
      %1710 = vst.msk [vmem:[#allocation3 + $0x60] sm:$0xff] %vm1697, %v1626
      %1711 = vst.msk [vmem:[#allocation3 + $0x68] sm:$0xff] %vm1697, %v1628
      %1712 = vst.msk [vmem:[#allocation3 + $0x70] sm:$0xff] %vm1697, %v1630
      %1713 = vst.msk [vmem:[#allocation3 + $0x78] sm:$0xff] %vm1697, %v1632
      %1714 = vst.msk [vmem:[#allocation3 + $0x80] sm:$0xff] %vm1697, %v1634
      %1715 = vst.msk [vmem:[#allocation3 + $0x88] sm:$0xff] %vm1697, %v1636
      %1716 = vst.msk [vmem:[#allocation3 + $0x90] sm:$0xff] %vm1697, %v1638
      %1717 = vst.msk [vmem:[#allocation3 + $0x98] sm:$0xff] %vm1697, %v1640
      %1718 = vst.msk [vmem:[#allocation3 + $0xa0] sm:$0xff] %vm1697, %v1642
      %1719 = vst.msk [vmem:[#allocation3 + $0xa8] sm:$0xff] %vm1697, %v1644
      %1720 = vst.msk [vmem:[#allocation3 + $0xb0] sm:$0xff] %vm1697, %v1646
      %1721 = vst.msk [vmem:[#allocation3 + $0xb8] sm:$0xff] %vm1697, %v1648
      %1722 = vst.msk [vmem:[#allocation3 + $0xc0] sm:$0xff] %vm1697, %v1650
      %1723 = vst.msk [vmem:[#allocation3 + $0xc8] sm:$0xff] %vm1697, %v1652
      %1724 = vst.msk [vmem:[#allocation3 + $0xd0] sm:$0xff] %vm1697, %v1654
      %1725 = vst.msk [vmem:[#allocation3 + $0xd8] sm:$0xff] %vm1697, %v1656
      %1726 = vst.msk [vmem:[#allocation3 + $0xe0] sm:$0xff] %vm1697, %v1658
      %1727 = vst.msk [vmem:[#allocation3 + $0xe8] sm:$0xff] %vm1697, %v1660
      %1728 = vst.msk [vmem:[#allocation3 + $0xf0] sm:$0xff] %vm1697, %v1662
      %1729 = vst.msk [vmem:[#allocation3 + $0xf8] sm:$0xff] %vm1697, %v1664
      %v1730 = vld [vmem:[%s1536 + $0x1] sm:$0xff]
      %v1731 = vld [vmem:[%s1536 + $0x9] sm:$0xff]
      %v1732 = vld [vmem:[%s1536 + $0x19] sm:$0xff]
      %v1733 = vld [vmem:[%s1536 + $0x21] sm:$0xff]
      %v1734 = vld [vmem:[%s1536 + $0x31] sm:$0xff]
      %v1735 = vld [vmem:[%s1536 + $0x39] sm:$0xff]
      %v1736 = vld [vmem:[%s1536 + $0x49] sm:$0xff]
      %v1737 = vld [vmem:[%s1536 + $0x51] sm:$0xff]
      %v1738 = vld [vmem:[%s1536 + $0x61] sm:$0xff]
      %v1739 = vld [vmem:[%s1536 + $0x69] sm:$0xff]
      %v1740 = vld [vmem:[%s1536 + $0x79] sm:$0xff]
      %v1741 = vld [vmem:[%s1536 + $0x81] sm:$0xff]
      %v1742 = vld [vmem:[%s1536 + $0x91] sm:$0xff]
      %v1743 = vld [vmem:[%s1536 + $0x99] sm:$0xff]
      %v1744 = vld [vmem:[%s1536 + $0xa9] sm:$0xff]
      %v1745 = vld [vmem:[%s1536 + $0xb1] sm:$0xff]
      %v1746 = vld [vmem:[%s1536 + $0xc1] sm:$0xff]
      %v1747 = vld [vmem:[%s1536 + $0xc9] sm:$0xff]
      %v1748 = vld [vmem:[%s1536 + $0xd9] sm:$0xff]
      %v1749 = vld [vmem:[%s1536 + $0xe1] sm:$0xff]
      %v1750 = vld [vmem:[%s1536 + $0xf1] sm:$0xff]
      %v1751 = vld [vmem:[%s1536 + $0xf9] sm:$0xff]
      %v1752 = vld [vmem:[%s1536 + $0x109] sm:$0xff]
      %v1753 = vld [vmem:[%s1536 + $0x111] sm:$0xff]
      %v1754 = vld [vmem:[%s1536 + $0x121] sm:$0xff]
      %v1755 = vld [vmem:[%s1536 + $0x129] sm:$0xff]
      %v1756 = vld [vmem:[%s1536 + $0x139] sm:$0xff]
      %v1757 = vld [vmem:[%s1536 + $0x141] sm:$0xff]
      %v1758 = vld [vmem:[%s1536 + $0x151] sm:$0xff]
      %v1759 = vld [vmem:[%s1536 + $0x159] sm:$0xff]
      %v1760 = vld [vmem:[%s1536 + $0x169] sm:$0xff]
      %v1761 = vld [vmem:[%s1536 + $0x171] sm:$0xff]
      %1794 = vrot.lane.b32.xlu0 %v1730, 28
      %v1795 = vpop.permute.xlu0 %1794
      %1796 = vrot.lane.b32.xlu0 %v1731, 28
      %v1797 = vpop.permute.xlu0 %1796
      %1798 = vrot.lane.b32.xlu0 %v1732, 28
      %v1799 = vpop.permute.xlu0 %1798
      %1800 = vrot.lane.b32.xlu0 %v1733, 28
      %v1801 = vpop.permute.xlu0 %1800
      %1802 = vrot.lane.b32.xlu0 %v1734, 28
      %v1803 = vpop.permute.xlu0 %1802
      %1804 = vrot.lane.b32.xlu0 %v1735, 28
      %v1805 = vpop.permute.xlu0 %1804
      %1806 = vrot.lane.b32.xlu0 %v1736, 28
      %v1807 = vpop.permute.xlu0 %1806
      %1808 = vrot.lane.b32.xlu0 %v1737, 28
      %v1809 = vpop.permute.xlu0 %1808
      %1810 = vrot.lane.b32.xlu0 %v1738, 28
      %v1811 = vpop.permute.xlu0 %1810
      %1812 = vrot.lane.b32.xlu0 %v1739, 28
      %v1813 = vpop.permute.xlu0 %1812
      %1814 = vrot.lane.b32.xlu0 %v1740, 28
      %v1815 = vpop.permute.xlu0 %1814
      %1816 = vrot.lane.b32.xlu0 %v1741, 28
      %v1817 = vpop.permute.xlu0 %1816
      %1818 = vrot.lane.b32.xlu0 %v1742, 28
      %v1819 = vpop.permute.xlu0 %1818
      %1820 = vrot.lane.b32.xlu0 %v1743, 28
      %v1821 = vpop.permute.xlu0 %1820
      %1822 = vrot.lane.b32.xlu0 %v1744, 28
      %v1823 = vpop.permute.xlu0 %1822
      %1824 = vrot.lane.b32.xlu0 %v1745, 28
      %v1825 = vpop.permute.xlu0 %1824
      %1826 = vrot.lane.b32.xlu0 %v1746, 28
      %v1827 = vpop.permute.xlu0 %1826
      %1828 = vrot.lane.b32.xlu0 %v1747, 28
      %v1829 = vpop.permute.xlu0 %1828
      %1830 = vrot.lane.b32.xlu0 %v1748, 28
      %v1831 = vpop.permute.xlu0 %1830
      %1832 = vrot.lane.b32.xlu0 %v1749, 28
      %v1833 = vpop.permute.xlu0 %1832
      %1834 = vrot.lane.b32.xlu0 %v1750, 28
      %v1835 = vpop.permute.xlu0 %1834
      %1836 = vrot.lane.b32.xlu0 %v1751, 28
      %v1837 = vpop.permute.xlu0 %1836
      %1838 = vrot.lane.b32.xlu0 %v1752, 28
      %v1839 = vpop.permute.xlu0 %1838
      %1840 = vrot.lane.b32.xlu0 %v1753, 28
      %v1841 = vpop.permute.xlu0 %1840
      %1842 = vrot.lane.b32.xlu0 %v1754, 28
      %v1843 = vpop.permute.xlu0 %1842
      %1844 = vrot.lane.b32.xlu0 %v1755, 28
      %v1845 = vpop.permute.xlu0 %1844
      %1846 = vrot.lane.b32.xlu0 %v1756, 28
      %v1847 = vpop.permute.xlu0 %1846
      %1848 = vrot.lane.b32.xlu0 %v1757, 28
      %v1849 = vpop.permute.xlu0 %1848
      %1850 = vrot.lane.b32.xlu0 %v1758, 28
      %v1851 = vpop.permute.xlu0 %1850
      %1852 = vrot.lane.b32.xlu0 %v1759, 28
      %v1853 = vpop.permute.xlu0 %1852
      %1854 = vrot.lane.b32.xlu0 %v1760, 28
      %v1855 = vpop.permute.xlu0 %1854
      %1856 = vrot.lane.b32.xlu0 %v1761, 28
      %v1857 = vpop.permute.xlu0 %1856
      %vm1890 = vcmask 261344
      %1891 = vst.msk [vmem:[#allocation3] sm:$0xff] %vm1890, %v1795
      %1892 = vst.msk [vmem:[#allocation3 + $0x8] sm:$0xff] %vm1890, %v1797
      %1893 = vst.msk [vmem:[#allocation3 + $0x10] sm:$0xff] %vm1890, %v1799
      %1894 = vst.msk [vmem:[#allocation3 + $0x18] sm:$0xff] %vm1890, %v1801
      %1895 = vst.msk [vmem:[#allocation3 + $0x20] sm:$0xff] %vm1890, %v1803
      %1896 = vst.msk [vmem:[#allocation3 + $0x28] sm:$0xff] %vm1890, %v1805
      %1897 = vst.msk [vmem:[#allocation3 + $0x30] sm:$0xff] %vm1890, %v1807
      %1898 = vst.msk [vmem:[#allocation3 + $0x38] sm:$0xff] %vm1890, %v1809
      %1899 = vst.msk [vmem:[#allocation3 + $0x40] sm:$0xff] %vm1890, %v1811
      %1900 = vst.msk [vmem:[#allocation3 + $0x48] sm:$0xff] %vm1890, %v1813
      %1901 = vst.msk [vmem:[#allocation3 + $0x50] sm:$0xff] %vm1890, %v1815
      %1902 = vst.msk [vmem:[#allocation3 + $0x58] sm:$0xff] %vm1890, %v1817
      %1903 = vst.msk [vmem:[#allocation3 + $0x60] sm:$0xff] %vm1890, %v1819
      %1904 = vst.msk [vmem:[#allocation3 + $0x68] sm:$0xff] %vm1890, %v1821
      %1905 = vst.msk [vmem:[#allocation3 + $0x70] sm:$0xff] %vm1890, %v1823
      %1906 = vst.msk [vmem:[#allocation3 + $0x78] sm:$0xff] %vm1890, %v1825
      %1907 = vst.msk [vmem:[#allocation3 + $0x80] sm:$0xff] %vm1890, %v1827
      %1908 = vst.msk [vmem:[#allocation3 + $0x88] sm:$0xff] %vm1890, %v1829
      %1909 = vst.msk [vmem:[#allocation3 + $0x90] sm:$0xff] %vm1890, %v1831
      %1910 = vst.msk [vmem:[#allocation3 + $0x98] sm:$0xff] %vm1890, %v1833
      %1911 = vst.msk [vmem:[#allocation3 + $0xa0] sm:$0xff] %vm1890, %v1835
      %1912 = vst.msk [vmem:[#allocation3 + $0xa8] sm:$0xff] %vm1890, %v1837
      %1913 = vst.msk [vmem:[#allocation3 + $0xb0] sm:$0xff] %vm1890, %v1839
      %1914 = vst.msk [vmem:[#allocation3 + $0xb8] sm:$0xff] %vm1890, %v1841
      %1915 = vst.msk [vmem:[#allocation3 + $0xc0] sm:$0xff] %vm1890, %v1843
      %1916 = vst.msk [vmem:[#allocation3 + $0xc8] sm:$0xff] %vm1890, %v1845
      %1917 = vst.msk [vmem:[#allocation3 + $0xd0] sm:$0xff] %vm1890, %v1847
      %1918 = vst.msk [vmem:[#allocation3 + $0xd8] sm:$0xff] %vm1890, %v1849
      %1919 = vst.msk [vmem:[#allocation3 + $0xe0] sm:$0xff] %vm1890, %v1851
      %1920 = vst.msk [vmem:[#allocation3 + $0xe8] sm:$0xff] %vm1890, %v1853
      %1921 = vst.msk [vmem:[#allocation3 + $0xf0] sm:$0xff] %vm1890, %v1855
      %1922 = vst.msk [vmem:[#allocation3 + $0xf8] sm:$0xff] %vm1890, %v1857
      %v1923 = vld [vmem:[%s1536 + $0x2] sm:$0xff]
      %v1924 = vld [vmem:[%s1536 + $0xa] sm:$0xff]
      %v1925 = vld [vmem:[%s1536 + $0x1a] sm:$0xff]
      %v1926 = vld [vmem:[%s1536 + $0x22] sm:$0xff]
      %v1927 = vld [vmem:[%s1536 + $0x32] sm:$0xff]
      %v1928 = vld [vmem:[%s1536 + $0x3a] sm:$0xff]
      %v1929 = vld [vmem:[%s1536 + $0x4a] sm:$0xff]
      %v1930 = vld [vmem:[%s1536 + $0x52] sm:$0xff]
      %v1931 = vld [vmem:[%s1536 + $0x62] sm:$0xff]
      %v1932 = vld [vmem:[%s1536 + $0x6a] sm:$0xff]
      %v1933 = vld [vmem:[%s1536 + $0x7a] sm:$0xff]
      %v1934 = vld [vmem:[%s1536 + $0x82] sm:$0xff]
      %v1935 = vld [vmem:[%s1536 + $0x92] sm:$0xff]
      %v1936 = vld [vmem:[%s1536 + $0x9a] sm:$0xff]
      %v1937 = vld [vmem:[%s1536 + $0xaa] sm:$0xff]
      %v1938 = vld [vmem:[%s1536 + $0xb2] sm:$0xff]
      %v1939 = vld [vmem:[%s1536 + $0xc2] sm:$0xff]
      %v1940 = vld [vmem:[%s1536 + $0xca] sm:$0xff]
      %v1941 = vld [vmem:[%s1536 + $0xda] sm:$0xff]
      %v1942 = vld [vmem:[%s1536 + $0xe2] sm:$0xff]
      %v1943 = vld [vmem:[%s1536 + $0xf2] sm:$0xff]
      %v1944 = vld [vmem:[%s1536 + $0xfa] sm:$0xff]
      %v1945 = vld [vmem:[%s1536 + $0x10a] sm:$0xff]
      %v1946 = vld [vmem:[%s1536 + $0x112] sm:$0xff]
      %v1947 = vld [vmem:[%s1536 + $0x122] sm:$0xff]
      %v1948 = vld [vmem:[%s1536 + $0x12a] sm:$0xff]
      %v1949 = vld [vmem:[%s1536 + $0x13a] sm:$0xff]
      %v1950 = vld [vmem:[%s1536 + $0x142] sm:$0xff]
      %v1951 = vld [vmem:[%s1536 + $0x152] sm:$0xff]
      %v1952 = vld [vmem:[%s1536 + $0x15a] sm:$0xff]
      %v1953 = vld [vmem:[%s1536 + $0x16a] sm:$0xff]
      %v1954 = vld [vmem:[%s1536 + $0x172] sm:$0xff]
      %1987 = vrot.lane.b32.xlu0 %v1923, 32
      %v1988 = vpop.permute.xlu0 %1987
      %1989 = vrot.lane.b32.xlu0 %v1924, 32
      %v1990 = vpop.permute.xlu0 %1989
      %1991 = vrot.lane.b32.xlu0 %v1925, 32
      %v1992 = vpop.permute.xlu0 %1991
      %1993 = vrot.lane.b32.xlu0 %v1926, 32
      %v1994 = vpop.permute.xlu0 %1993
      %1995 = vrot.lane.b32.xlu0 %v1927, 32
      %v1996 = vpop.permute.xlu0 %1995
      %1997 = vrot.lane.b32.xlu0 %v1928, 32
      %v1998 = vpop.permute.xlu0 %1997
      %1999 = vrot.lane.b32.xlu0 %v1929, 32
      %v2000 = vpop.permute.xlu0 %1999
      %2001 = vrot.lane.b32.xlu0 %v1930, 32
      %v2002 = vpop.permute.xlu0 %2001
      %2003 = vrot.lane.b32.xlu0 %v1931, 32
      %v2004 = vpop.permute.xlu0 %2003
      %2005 = vrot.lane.b32.xlu0 %v1932, 32
      %v2006 = vpop.permute.xlu0 %2005
      %2007 = vrot.lane.b32.xlu0 %v1933, 32
      %v2008 = vpop.permute.xlu0 %2007
      %2009 = vrot.lane.b32.xlu0 %v1934, 32
      %v2010 = vpop.permute.xlu0 %2009
      %2011 = vrot.lane.b32.xlu0 %v1935, 32
      %v2012 = vpop.permute.xlu0 %2011
      %2013 = vrot.lane.b32.xlu0 %v1936, 32
      %v2014 = vpop.permute.xlu0 %2013
      %2015 = vrot.lane.b32.xlu0 %v1937, 32
      %v2016 = vpop.permute.xlu0 %2015
      %2017 = vrot.lane.b32.xlu0 %v1938, 32
      %v2018 = vpop.permute.xlu0 %2017
      %2019 = vrot.lane.b32.xlu0 %v1939, 32
      %v2020 = vpop.permute.xlu0 %2019
      %2021 = vrot.lane.b32.xlu0 %v1940, 32
      %v2022 = vpop.permute.xlu0 %2021
      %2023 = vrot.lane.b32.xlu0 %v1941, 32
      %v2024 = vpop.permute.xlu0 %2023
      %2025 = vrot.lane.b32.xlu0 %v1942, 32
      %v2026 = vpop.permute.xlu0 %2025
      %2027 = vrot.lane.b32.xlu0 %v1943, 32
      %v2028 = vpop.permute.xlu0 %2027
      %2029 = vrot.lane.b32.xlu0 %v1944, 32
      %v2030 = vpop.permute.xlu0 %2029
      %2031 = vrot.lane.b32.xlu0 %v1945, 32
      %v2032 = vpop.permute.xlu0 %2031
      %2033 = vrot.lane.b32.xlu0 %v1946, 32
      %v2034 = vpop.permute.xlu0 %2033
      %2035 = vrot.lane.b32.xlu0 %v1947, 32
      %v2036 = vpop.permute.xlu0 %2035
      %2037 = vrot.lane.b32.xlu0 %v1948, 32
      %v2038 = vpop.permute.xlu0 %2037
      %2039 = vrot.lane.b32.xlu0 %v1949, 32
      %v2040 = vpop.permute.xlu0 %2039
      %2041 = vrot.lane.b32.xlu0 %v1950, 32
      %v2042 = vpop.permute.xlu0 %2041
      %2043 = vrot.lane.b32.xlu0 %v1951, 32
      %v2044 = vpop.permute.xlu0 %2043
      %2045 = vrot.lane.b32.xlu0 %v1952, 32
      %v2046 = vpop.permute.xlu0 %2045
      %2047 = vrot.lane.b32.xlu0 %v1953, 32
      %v2048 = vpop.permute.xlu0 %2047
      %2049 = vrot.lane.b32.xlu0 %v1954, 32
      %v2050 = vpop.permute.xlu0 %2049
      %vm2083 = vcmask 294144
      %2084 = vst.msk [vmem:[#allocation3] sm:$0xff] %vm2083, %v1988
      %2085 = vst.msk [vmem:[#allocation3 + $0x8] sm:$0xff] %vm2083, %v1990
      %2086 = vst.msk [vmem:[#allocation3 + $0x10] sm:$0xff] %vm2083, %v1992
      %2087 = vst.msk [vmem:[#allocation3 + $0x18] sm:$0xff] %vm2083, %v1994
      %2088 = vst.msk [vmem:[#allocation3 + $0x20] sm:$0xff] %vm2083, %v1996
      %2089 = vst.msk [vmem:[#allocation3 + $0x28] sm:$0xff] %vm2083, %v1998
      %2090 = vst.msk [vmem:[#allocation3 + $0x30] sm:$0xff] %vm2083, %v2000
      %2091 = vst.msk [vmem:[#allocation3 + $0x38] sm:$0xff] %vm2083, %v2002
      %2092 = vst.msk [vmem:[#allocation3 + $0x40] sm:$0xff] %vm2083, %v2004
      %2093 = vst.msk [vmem:[#allocation3 + $0x48] sm:$0xff] %vm2083, %v2006
      %2094 = vst.msk [vmem:[#allocation3 + $0x50] sm:$0xff] %vm2083, %v2008
      %2095 = vst.msk [vmem:[#allocation3 + $0x58] sm:$0xff] %vm2083, %v2010
      %2096 = vst.msk [vmem:[#allocation3 + $0x60] sm:$0xff] %vm2083, %v2012
      %2097 = vst.msk [vmem:[#allocation3 + $0x68] sm:$0xff] %vm2083, %v2014
      %2098 = vst.msk [vmem:[#allocation3 + $0x70] sm:$0xff] %vm2083, %v2016
      %2099 = vst.msk [vmem:[#allocation3 + $0x78] sm:$0xff] %vm2083, %v2018
      %2100 = vst.msk [vmem:[#allocation3 + $0x80] sm:$0xff] %vm2083, %v2020
      %2101 = vst.msk [vmem:[#allocation3 + $0x88] sm:$0xff] %vm2083, %v2022
      %2102 = vst.msk [vmem:[#allocation3 + $0x90] sm:$0xff] %vm2083, %v2024
      %2103 = vst.msk [vmem:[#allocation3 + $0x98] sm:$0xff] %vm2083, %v2026
      %2104 = vst.msk [vmem:[#allocation3 + $0xa0] sm:$0xff] %vm2083, %v2028
      %2105 = vst.msk [vmem:[#allocation3 + $0xa8] sm:$0xff] %vm2083, %v2030
      %2106 = vst.msk [vmem:[#allocation3 + $0xb0] sm:$0xff] %vm2083, %v2032
      %2107 = vst.msk [vmem:[#allocation3 + $0xb8] sm:$0xff] %vm2083, %v2034
      %2108 = vst.msk [vmem:[#allocation3 + $0xc0] sm:$0xff] %vm2083, %v2036
      %2109 = vst.msk [vmem:[#allocation3 + $0xc8] sm:$0xff] %vm2083, %v2038
      %2110 = vst.msk [vmem:[#allocation3 + $0xd0] sm:$0xff] %vm2083, %v2040
      %2111 = vst.msk [vmem:[#allocation3 + $0xd8] sm:$0xff] %vm2083, %v2042
      %2112 = vst.msk [vmem:[#allocation3 + $0xe0] sm:$0xff] %vm2083, %v2044
      %2113 = vst.msk [vmem:[#allocation3 + $0xe8] sm:$0xff] %vm2083, %v2046
      %2114 = vst.msk [vmem:[#allocation3 + $0xf0] sm:$0xff] %vm2083, %v2048
      %2115 = vst.msk [vmem:[#allocation3 + $0xf8] sm:$0xff] %vm2083, %v2050
      %v2116 = vld [vmem:[#allocation3] sm:$0xff]
      %v2117 = vld [vmem:[#allocation3 + $0x8] sm:$0xff]
      %v2118 = vld [vmem:[#allocation3 + $0x10] sm:$0xff]
      %v2119 = vld [vmem:[#allocation3 + $0x18] sm:$0xff]
      %v2120 = vld [vmem:[#allocation3 + $0x20] sm:$0xff]
      %v2121 = vld [vmem:[#allocation3 + $0x28] sm:$0xff]
      %v2122 = vld [vmem:[#allocation3 + $0x30] sm:$0xff]
      %v2123 = vld [vmem:[#allocation3 + $0x38] sm:$0xff]
      %v2124 = vld [vmem:[#allocation3 + $0x40] sm:$0xff]
      %v2125 = vld [vmem:[#allocation3 + $0x48] sm:$0xff]
      %v2126 = vld [vmem:[#allocation3 + $0x50] sm:$0xff]
      %v2127 = vld [vmem:[#allocation3 + $0x58] sm:$0xff]
      %v2128 = vld [vmem:[#allocation3 + $0x60] sm:$0xff]
      %v2129 = vld [vmem:[#allocation3 + $0x68] sm:$0xff]
      %v2130 = vld [vmem:[#allocation3 + $0x70] sm:$0xff]
      %v2131 = vld [vmem:[#allocation3 + $0x78] sm:$0xff]
      %v2132 = vld [vmem:[#allocation3 + $0x80] sm:$0xff]
      %v2133 = vld [vmem:[#allocation3 + $0x88] sm:$0xff]
      %v2134 = vld [vmem:[#allocation3 + $0x90] sm:$0xff]
      %v2135 = vld [vmem:[#allocation3 + $0x98] sm:$0xff]
      %v2136 = vld [vmem:[#allocation3 + $0xa0] sm:$0xff]
      %v2137 = vld [vmem:[#allocation3 + $0xa8] sm:$0xff]
      %v2138 = vld [vmem:[#allocation3 + $0xb0] sm:$0xff]
      %v2139 = vld [vmem:[#allocation3 + $0xb8] sm:$0xff]
      %v2140 = vld [vmem:[#allocation3 + $0xc0] sm:$0xff]
      %v2141 = vld [vmem:[#allocation3 + $0xc8] sm:$0xff]
      %v2142 = vld [vmem:[#allocation3 + $0xd0] sm:$0xff]
      %v2143 = vld [vmem:[#allocation3 + $0xd8] sm:$0xff]
      %v2144 = vld [vmem:[#allocation3 + $0xe0] sm:$0xff]
      %v2145 = vld [vmem:[#allocation3 + $0xe8] sm:$0xff]
      %v2146 = vld [vmem:[#allocation3 + $0xf0] sm:$0xff]
      %v2147 = vld [vmem:[#allocation3 + $0xf8] sm:$0xff]
      %vm2148 = vcmask 293888
      %v2150 = vsel %vm2148, %v2116, 0
      %v2153 = vsel %vm2148, %v2117, 0
      %v2156 = vsel %vm2148, %v2118, 0
      %v2159 = vsel %vm2148, %v2119, 0
      %v2162 = vsel %vm2148, %v2120, 0
      %v2165 = vsel %vm2148, %v2121, 0
      %v2168 = vsel %vm2148, %v2122, 0
      %v2171 = vsel %vm2148, %v2123, 0
      %v2174 = vsel %vm2148, %v2124, 0
      %v2177 = vsel %vm2148, %v2125, 0
      %v2180 = vsel %vm2148, %v2126, 0
      %v2183 = vsel %vm2148, %v2127, 0
      %v2186 = vsel %vm2148, %v2128, 0
      %v2189 = vsel %vm2148, %v2129, 0
      %v2192 = vsel %vm2148, %v2130, 0
      %v2195 = vsel %vm2148, %v2131, 0
      %v2198 = vsel %vm2148, %v2132, 0
      %v2201 = vsel %vm2148, %v2133, 0
      %v2204 = vsel %vm2148, %v2134, 0
      %v2207 = vsel %vm2148, %v2135, 0
      %v2210 = vsel %vm2148, %v2136, 0
      %v2213 = vsel %vm2148, %v2137, 0
      %v2216 = vsel %vm2148, %v2138, 0
      %v2219 = vsel %vm2148, %v2139, 0
      %v2222 = vsel %vm2148, %v2140, 0
      %v2225 = vsel %vm2148, %v2141, 0
      %v2228 = vsel %vm2148, %v2142, 0
      %v2231 = vsel %vm2148, %v2143, 0
      %v2234 = vsel %vm2148, %v2144, 0
      %v2237 = vsel %vm2148, %v2145, 0
      %v2240 = vsel %vm2148, %v2146, 0
      %v2243 = vsel %vm2148, %v2147, 0
      %vm2245 = vcmask 1043456
      %v2247 = vsel %vm2245, %v472, 0
      %2249 = vmatprep.subr.mxu0 0.0
      %2250 = vmatpush1.msra.mxu0 0.0
      %2251 = vmatprep.subr.mxu0 0.0
      %2252 = vmatpush1.msra.mxu0 0.0
      %2253 = vmatprep.subr.mxu0 0.0
      %2254 = vmatpush1.msra.mxu0 0.0
      %2255 = vmatprep.subr.mxu0 0.0
      %2256 = vmatpush1.msra.mxu0 0.0
      %2257 = vmatprep.subr.mxu0 0.0
      %2258 = vmatpush1.msra.mxu0 0.0
      %2259 = vmatprep.subr.mxu0 0.0
      %2260 = vmatpush1.msra.mxu0 0.0
      %2261 = vmatprep.subr.mxu0 0.0
      %2262 = vmatpush1.msra.mxu0 0.0
      %2263 = vmatprep.subr.mxu0 0.0
      %2264 = vmatpush1.msra.mxu0 0.0
      %2265 = vmatprep.subr.mxu0 0.0
      %2266 = vmatpush1.msra.mxu0 0.0
      %2267 = vmatprep.subr.mxu0 0.0
      %2268 = vmatpush1.msra.mxu0 0.0
      %2269 = vmatprep.subr.mxu0 0.0
      %2270 = vmatpush1.msra.mxu0 0.0
      %2271 = vmatprep.subr.mxu0 0.0
      %2272 = vmatpush1.msra.mxu0 %v2247
      %2273 = vmatprep.subr.mxu0 0.0
      %2274 = vmatpush1.msra.mxu0 %v471
      %2275 = vmatprep.subr.mxu0 0.0
      %2276 = vmatpush1.msra.mxu0 %v470
      %2277 = vmatprep.subr.mxu0 0.0
      %2278 = vmatpush1.msra.mxu0 %v469
      %2279 = vmatprep.subr.mxu0 0.0
      %2280 = vmatpush1.msra.mxu0 %v468
      %2281 = vmatprep.subr.mxu0 0.0
      %2282 = vmatpush2.msra.mxu0 0.0
      %2283 = vmatprep.subr.mxu0 0.0
      %2284 = vmatpush2.msra.mxu0 0.0
      %2285 = vmatprep.subr.mxu0 0.0
      %2286 = vmatpush2.msra.mxu0 0.0
      %2287 = vmatprep.subr.mxu0 0.0
      %2288 = vmatpush2.msra.mxu0 0.0
      %2289 = vmatprep.subr.mxu0 0.0
      %2290 = vmatpush2.msra.mxu0 0.0
      %2291 = vmatprep.subr.mxu0 0.0
      %2292 = vmatpush2.msra.mxu0 0.0
      %2293 = vmatprep.subr.mxu0 0.0
      %2294 = vmatpush2.msra.mxu0 0.0
      %2295 = vmatprep.subr.mxu0 0.0
      %2296 = vmatpush2.msra.mxu0 0.0
      %2297 = vmatprep.subr.mxu0 0.0
      %2298 = vmatpush2.msra.mxu0 0.0
      %2299 = vmatprep.subr.mxu0 0.0
      %2300 = vmatpush2.msra.mxu0 0.0
      %2301 = vmatprep.subr.mxu0 0.0
      %2302 = vmatpush2.msra.mxu0 0.0
      %2303 = vmatprep.subr.mxu0 0.0
      %2304 = vmatpush2.msra.mxu0 0.0
      %2305 = vmatprep.subr.mxu0 0.0
      %2306 = vmatpush2.msra.mxu0 0.0
      %2307 = vmatprep.subr.mxu0 0.0
      %2308 = vmatpush2.msra.mxu0 0.0
      %2309 = vmatprep.subr.mxu0 0.0
      %2310 = vmatpush2.msra.mxu0 0.0
      %2311 = vmatprep.subr.mxu0 0.0
      %2312 = vmatpush2.msra.mxu0 0.0
      %2313 = vmatprep.mubr.f32.mxu0 0.0
      %2314 = vmatmul.mubr.f32.gmra.mxu0 %v2150
      %v2315 = vpop.f32.mrf.mxu0
      %v2316 = vadd.f32 0.0, %v2315
      %v2317 = vpop.f32.mrf.mxu0
      %2318 = vmatprep.mubr.f32.mxu0 0.0
      %2319 = vmatmul.mubr.f32.gmra.mxu0 %v2153
      %v2320 = vpop.f32.mrf.mxu0
      %v2321 = vadd.f32 0.0, %v2320
      %v2322 = vpop.f32.mrf.mxu0
      %2323 = vmatprep.mubr.f32.mxu0 0.0
      %2324 = vmatmul.mubr.f32.gmra.mxu0 %v2156
      %v2325 = vpop.f32.mrf.mxu0
      %v2326 = vadd.f32 0.0, %v2325
      %v2327 = vpop.f32.mrf.mxu0
      %2328 = vmatprep.mubr.f32.mxu0 0.0
      %2329 = vmatmul.mubr.f32.gmra.mxu0 %v2159
      %v2330 = vpop.f32.mrf.mxu0
      %v2331 = vadd.f32 0.0, %v2330
      %v2332 = vpop.f32.mrf.mxu0
      %2333 = vmatprep.mubr.f32.mxu0 0.0
      %2334 = vmatmul.mubr.f32.gmra.mxu0 %v2162
      %v2335 = vpop.f32.mrf.mxu0
      %v2336 = vadd.f32 0.0, %v2335
      %v2337 = vpop.f32.mrf.mxu0
      %2338 = vmatprep.mubr.f32.mxu0 0.0
      %2339 = vmatmul.mubr.f32.gmra.mxu0 %v2165
      %v2340 = vpop.f32.mrf.mxu0
      %v2341 = vadd.f32 0.0, %v2340
      %v2342 = vpop.f32.mrf.mxu0
      %2343 = vmatprep.mubr.f32.mxu0 0.0
      %2344 = vmatmul.mubr.f32.gmra.mxu0 %v2168
      %v2345 = vpop.f32.mrf.mxu0
      %v2346 = vadd.f32 0.0, %v2345
      %v2347 = vpop.f32.mrf.mxu0
      %2348 = vmatprep.mubr.f32.mxu0 0.0
      %2349 = vmatmul.mubr.f32.gmra.mxu0 %v2171
      %v2350 = vpop.f32.mrf.mxu0
      %v2351 = vadd.f32 0.0, %v2350
      %v2352 = vpop.f32.mrf.mxu0
      %2353 = vmatprep.mubr.f32.mxu0 0.0
      %2354 = vmatmul.mubr.f32.gmra.mxu0 %v2174
      %v2355 = vpop.f32.mrf.mxu0
      %v2356 = vadd.f32 0.0, %v2355
      %v2357 = vpop.f32.mrf.mxu0
      %2358 = vmatprep.mubr.f32.mxu0 0.0
      %2359 = vmatmul.mubr.f32.gmra.mxu0 %v2177
      %v2360 = vpop.f32.mrf.mxu0
      %v2361 = vadd.f32 0.0, %v2360
      %v2362 = vpop.f32.mrf.mxu0
      %2363 = vmatprep.mubr.f32.mxu0 0.0
      %2364 = vmatmul.mubr.f32.gmra.mxu0 %v2180
      %v2365 = vpop.f32.mrf.mxu0
      %v2366 = vadd.f32 0.0, %v2365
      %v2367 = vpop.f32.mrf.mxu0
      %2368 = vmatprep.mubr.f32.mxu0 0.0
      %2369 = vmatmul.mubr.f32.gmra.mxu0 %v2183
      %v2370 = vpop.f32.mrf.mxu0
      %v2371 = vadd.f32 0.0, %v2370
      %v2372 = vpop.f32.mrf.mxu0
      %2373 = vmatprep.mubr.f32.mxu0 0.0
      %2374 = vmatmul.mubr.f32.gmra.mxu0 %v2186
      %v2375 = vpop.f32.mrf.mxu0
      %v2376 = vadd.f32 0.0, %v2375
      %v2377 = vpop.f32.mrf.mxu0
      %2378 = vmatprep.mubr.f32.mxu0 0.0
      %2379 = vmatmul.mubr.f32.gmra.mxu0 %v2189
      %v2380 = vpop.f32.mrf.mxu0
      %v2381 = vadd.f32 0.0, %v2380
      %v2382 = vpop.f32.mrf.mxu0
      %2383 = vmatprep.mubr.f32.mxu0 0.0
      %2384 = vmatmul.mubr.f32.gmra.mxu0 %v2192
      %v2385 = vpop.f32.mrf.mxu0
      %v2386 = vadd.f32 0.0, %v2385
      %v2387 = vpop.f32.mrf.mxu0
      %2388 = vmatprep.mubr.f32.mxu0 0.0
      %2389 = vmatmul.mubr.f32.gmra.mxu0 %v2195
      %v2390 = vpop.f32.mrf.mxu0
      %v2391 = vadd.f32 0.0, %v2390
      %v2392 = vpop.f32.mrf.mxu0
      %2393 = vmatprep.mubr.f32.mxu0 0.0
      %2394 = vmatmul.mubr.f32.gmra.mxu0 %v2198
      %v2395 = vpop.f32.mrf.mxu0
      %v2396 = vadd.f32 0.0, %v2395
      %v2397 = vpop.f32.mrf.mxu0
      %2398 = vmatprep.mubr.f32.mxu0 0.0
      %2399 = vmatmul.mubr.f32.gmra.mxu0 %v2201
      %v2400 = vpop.f32.mrf.mxu0
      %v2401 = vadd.f32 0.0, %v2400
      %v2402 = vpop.f32.mrf.mxu0
      %2403 = vmatprep.mubr.f32.mxu0 0.0
      %2404 = vmatmul.mubr.f32.gmra.mxu0 %v2204
      %v2405 = vpop.f32.mrf.mxu0
      %v2406 = vadd.f32 0.0, %v2405
      %v2407 = vpop.f32.mrf.mxu0
      %2408 = vmatprep.mubr.f32.mxu0 0.0
      %2409 = vmatmul.mubr.f32.gmra.mxu0 %v2207
      %v2410 = vpop.f32.mrf.mxu0
      %v2411 = vadd.f32 0.0, %v2410
      %v2412 = vpop.f32.mrf.mxu0
      %2413 = vmatprep.mubr.f32.mxu0 0.0
      %2414 = vmatmul.mubr.f32.gmra.mxu0 %v2210
      %v2415 = vpop.f32.mrf.mxu0
      %v2416 = vadd.f32 0.0, %v2415
      %v2417 = vpop.f32.mrf.mxu0
      %2418 = vmatprep.mubr.f32.mxu0 0.0
      %2419 = vmatmul.mubr.f32.gmra.mxu0 %v2213
      %v2420 = vpop.f32.mrf.mxu0
      %v2421 = vadd.f32 0.0, %v2420
      %v2422 = vpop.f32.mrf.mxu0
      %2423 = vmatprep.mubr.f32.mxu0 0.0
      %2424 = vmatmul.mubr.f32.gmra.mxu0 %v2216
      %v2425 = vpop.f32.mrf.mxu0
      %v2426 = vadd.f32 0.0, %v2425
      %v2427 = vpop.f32.mrf.mxu0
      %2428 = vmatprep.mubr.f32.mxu0 0.0
      %2429 = vmatmul.mubr.f32.gmra.mxu0 %v2219
      %v2430 = vpop.f32.mrf.mxu0
      %v2431 = vadd.f32 0.0, %v2430
      %v2432 = vpop.f32.mrf.mxu0
      %2433 = vmatprep.mubr.f32.mxu0 0.0
      %2434 = vmatmul.mubr.f32.gmra.mxu0 %v2222
      %v2435 = vpop.f32.mrf.mxu0
      %v2436 = vadd.f32 0.0, %v2435
      %v2437 = vpop.f32.mrf.mxu0
      %2438 = vmatprep.mubr.f32.mxu0 0.0
      %2439 = vmatmul.mubr.f32.gmra.mxu0 %v2225
      %v2440 = vpop.f32.mrf.mxu0
      %v2441 = vadd.f32 0.0, %v2440
      %v2442 = vpop.f32.mrf.mxu0
      %2443 = vmatprep.mubr.f32.mxu0 0.0
      %2444 = vmatmul.mubr.f32.gmra.mxu0 %v2228
      %v2445 = vpop.f32.mrf.mxu0
      %v2446 = vadd.f32 0.0, %v2445
      %v2447 = vpop.f32.mrf.mxu0
      %2448 = vmatprep.mubr.f32.mxu0 0.0
      %2449 = vmatmul.mubr.f32.gmra.mxu0 %v2231
      %v2450 = vpop.f32.mrf.mxu0
      %v2451 = vadd.f32 0.0, %v2450
      %v2452 = vpop.f32.mrf.mxu0
      %2453 = vmatprep.mubr.f32.mxu0 0.0
      %2454 = vmatmul.mubr.f32.gmra.mxu0 %v2234
      %v2455 = vpop.f32.mrf.mxu0
      %v2456 = vadd.f32 0.0, %v2455
      %v2457 = vpop.f32.mrf.mxu0
      %2458 = vmatprep.mubr.f32.mxu0 0.0
      %2459 = vmatmul.mubr.f32.gmra.mxu0 %v2237
      %v2460 = vpop.f32.mrf.mxu0
      %v2461 = vadd.f32 0.0, %v2460
      %v2462 = vpop.f32.mrf.mxu0
      %2463 = vmatprep.mubr.f32.mxu0 0.0
      %2464 = vmatmul.mubr.f32.gmra.mxu0 %v2240
      %v2465 = vpop.f32.mrf.mxu0
      %v2466 = vadd.f32 0.0, %v2465
      %v2467 = vpop.f32.mrf.mxu0
      %2468 = vmatprep.mubr.f32.mxu0 0.0
      %2469 = vmatmul.mubr.f32.gmra.mxu0 %v2243
      %v2470 = vpop.f32.mrf.mxu0
      %v2471 = vadd.f32 0.0, %v2470
      %v2472 = vpop.f32.mrf.mxu0
      %2473 = vdwg.mxu0
      %v2474 = vadd.f32 %v2316, %v473
      %v2475 = vadd.f32 %v2321, %v474
      %v2476 = vadd.f32 %v2326, %v475
      %v2477 = vadd.f32 %v2331, %v476
      %v2478 = vadd.f32 %v2336, %v477
      %v2479 = vadd.f32 %v2341, %v478
      %v2480 = vadd.f32 %v2346, %v479
      %v2481 = vadd.f32 %v2351, %v480
      %v2482 = vadd.f32 %v2356, %v481
      %v2483 = vadd.f32 %v2361, %v482
      %v2484 = vadd.f32 %v2366, %v483
      %v2485 = vadd.f32 %v2371, %v484
      %v2486 = vadd.f32 %v2376, %v485
      %v2487 = vadd.f32 %v2381, %v486
      %v2488 = vadd.f32 %v2386, %v487
      %v2489 = vadd.f32 %v2391, %v488
      %v2490 = vadd.f32 %v2396, %v489
      %v2491 = vadd.f32 %v2401, %v490
      %v2492 = vadd.f32 %v2406, %v491
      %v2493 = vadd.f32 %v2411, %v492
      %v2494 = vadd.f32 %v2416, %v493
      %v2495 = vadd.f32 %v2421, %v494
      %v2496 = vadd.f32 %v2426, %v495
      %v2497 = vadd.f32 %v2431, %v496
      %v2498 = vadd.f32 %v2436, %v497
      %v2499 = vadd.f32 %v2441, %v498
      %v2500 = vadd.f32 %v2446, %v499
      %v2501 = vadd.f32 %v2451, %v500
      %v2502 = vadd.f32 %v2456, %v501
      %v2503 = vadd.f32 %v2461, %v502
      %v2504 = vadd.f32 %v2466, %v503
      %v2505 = vadd.f32 %v2471, %v504
      %v2506 = vsel %vm360, %v2474, 0.0
      %v2507 = vsel %vm360, %v2475, 0.0
      %v2508 = vadd.f32 %v2506, %v2507
      %v2509 = vsel %vm360, %v2476, 0.0
      %v2510 = vadd.f32 %v2508, %v2509
      %v2511 = vsel %vm360, %v2477, 0.0
      %v2512 = vadd.f32 %v2510, %v2511
      %v2513 = vsel %vm360, %v2478, 0.0
      %v2514 = vadd.f32 %v2512, %v2513
      %v2515 = vsel %vm360, %v2479, 0.0
      %v2516 = vadd.f32 %v2514, %v2515
      %v2517 = vsel %vm360, %v2480, 0.0
      %v2518 = vadd.f32 %v2516, %v2517
      %v2519 = vsel %vm360, %v2481, 0.0
      %v2520 = vadd.f32 %v2518, %v2519
      %v2521 = vsel %vm360, %v2482, 0.0
      %v2522 = vadd.f32 %v2520, %v2521
      %v2523 = vsel %vm360, %v2483, 0.0
      %v2524 = vadd.f32 %v2522, %v2523
      %v2525 = vsel %vm360, %v2484, 0.0
      %v2526 = vadd.f32 %v2524, %v2525
      %v2527 = vsel %vm360, %v2485, 0.0
      %v2528 = vadd.f32 %v2526, %v2527
      %v2529 = vsel %vm360, %v2486, 0.0
      %v2530 = vadd.f32 %v2528, %v2529
      %v2531 = vsel %vm360, %v2487, 0.0
      %v2532 = vadd.f32 %v2530, %v2531
      %v2533 = vsel %vm360, %v2488, 0.0
      %v2534 = vadd.f32 %v2532, %v2533
      %v2535 = vsel %vm360, %v2489, 0.0
      %v2536 = vadd.f32 %v2534, %v2535
      %v2537 = vsel %vm360, %v2490, 0.0
      %v2538 = vadd.f32 %v2536, %v2537
      %v2539 = vsel %vm360, %v2491, 0.0
      %v2540 = vadd.f32 %v2538, %v2539
      %v2541 = vsel %vm360, %v2492, 0.0
      %v2542 = vadd.f32 %v2540, %v2541
      %v2543 = vsel %vm360, %v2493, 0.0
      %v2544 = vadd.f32 %v2542, %v2543
      %v2545 = vsel %vm360, %v2494, 0.0
      %v2546 = vadd.f32 %v2544, %v2545
      %v2547 = vsel %vm360, %v2495, 0.0
      %v2548 = vadd.f32 %v2546, %v2547
      %v2549 = vsel %vm360, %v2496, 0.0
      %v2550 = vadd.f32 %v2548, %v2549
      %v2551 = vsel %vm360, %v2497, 0.0
      %v2552 = vadd.f32 %v2550, %v2551
      %v2553 = vsel %vm360, %v2498, 0.0
      %v2554 = vadd.f32 %v2552, %v2553
      %v2555 = vsel %vm360, %v2499, 0.0
      %v2556 = vadd.f32 %v2554, %v2555
      %v2557 = vsel %vm360, %v2500, 0.0
      %v2558 = vadd.f32 %v2556, %v2557
      %v2559 = vsel %vm360, %v2501, 0.0
      %v2560 = vadd.f32 %v2558, %v2559
      %v2561 = vsel %vm360, %v2502, 0.0
      %v2562 = vadd.f32 %v2560, %v2561
      %v2563 = vsel %vm360, %v2503, 0.0
      %v2564 = vadd.f32 %v2562, %v2563
      %v2565 = vsel %vm360, %v2504, 0.0
      %v2566 = vadd.f32 %v2564, %v2565
      %v2567 = vsel %vm360, %v2505, 0.0
      %v2568 = vadd.f32 %v2566, %v2567
      %v2569 = vrot.slane %v2568, 4
      %v2570 = vadd.f32 %v2568, %v2569
      %v2571 = vrot.slane %v2570, 2
      %v2572 = vadd.f32 %v2570, %v2571
      %v2573 = vrot.slane %v2572, 1
      %v2574 = vadd.f32 %v2572, %v2573
      %v2575 = vmul.f32 %v2474, %v2474
      %v2576 = vmul.f32 %v2475, %v2475
      %v2577 = vmul.f32 %v2476, %v2476
      %v2578 = vmul.f32 %v2477, %v2477
      %v2579 = vmul.f32 %v2478, %v2478
      %v2580 = vmul.f32 %v2479, %v2479
      %v2581 = vmul.f32 %v2480, %v2480
      %v2582 = vmul.f32 %v2481, %v2481
      %v2583 = vmul.f32 %v2482, %v2482
      %v2584 = vmul.f32 %v2483, %v2483
      %v2585 = vmul.f32 %v2484, %v2484
      %v2586 = vmul.f32 %v2485, %v2485
      %v2587 = vmul.f32 %v2486, %v2486
      %v2588 = vmul.f32 %v2487, %v2487
      %v2589 = vmul.f32 %v2488, %v2488
      %v2590 = vmul.f32 %v2489, %v2489
      %v2591 = vmul.f32 %v2490, %v2490
      %v2592 = vmul.f32 %v2491, %v2491
      %v2593 = vmul.f32 %v2492, %v2492
      %v2594 = vmul.f32 %v2493, %v2493
      %v2595 = vmul.f32 %v2494, %v2494
      %v2596 = vmul.f32 %v2495, %v2495
      %v2597 = vmul.f32 %v2496, %v2496
      %v2598 = vmul.f32 %v2497, %v2497
      %v2599 = vmul.f32 %v2498, %v2498
      %v2600 = vmul.f32 %v2499, %v2499
      %v2601 = vmul.f32 %v2500, %v2500
      %v2602 = vmul.f32 %v2501, %v2501
      %v2603 = vmul.f32 %v2502, %v2502
      %v2604 = vmul.f32 %v2503, %v2503
      %v2605 = vmul.f32 %v2504, %v2504
      %v2606 = vmul.f32 %v2505, %v2505
      %v2607 = vsel %vm360, %v2575, 0.0
      %v2608 = vsel %vm360, %v2576, 0.0
      %v2609 = vadd.f32 %v2607, %v2608
      %v2610 = vsel %vm360, %v2577, 0.0
      %v2611 = vadd.f32 %v2609, %v2610
      %v2612 = vsel %vm360, %v2578, 0.0
      %v2613 = vadd.f32 %v2611, %v2612
      %v2614 = vsel %vm360, %v2579, 0.0
      %v2615 = vadd.f32 %v2613, %v2614
      %v2616 = vsel %vm360, %v2580, 0.0
      %v2617 = vadd.f32 %v2615, %v2616
      %v2618 = vsel %vm360, %v2581, 0.0
      %v2619 = vadd.f32 %v2617, %v2618
      %v2620 = vsel %vm360, %v2582, 0.0
      %v2621 = vadd.f32 %v2619, %v2620
      %v2622 = vsel %vm360, %v2583, 0.0
      %v2623 = vadd.f32 %v2621, %v2622
      %v2624 = vsel %vm360, %v2584, 0.0
      %v2625 = vadd.f32 %v2623, %v2624
      %v2626 = vsel %vm360, %v2585, 0.0
      %v2627 = vadd.f32 %v2625, %v2626
      %v2628 = vsel %vm360, %v2586, 0.0
      %v2629 = vadd.f32 %v2627, %v2628
      %v2630 = vsel %vm360, %v2587, 0.0
      %v2631 = vadd.f32 %v2629, %v2630
      %v2632 = vsel %vm360, %v2588, 0.0
      %v2633 = vadd.f32 %v2631, %v2632
      %v2634 = vsel %vm360, %v2589, 0.0
      %v2635 = vadd.f32 %v2633, %v2634
      %v2636 = vsel %vm360, %v2590, 0.0
      %v2637 = vadd.f32 %v2635, %v2636
      %v2638 = vsel %vm360, %v2591, 0.0
      %v2639 = vadd.f32 %v2637, %v2638
      %v2640 = vsel %vm360, %v2592, 0.0
      %v2641 = vadd.f32 %v2639, %v2640
      %v2642 = vsel %vm360, %v2593, 0.0
      %v2643 = vadd.f32 %v2641, %v2642
      %v2644 = vsel %vm360, %v2594, 0.0
      %v2645 = vadd.f32 %v2643, %v2644
      %v2646 = vsel %vm360, %v2595, 0.0
      %v2647 = vadd.f32 %v2645, %v2646
      %v2648 = vsel %vm360, %v2596, 0.0
      %v2649 = vadd.f32 %v2647, %v2648
      %v2650 = vsel %vm360, %v2597, 0.0
      %v2651 = vadd.f32 %v2649, %v2650
      %v2652 = vsel %vm360, %v2598, 0.0
      %v2653 = vadd.f32 %v2651, %v2652
      %v2654 = vsel %vm360, %v2599, 0.0
      %v2655 = vadd.f32 %v2653, %v2654
      %v2656 = vsel %vm360, %v2600, 0.0
      %v2657 = vadd.f32 %v2655, %v2656
      %v2658 = vsel %vm360, %v2601, 0.0
      %v2659 = vadd.f32 %v2657, %v2658
      %v2660 = vsel %vm360, %v2602, 0.0
      %v2661 = vadd.f32 %v2659, %v2660
      %v2662 = vsel %vm360, %v2603, 0.0
      %v2663 = vadd.f32 %v2661, %v2662
      %v2664 = vsel %vm360, %v2604, 0.0
      %v2665 = vadd.f32 %v2663, %v2664
      %v2666 = vsel %vm360, %v2605, 0.0
      %v2667 = vadd.f32 %v2665, %v2666
      %v2668 = vsel %vm360, %v2606, 0.0
      %v2669 = vadd.f32 %v2667, %v2668
      %v2670 = vrot.slane %v2669, 4
      %v2671 = vadd.f32 %v2669, %v2670
      %v2672 = vrot.slane %v2671, 2
      %v2673 = vadd.f32 %v2671, %v2672
      %v2674 = vrot.slane %v2673, 1
      %v2675 = vadd.f32 %v2673, %v2674
      %v2677 = vsel %vm360, %v2574, 0
      %v2680 = vsel %vm2245, %v403, 0
      %2682 = vmatprep.subr.mxu0 0.0
      %2683 = vmatpush1.msra.mxu0 0.0
      %2684 = vmatprep.subr.mxu0 0.0
      %2685 = vmatpush1.msra.mxu0 0.0
      %2686 = vmatprep.subr.mxu0 0.0
      %2687 = vmatpush1.msra.mxu0 0.0
      %2688 = vmatprep.subr.mxu0 0.0
      %2689 = vmatpush1.msra.mxu0 0.0
      %2690 = vmatprep.subr.mxu0 0.0
      %2691 = vmatpush1.msra.mxu0 0.0
      %2692 = vmatprep.subr.mxu0 0.0
      %2693 = vmatpush1.msra.mxu0 0.0
      %2694 = vmatprep.subr.mxu0 0.0
      %2695 = vmatpush1.msra.mxu0 0.0
      %2696 = vmatprep.subr.mxu0 0.0
      %2697 = vmatpush1.msra.mxu0 0.0
      %2698 = vmatprep.subr.mxu0 0.0
      %2699 = vmatpush1.msra.mxu0 0.0
      %2700 = vmatprep.subr.mxu0 0.0
      %2701 = vmatpush1.msra.mxu0 0.0
      %2702 = vmatprep.subr.mxu0 0.0
      %2703 = vmatpush1.msra.mxu0 0.0
      %2704 = vmatprep.subr.mxu0 0.0
      %2705 = vmatpush1.msra.mxu0 0.0
      %2706 = vmatprep.subr.mxu0 0.0
      %2707 = vmatpush1.msra.mxu0 0.0
      %2708 = vmatprep.subr.mxu0 0.0
      %2709 = vmatpush1.msra.mxu0 0.0
      %2710 = vmatprep.subr.mxu0 0.0
      %2711 = vmatpush1.msra.mxu0 0.0
      %2712 = vmatprep.subr.mxu0 0.0
      %2713 = vmatpush1.msra.mxu0 %v2680
      %2714 = vmatprep.subr.mxu0 0.0
      %2715 = vmatpush2.msra.mxu0 0.0
      %2716 = vmatprep.subr.mxu0 0.0
      %2717 = vmatpush2.msra.mxu0 0.0
      %2718 = vmatprep.subr.mxu0 0.0
      %2719 = vmatpush2.msra.mxu0 0.0
      %2720 = vmatprep.subr.mxu0 0.0
      %2721 = vmatpush2.msra.mxu0 0.0
      %2722 = vmatprep.subr.mxu0 0.0
      %2723 = vmatpush2.msra.mxu0 0.0
      %2724 = vmatprep.subr.mxu0 0.0
      %2725 = vmatpush2.msra.mxu0 0.0
      %2726 = vmatprep.subr.mxu0 0.0
      %2727 = vmatpush2.msra.mxu0 0.0
      %2728 = vmatprep.subr.mxu0 0.0
      %2729 = vmatpush2.msra.mxu0 0.0
      %2730 = vmatprep.subr.mxu0 0.0
      %2731 = vmatpush2.msra.mxu0 0.0
      %2732 = vmatprep.subr.mxu0 0.0
      %2733 = vmatpush2.msra.mxu0 0.0
      %2734 = vmatprep.subr.mxu0 0.0
      %2735 = vmatpush2.msra.mxu0 0.0
      %2736 = vmatprep.subr.mxu0 0.0
      %2737 = vmatpush2.msra.mxu0 0.0
      %2738 = vmatprep.subr.mxu0 0.0
      %2739 = vmatpush2.msra.mxu0 0.0
      %2740 = vmatprep.subr.mxu0 0.0
      %2741 = vmatpush2.msra.mxu0 0.0
      %2742 = vmatprep.subr.mxu0 0.0
      %2743 = vmatpush2.msra.mxu0 0.0
      %2744 = vmatprep.subr.mxu0 0.0
      %2745 = vmatpush2.msra.mxu0 0.0
      %2746 = vmatprep.mubr.f32.mxu0 0.0
      %2747 = vmatmul.mubr.f32.gmra.mxu0 %v2677
      %v2748 = vpop.f32.mrf.mxu0
      %v2749 = vadd.f32 0.0, %v2748
      %v2750 = vpop.f32.mrf.mxu0
      %2751 = vdwg.mxu0
      %v2753 = vsel %vm360, %v2675, 0
      %2755 = vmatprep.subr.mxu0 0.0
      %2756 = vmatpush1.msra.mxu0 0.0
      %2757 = vmatprep.subr.mxu0 0.0
      %2758 = vmatpush1.msra.mxu0 0.0
      %2759 = vmatprep.subr.mxu0 0.0
      %2760 = vmatpush1.msra.mxu0 0.0
      %2761 = vmatprep.subr.mxu0 0.0
      %2762 = vmatpush1.msra.mxu0 0.0
      %2763 = vmatprep.subr.mxu0 0.0
      %2764 = vmatpush1.msra.mxu0 0.0
      %2765 = vmatprep.subr.mxu0 0.0
      %2766 = vmatpush1.msra.mxu0 0.0
      %2767 = vmatprep.subr.mxu0 0.0
      %2768 = vmatpush1.msra.mxu0 0.0
      %2769 = vmatprep.subr.mxu0 0.0
      %2770 = vmatpush1.msra.mxu0 0.0
      %2771 = vmatprep.subr.mxu0 0.0
      %2772 = vmatpush1.msra.mxu0 0.0
      %2773 = vmatprep.subr.mxu0 0.0
      %2774 = vmatpush1.msra.mxu0 0.0
      %2775 = vmatprep.subr.mxu0 0.0
      %2776 = vmatpush1.msra.mxu0 0.0
      %2777 = vmatprep.subr.mxu0 0.0
      %2778 = vmatpush1.msra.mxu0 0.0
      %2779 = vmatprep.subr.mxu0 0.0
      %2780 = vmatpush1.msra.mxu0 0.0
      %2781 = vmatprep.subr.mxu0 0.0
      %2782 = vmatpush1.msra.mxu0 0.0
      %2783 = vmatprep.subr.mxu0 0.0
      %2784 = vmatpush1.msra.mxu0 0.0
      %2785 = vmatprep.subr.mxu0 0.0
      %2786 = vmatpush1.msra.mxu0 %v2680
      %2787 = vmatprep.subr.mxu0 0.0
      %2788 = vmatpush2.msra.mxu0 0.0
      %2789 = vmatprep.subr.mxu0 0.0
      %2790 = vmatpush2.msra.mxu0 0.0
      %2791 = vmatprep.subr.mxu0 0.0
      %2792 = vmatpush2.msra.mxu0 0.0
      %2793 = vmatprep.subr.mxu0 0.0
      %2794 = vmatpush2.msra.mxu0 0.0
      %2795 = vmatprep.subr.mxu0 0.0
      %2796 = vmatpush2.msra.mxu0 0.0
      %2797 = vmatprep.subr.mxu0 0.0
      %2798 = vmatpush2.msra.mxu0 0.0
      %2799 = vmatprep.subr.mxu0 0.0
      %2800 = vmatpush2.msra.mxu0 0.0
      %2801 = vmatprep.subr.mxu0 0.0
      %2802 = vmatpush2.msra.mxu0 0.0
      %2803 = vmatprep.subr.mxu0 0.0
      %2804 = vmatpush2.msra.mxu0 0.0
      %2805 = vmatprep.subr.mxu0 0.0
      %2806 = vmatpush2.msra.mxu0 0.0
      %2807 = vmatprep.subr.mxu0 0.0
      %2808 = vmatpush2.msra.mxu0 0.0
      %2809 = vmatprep.subr.mxu0 0.0
      %2810 = vmatpush2.msra.mxu0 0.0
      %2811 = vmatprep.subr.mxu0 0.0
      %2812 = vmatpush2.msra.mxu0 0.0
      %2813 = vmatprep.subr.mxu0 0.0
      %2814 = vmatpush2.msra.mxu0 0.0
      %2815 = vmatprep.subr.mxu0 0.0
      %2816 = vmatpush2.msra.mxu0 0.0
      %2817 = vmatprep.subr.mxu0 0.0
      %2818 = vmatpush2.msra.mxu0 0.0
      %2819 = vmatprep.mubr.f32.mxu0 0.0
      %2820 = vmatmul.mubr.f32.gmra.mxu0 %v2753
      %v2821 = vpop.f32.mrf.mxu0
      %v2822 = vadd.f32 0.0, %v2821
      %v2823 = vpop.f32.mrf.mxu0
      %2824 = vdwg.mxu0
      %v2825 = vmul.f32 %v2749, %v2749
      %v2826 = vsub.f32 %v2822, %v2825
      %v2827 = vadd.f32 %v2826, 1e-05
      %v2828 = vrsqrt.pop %v2827
      %v2829 = vmul.f32 %v2828, %v505
      %v2830 = vlaneseq
      %v2831 = vshrl.u32 %v2830, 7
      %v2832 = vsub.s32 0, %v2831
      %v2833 = vrot.slane %v2749, %v2832
      %v2834 = vsub.f32 %v2474, %v2833
      %v2835 = vsub.f32 %v2475, %v2833
      %v2836 = vsub.f32 %v2476, %v2833
      %v2837 = vsub.f32 %v2477, %v2833
      %v2838 = vsub.f32 %v2478, %v2833
      %v2839 = vsub.f32 %v2479, %v2833
      %v2840 = vsub.f32 %v2480, %v2833
      %v2841 = vsub.f32 %v2481, %v2833
      %v2842 = vsub.f32 %v2482, %v2833
      %v2843 = vsub.f32 %v2483, %v2833
      %v2844 = vsub.f32 %v2484, %v2833
      %v2845 = vsub.f32 %v2485, %v2833
      %v2846 = vsub.f32 %v2486, %v2833
      %v2847 = vsub.f32 %v2487, %v2833
      %v2848 = vsub.f32 %v2488, %v2833
      %v2849 = vsub.f32 %v2489, %v2833
      %v2850 = vsub.f32 %v2490, %v2833
      %v2851 = vsub.f32 %v2491, %v2833
      %v2852 = vsub.f32 %v2492, %v2833
      %v2853 = vsub.f32 %v2493, %v2833
      %v2854 = vsub.f32 %v2494, %v2833
      %v2855 = vsub.f32 %v2495, %v2833
      %v2856 = vsub.f32 %v2496, %v2833
      %v2857 = vsub.f32 %v2497, %v2833
      %v2858 = vsub.f32 %v2498, %v2833
      %v2859 = vsub.f32 %v2499, %v2833
      %v2860 = vsub.f32 %v2500, %v2833
      %v2861 = vsub.f32 %v2501, %v2833
      %v2862 = vsub.f32 %v2502, %v2833
      %v2863 = vsub.f32 %v2503, %v2833
      %v2864 = vsub.f32 %v2504, %v2833
      %v2865 = vsub.f32 %v2505, %v2833
      %v2866 = vlaneseq
      %v2867 = vshrl.u32 %v2866, 7
      %v2868 = vsub.s32 0, %v2867
      %v2869 = vrot.slane %v2829, %v2868
      %v2870 = vmul.f32 %v2834, %v2869
      %v2871 = vmul.f32 %v2835, %v2869
      %v2872 = vmul.f32 %v2836, %v2869
      %v2873 = vmul.f32 %v2837, %v2869
      %v2874 = vmul.f32 %v2838, %v2869
      %v2875 = vmul.f32 %v2839, %v2869
      %v2876 = vmul.f32 %v2840, %v2869
      %v2877 = vmul.f32 %v2841, %v2869
      %v2878 = vmul.f32 %v2842, %v2869
      %v2879 = vmul.f32 %v2843, %v2869
      %v2880 = vmul.f32 %v2844, %v2869
      %v2881 = vmul.f32 %v2845, %v2869
      %v2882 = vmul.f32 %v2846, %v2869
      %v2883 = vmul.f32 %v2847, %v2869
      %v2884 = vmul.f32 %v2848, %v2869
      %v2885 = vmul.f32 %v2849, %v2869
      %v2886 = vmul.f32 %v2850, %v2869
      %v2887 = vmul.f32 %v2851, %v2869
      %v2888 = vmul.f32 %v2852, %v2869
      %v2889 = vmul.f32 %v2853, %v2869
      %v2890 = vmul.f32 %v2854, %v2869
      %v2891 = vmul.f32 %v2855, %v2869
      %v2892 = vmul.f32 %v2856, %v2869
      %v2893 = vmul.f32 %v2857, %v2869
      %v2894 = vmul.f32 %v2858, %v2869
      %v2895 = vmul.f32 %v2859, %v2869
      %v2896 = vmul.f32 %v2860, %v2869
      %v2897 = vmul.f32 %v2861, %v2869
      %v2898 = vmul.f32 %v2862, %v2869
      %v2899 = vmul.f32 %v2863, %v2869
      %v2900 = vmul.f32 %v2864, %v2869
      %v2901 = vmul.f32 %v2865, %v2869
      %v2903 = vlaneseq
      %v2904 = vshrl.u32 %v2903, 7
      %v2905 = vsub.s32 0, %v2904
      %v2906 = vrot.slane %v506, %v2905
      %v2908 = vadd.f32 %v2870, %v2906
      %v2909 = vadd.f32 %v2871, %v2906
      %v2910 = vadd.f32 %v2872, %v2906
      %v2911 = vadd.f32 %v2873, %v2906
      %v2912 = vadd.f32 %v2874, %v2906
      %v2913 = vadd.f32 %v2875, %v2906
      %v2914 = vadd.f32 %v2876, %v2906
      %v2915 = vadd.f32 %v2877, %v2906
      %v2916 = vadd.f32 %v2878, %v2906
      %v2917 = vadd.f32 %v2879, %v2906
      %v2918 = vadd.f32 %v2880, %v2906
      %v2919 = vadd.f32 %v2881, %v2906
      %v2920 = vadd.f32 %v2882, %v2906
      %v2921 = vadd.f32 %v2883, %v2906
      %v2922 = vadd.f32 %v2884, %v2906
      %v2923 = vadd.f32 %v2885, %v2906
      %v2924 = vadd.f32 %v2886, %v2906
      %v2925 = vadd.f32 %v2887, %v2906
      %v2926 = vadd.f32 %v2888, %v2906
      %v2927 = vadd.f32 %v2889, %v2906
      %v2928 = vadd.f32 %v2890, %v2906
      %v2929 = vadd.f32 %v2891, %v2906
      %v2930 = vadd.f32 %v2892, %v2906
      %v2931 = vadd.f32 %v2893, %v2906
      %v2932 = vadd.f32 %v2894, %v2906
      %v2933 = vadd.f32 %v2895, %v2906
      %v2934 = vadd.f32 %v2896, %v2906
      %v2935 = vadd.f32 %v2897, %v2906
      %v2936 = vadd.f32 %v2898, %v2906
      %v2937 = vadd.f32 %v2899, %v2906
      %v2938 = vadd.f32 %v2900, %v2906
      %v2939 = vadd.f32 %v2901, %v2906
      %v2940 = vmax.f32 %v2908, 0.0
      %v2941 = vmax.f32 %v2909, 0.0
      %v2942 = vmax.f32 %v2910, 0.0
      %v2943 = vmax.f32 %v2911, 0.0
      %v2944 = vmax.f32 %v2912, 0.0
      %v2945 = vmax.f32 %v2913, 0.0
      %v2946 = vmax.f32 %v2914, 0.0
      %v2947 = vmax.f32 %v2915, 0.0
      %v2948 = vmax.f32 %v2916, 0.0
      %v2949 = vmax.f32 %v2917, 0.0
      %v2950 = vmax.f32 %v2918, 0.0
      %v2951 = vmax.f32 %v2919, 0.0
      %v2952 = vmax.f32 %v2920, 0.0
      %v2953 = vmax.f32 %v2921, 0.0
      %v2954 = vmax.f32 %v2922, 0.0
      %v2955 = vmax.f32 %v2923, 0.0
      %v2956 = vmax.f32 %v2924, 0.0
      %v2957 = vmax.f32 %v2925, 0.0
      %v2958 = vmax.f32 %v2926, 0.0
      %v2959 = vmax.f32 %v2927, 0.0
      %v2960 = vmax.f32 %v2928, 0.0
      %v2961 = vmax.f32 %v2929, 0.0
      %v2962 = vmax.f32 %v2930, 0.0
      %v2963 = vmax.f32 %v2931, 0.0
      %v2964 = vmax.f32 %v2932, 0.0
      %v2965 = vmax.f32 %v2933, 0.0
      %v2966 = vmax.f32 %v2934, 0.0
      %v2967 = vmax.f32 %v2935, 0.0
      %v2968 = vmax.f32 %v2936, 0.0
      %v2969 = vmax.f32 %v2937, 0.0
      %v2970 = vmax.f32 %v2938, 0.0
      %v2971 = vmax.f32 %v2939, 0.0
      %2972 = vst.msk [vmem:[%s369 + $0x1] sm:$0xff] %vm360, %v2940
      %2973 = vst.msk [vmem:[%s369 + $0x9] sm:$0xff] %vm360, %v2941
      %2974 = vst.msk [vmem:[%s369 + $0x19] sm:$0xff] %vm360, %v2942
      %2975 = vst.msk [vmem:[%s369 + $0x21] sm:$0xff] %vm360, %v2943
      %2976 = vst.msk [vmem:[%s369 + $0x31] sm:$0xff] %vm360, %v2944
      %2977 = vst.msk [vmem:[%s369 + $0x39] sm:$0xff] %vm360, %v2945
      %2978 = vst.msk [vmem:[%s369 + $0x49] sm:$0xff] %vm360, %v2946
      %2979 = vst.msk [vmem:[%s369 + $0x51] sm:$0xff] %vm360, %v2947
      %2980 = vst.msk [vmem:[%s369 + $0x61] sm:$0xff] %vm360, %v2948
      %2981 = vst.msk [vmem:[%s369 + $0x69] sm:$0xff] %vm360, %v2949
      %2982 = vst.msk [vmem:[%s369 + $0x79] sm:$0xff] %vm360, %v2950
      %2983 = vst.msk [vmem:[%s369 + $0x81] sm:$0xff] %vm360, %v2951
      %2984 = vst.msk [vmem:[%s369 + $0x91] sm:$0xff] %vm360, %v2952
      %2985 = vst.msk [vmem:[%s369 + $0x99] sm:$0xff] %vm360, %v2953
      %2986 = vst.msk [vmem:[%s369 + $0xa9] sm:$0xff] %vm360, %v2954
      %2987 = vst.msk [vmem:[%s369 + $0xb1] sm:$0xff] %vm360, %v2955
      %2988 = vst.msk [vmem:[%s369 + $0xc1] sm:$0xff] %vm360, %v2956
      %2989 = vst.msk [vmem:[%s369 + $0xc9] sm:$0xff] %vm360, %v2957
      %2990 = vst.msk [vmem:[%s369 + $0xd9] sm:$0xff] %vm360, %v2958
      %2991 = vst.msk [vmem:[%s369 + $0xe1] sm:$0xff] %vm360, %v2959
      %2992 = vst.msk [vmem:[%s369 + $0xf1] sm:$0xff] %vm360, %v2960
      %2993 = vst.msk [vmem:[%s369 + $0xf9] sm:$0xff] %vm360, %v2961
      %2994 = vst.msk [vmem:[%s369 + $0x109] sm:$0xff] %vm360, %v2962
      %2995 = vst.msk [vmem:[%s369 + $0x111] sm:$0xff] %vm360, %v2963
      %2996 = vst.msk [vmem:[%s369 + $0x121] sm:$0xff] %vm360, %v2964
      %2997 = vst.msk [vmem:[%s369 + $0x129] sm:$0xff] %vm360, %v2965
      %2998 = vst.msk [vmem:[%s369 + $0x139] sm:$0xff] %vm360, %v2966
      %2999 = vst.msk [vmem:[%s369 + $0x141] sm:$0xff] %vm360, %v2967
      %3000 = vst.msk [vmem:[%s369 + $0x151] sm:$0xff] %vm360, %v2968
      %3001 = vst.msk [vmem:[%s369 + $0x159] sm:$0xff] %vm360, %v2969
      %3002 = vst.msk [vmem:[%s369 + $0x169] sm:$0xff] %vm360, %v2970
      %3003 = vst.msk [vmem:[%s369 + $0x171] sm:$0xff] %vm360, %v2971
      %v3004 = vld [vmem:[%s5] sm:$0xff]
      %v3005 = vld [vmem:[%s5 + $0x8] sm:$0xff]
      %v3006 = vld [vmem:[%s5 + $0x10] sm:$0xff]
      %v3007 = vld [vmem:[%s5 + $0x18] sm:$0xff]
      %v3008 = vld [vmem:[%s5 + $0x20] sm:$0xf]
      %v3009 = vld [vmem:[%s6] sm:$0xff]
      %v3010 = vld [vmem:[%s6 + $0x8] sm:$0xff]
      %v3011 = vld [vmem:[%s6 + $0x10] sm:$0xff]
      %v3012 = vld [vmem:[%s6 + $0x18] sm:$0xff]
      %v3013 = vld [vmem:[%s6 + $0x20] sm:$0xff]
      %v3014 = vld [vmem:[%s6 + $0x28] sm:$0xff]
      %v3015 = vld [vmem:[%s6 + $0x30] sm:$0xff]
      %v3016 = vld [vmem:[%s6 + $0x38] sm:$0xff]
      %v3017 = vld [vmem:[%s6 + $0x40] sm:$0xff]
      %v3018 = vld [vmem:[%s6 + $0x48] sm:$0xff]
      %v3019 = vld [vmem:[%s6 + $0x50] sm:$0xff]
      %v3020 = vld [vmem:[%s6 + $0x58] sm:$0xff]
      %v3021 = vld [vmem:[%s6 + $0x60] sm:$0xff]
      %v3022 = vld [vmem:[%s6 + $0x68] sm:$0xff]
      %v3023 = vld [vmem:[%s6 + $0x70] sm:$0xff]
      %v3024 = vld [vmem:[%s6 + $0x78] sm:$0xff]
      %v3025 = vld [vmem:[%s6 + $0x80] sm:$0xff]
      %v3026 = vld [vmem:[%s6 + $0x88] sm:$0xff]
      %v3027 = vld [vmem:[%s6 + $0x90] sm:$0xff]
      %v3028 = vld [vmem:[%s6 + $0x98] sm:$0xff]
      %v3029 = vld [vmem:[%s6 + $0xa0] sm:$0xff]
      %v3030 = vld [vmem:[%s6 + $0xa8] sm:$0xff]
      %v3031 = vld [vmem:[%s6 + $0xb0] sm:$0xff]
      %v3032 = vld [vmem:[%s6 + $0xb8] sm:$0xff]
      %v3033 = vld [vmem:[%s6 + $0xc0] sm:$0xff]
      %v3034 = vld [vmem:[%s6 + $0xc8] sm:$0xff]
      %v3035 = vld [vmem:[%s6 + $0xd0] sm:$0xff]
      %v3036 = vld [vmem:[%s6 + $0xd8] sm:$0xff]
      %v3037 = vld [vmem:[%s6 + $0xe0] sm:$0xff]
      %v3038 = vld [vmem:[%s6 + $0xe8] sm:$0xff]
      %v3039 = vld [vmem:[%s6 + $0xf0] sm:$0xff]
      %v3040 = vld [vmem:[%s6 + $0xf8] sm:$0xff]
      %v3041 = vld [vmem:[%s7] sm:$0x1]
      %v3042 = vld [vmem:[%s8] sm:$0x1]
      %v3043 = vld [vmem:[#allocation2] sm:$0xff]
      %v3044 = vld [vmem:[#allocation2 + $0x8] sm:$0xff]
      %v3045 = vld [vmem:[#allocation2 + $0x18] sm:$0xff]
      %v3046 = vld [vmem:[#allocation2 + $0x20] sm:$0xff]
      %v3047 = vld [vmem:[#allocation2 + $0x30] sm:$0xff]
      %v3048 = vld [vmem:[#allocation2 + $0x38] sm:$0xff]
      %v3049 = vld [vmem:[#allocation2 + $0x48] sm:$0xff]
      %v3050 = vld [vmem:[#allocation2 + $0x50] sm:$0xff]
      %v3051 = vld [vmem:[#allocation2 + $0x60] sm:$0xff]
      %v3052 = vld [vmem:[#allocation2 + $0x68] sm:$0xff]
      %v3053 = vld [vmem:[#allocation2 + $0x78] sm:$0xff]
      %v3054 = vld [vmem:[#allocation2 + $0x80] sm:$0xff]
      %v3055 = vld [vmem:[#allocation2 + $0x90] sm:$0xff]
      %v3056 = vld [vmem:[#allocation2 + $0x98] sm:$0xff]
      %v3057 = vld [vmem:[#allocation2 + $0xa8] sm:$0xff]
      %v3058 = vld [vmem:[#allocation2 + $0xb0] sm:$0xff]
      %v3059 = vld [vmem:[#allocation2 + $0xc0] sm:$0xff]
      %v3060 = vld [vmem:[#allocation2 + $0xc8] sm:$0xff]
      %v3061 = vld [vmem:[#allocation2 + $0xd8] sm:$0xff]
      %v3062 = vld [vmem:[#allocation2 + $0xe0] sm:$0xff]
      %v3063 = vld [vmem:[#allocation2 + $0xf0] sm:$0xff]
      %v3064 = vld [vmem:[#allocation2 + $0xf8] sm:$0xff]
      %v3065 = vld [vmem:[#allocation2 + $0x108] sm:$0xff]
      %v3066 = vld [vmem:[#allocation2 + $0x110] sm:$0xff]
      %v3067 = vld [vmem:[#allocation2 + $0x120] sm:$0xff]
      %v3068 = vld [vmem:[#allocation2 + $0x128] sm:$0xff]
      %v3069 = vld [vmem:[#allocation2 + $0x138] sm:$0xff]
      %v3070 = vld [vmem:[#allocation2 + $0x140] sm:$0xff]
      %v3071 = vld [vmem:[#allocation2 + $0x150] sm:$0xff]
      %v3072 = vld [vmem:[#allocation2 + $0x158] sm:$0xff]
      %v3073 = vld [vmem:[#allocation2 + $0x168] sm:$0xff]
      %v3074 = vld [vmem:[#allocation2 + $0x170] sm:$0xff]
      %3075 = vst.msk [vmem:[#allocation3] sm:$0xff] %vm360, %v3043
      %3076 = vst.msk [vmem:[#allocation3 + $0x8] sm:$0xff] %vm360, %v3044
      %3077 = vst.msk [vmem:[#allocation3 + $0x10] sm:$0xff] %vm360, %v3045
      %3078 = vst.msk [vmem:[#allocation3 + $0x18] sm:$0xff] %vm360, %v3046
      %3079 = vst.msk [vmem:[#allocation3 + $0x20] sm:$0xff] %vm360, %v3047
      %3080 = vst.msk [vmem:[#allocation3 + $0x28] sm:$0xff] %vm360, %v3048
      %3081 = vst.msk [vmem:[#allocation3 + $0x30] sm:$0xff] %vm360, %v3049
      %3082 = vst.msk [vmem:[#allocation3 + $0x38] sm:$0xff] %vm360, %v3050
      %3083 = vst.msk [vmem:[#allocation3 + $0x40] sm:$0xff] %vm360, %v3051
      %3084 = vst.msk [vmem:[#allocation3 + $0x48] sm:$0xff] %vm360, %v3052
      %3085 = vst.msk [vmem:[#allocation3 + $0x50] sm:$0xff] %vm360, %v3053
      %3086 = vst.msk [vmem:[#allocation3 + $0x58] sm:$0xff] %vm360, %v3054
      %3087 = vst.msk [vmem:[#allocation3 + $0x60] sm:$0xff] %vm360, %v3055
      %3088 = vst.msk [vmem:[#allocation3 + $0x68] sm:$0xff] %vm360, %v3056
      %3089 = vst.msk [vmem:[#allocation3 + $0x70] sm:$0xff] %vm360, %v3057
      %3090 = vst.msk [vmem:[#allocation3 + $0x78] sm:$0xff] %vm360, %v3058
      %3091 = vst.msk [vmem:[#allocation3 + $0x80] sm:$0xff] %vm360, %v3059
      %3092 = vst.msk [vmem:[#allocation3 + $0x88] sm:$0xff] %vm360, %v3060
      %3093 = vst.msk [vmem:[#allocation3 + $0x90] sm:$0xff] %vm360, %v3061
      %3094 = vst.msk [vmem:[#allocation3 + $0x98] sm:$0xff] %vm360, %v3062
      %3095 = vst.msk [vmem:[#allocation3 + $0xa0] sm:$0xff] %vm360, %v3063
      %3096 = vst.msk [vmem:[#allocation3 + $0xa8] sm:$0xff] %vm360, %v3064
      %3097 = vst.msk [vmem:[#allocation3 + $0xb0] sm:$0xff] %vm360, %v3065
      %3098 = vst.msk [vmem:[#allocation3 + $0xb8] sm:$0xff] %vm360, %v3066
      %3099 = vst.msk [vmem:[#allocation3 + $0xc0] sm:$0xff] %vm360, %v3067
      %3100 = vst.msk [vmem:[#allocation3 + $0xc8] sm:$0xff] %vm360, %v3068
      %3101 = vst.msk [vmem:[#allocation3 + $0xd0] sm:$0xff] %vm360, %v3069
      %3102 = vst.msk [vmem:[#allocation3 + $0xd8] sm:$0xff] %vm360, %v3070
      %3103 = vst.msk [vmem:[#allocation3 + $0xe0] sm:$0xff] %vm360, %v3071
      %3104 = vst.msk [vmem:[#allocation3 + $0xe8] sm:$0xff] %vm360, %v3072
      %3105 = vst.msk [vmem:[#allocation3 + $0xf0] sm:$0xff] %vm360, %v3073
      %3106 = vst.msk [vmem:[#allocation3 + $0xf8] sm:$0xff] %vm360, %v3074
      %v3107 = vld [vmem:[#allocation2 + $0x1] sm:$0xff]
      %v3108 = vld [vmem:[#allocation2 + $0x9] sm:$0xff]
      %v3109 = vld [vmem:[#allocation2 + $0x19] sm:$0xff]
      %v3110 = vld [vmem:[#allocation2 + $0x21] sm:$0xff]
      %v3111 = vld [vmem:[#allocation2 + $0x31] sm:$0xff]
      %v3112 = vld [vmem:[#allocation2 + $0x39] sm:$0xff]
      %v3113 = vld [vmem:[#allocation2 + $0x49] sm:$0xff]
      %v3114 = vld [vmem:[#allocation2 + $0x51] sm:$0xff]
      %v3115 = vld [vmem:[#allocation2 + $0x61] sm:$0xff]
      %v3116 = vld [vmem:[#allocation2 + $0x69] sm:$0xff]
      %v3117 = vld [vmem:[#allocation2 + $0x79] sm:$0xff]
      %v3118 = vld [vmem:[#allocation2 + $0x81] sm:$0xff]
      %v3119 = vld [vmem:[#allocation2 + $0x91] sm:$0xff]
      %v3120 = vld [vmem:[#allocation2 + $0x99] sm:$0xff]
      %v3121 = vld [vmem:[#allocation2 + $0xa9] sm:$0xff]
      %v3122 = vld [vmem:[#allocation2 + $0xb1] sm:$0xff]
      %v3123 = vld [vmem:[#allocation2 + $0xc1] sm:$0xff]
      %v3124 = vld [vmem:[#allocation2 + $0xc9] sm:$0xff]
      %v3125 = vld [vmem:[#allocation2 + $0xd9] sm:$0xff]
      %v3126 = vld [vmem:[#allocation2 + $0xe1] sm:$0xff]
      %v3127 = vld [vmem:[#allocation2 + $0xf1] sm:$0xff]
      %v3128 = vld [vmem:[#allocation2 + $0xf9] sm:$0xff]
      %v3129 = vld [vmem:[#allocation2 + $0x109] sm:$0xff]
      %v3130 = vld [vmem:[#allocation2 + $0x111] sm:$0xff]
      %v3131 = vld [vmem:[#allocation2 + $0x121] sm:$0xff]
      %v3132 = vld [vmem:[#allocation2 + $0x129] sm:$0xff]
      %v3133 = vld [vmem:[#allocation2 + $0x139] sm:$0xff]
      %v3134 = vld [vmem:[#allocation2 + $0x141] sm:$0xff]
      %v3135 = vld [vmem:[#allocation2 + $0x151] sm:$0xff]
      %v3136 = vld [vmem:[#allocation2 + $0x159] sm:$0xff]
      %v3137 = vld [vmem:[#allocation2 + $0x169] sm:$0xff]
      %v3138 = vld [vmem:[#allocation2 + $0x171] sm:$0xff]
      %3171 = vrot.lane.b32.xlu0 %v3107, 4
      %v3172 = vpop.permute.xlu0 %3171
      %3173 = vrot.lane.b32.xlu0 %v3108, 4
      %v3174 = vpop.permute.xlu0 %3173
      %3175 = vrot.lane.b32.xlu0 %v3109, 4
      %v3176 = vpop.permute.xlu0 %3175
      %3177 = vrot.lane.b32.xlu0 %v3110, 4
      %v3178 = vpop.permute.xlu0 %3177
      %3179 = vrot.lane.b32.xlu0 %v3111, 4
      %v3180 = vpop.permute.xlu0 %3179
      %3181 = vrot.lane.b32.xlu0 %v3112, 4
      %v3182 = vpop.permute.xlu0 %3181
      %3183 = vrot.lane.b32.xlu0 %v3113, 4
      %v3184 = vpop.permute.xlu0 %3183
      %3185 = vrot.lane.b32.xlu0 %v3114, 4
      %v3186 = vpop.permute.xlu0 %3185
      %3187 = vrot.lane.b32.xlu0 %v3115, 4
      %v3188 = vpop.permute.xlu0 %3187
      %3189 = vrot.lane.b32.xlu0 %v3116, 4
      %v3190 = vpop.permute.xlu0 %3189
      %3191 = vrot.lane.b32.xlu0 %v3117, 4
      %v3192 = vpop.permute.xlu0 %3191
      %3193 = vrot.lane.b32.xlu0 %v3118, 4
      %v3194 = vpop.permute.xlu0 %3193
      %3195 = vrot.lane.b32.xlu0 %v3119, 4
      %v3196 = vpop.permute.xlu0 %3195
      %3197 = vrot.lane.b32.xlu0 %v3120, 4
      %v3198 = vpop.permute.xlu0 %3197
      %3199 = vrot.lane.b32.xlu0 %v3121, 4
      %v3200 = vpop.permute.xlu0 %3199
      %3201 = vrot.lane.b32.xlu0 %v3122, 4
      %v3202 = vpop.permute.xlu0 %3201
      %3203 = vrot.lane.b32.xlu0 %v3123, 4
      %v3204 = vpop.permute.xlu0 %3203
      %3205 = vrot.lane.b32.xlu0 %v3124, 4
      %v3206 = vpop.permute.xlu0 %3205
      %3207 = vrot.lane.b32.xlu0 %v3125, 4
      %v3208 = vpop.permute.xlu0 %3207
      %3209 = vrot.lane.b32.xlu0 %v3126, 4
      %v3210 = vpop.permute.xlu0 %3209
      %3211 = vrot.lane.b32.xlu0 %v3127, 4
      %v3212 = vpop.permute.xlu0 %3211
      %3213 = vrot.lane.b32.xlu0 %v3128, 4
      %v3214 = vpop.permute.xlu0 %3213
      %3215 = vrot.lane.b32.xlu0 %v3129, 4
      %v3216 = vpop.permute.xlu0 %3215
      %3217 = vrot.lane.b32.xlu0 %v3130, 4
      %v3218 = vpop.permute.xlu0 %3217
      %3219 = vrot.lane.b32.xlu0 %v3131, 4
      %v3220 = vpop.permute.xlu0 %3219
      %3221 = vrot.lane.b32.xlu0 %v3132, 4
      %v3222 = vpop.permute.xlu0 %3221
      %3223 = vrot.lane.b32.xlu0 %v3133, 4
      %v3224 = vpop.permute.xlu0 %3223
      %3225 = vrot.lane.b32.xlu0 %v3134, 4
      %v3226 = vpop.permute.xlu0 %3225
      %3227 = vrot.lane.b32.xlu0 %v3135, 4
      %v3228 = vpop.permute.xlu0 %3227
      %3229 = vrot.lane.b32.xlu0 %v3136, 4
      %v3230 = vpop.permute.xlu0 %3229
      %3231 = vrot.lane.b32.xlu0 %v3137, 4
      %v3232 = vpop.permute.xlu0 %3231
      %3233 = vrot.lane.b32.xlu0 %v3138, 4
      %v3234 = vpop.permute.xlu0 %3233
      %3267 = vst.msk [vmem:[#allocation3] sm:$0xff] %vm731, %v3172
      %3268 = vst.msk [vmem:[#allocation3 + $0x8] sm:$0xff] %vm731, %v3174
      %3269 = vst.msk [vmem:[#allocation3 + $0x10] sm:$0xff] %vm731, %v3176
      %3270 = vst.msk [vmem:[#allocation3 + $0x18] sm:$0xff] %vm731, %v3178
      %3271 = vst.msk [vmem:[#allocation3 + $0x20] sm:$0xff] %vm731, %v3180
      %3272 = vst.msk [vmem:[#allocation3 + $0x28] sm:$0xff] %vm731, %v3182
      %3273 = vst.msk [vmem:[#allocation3 + $0x30] sm:$0xff] %vm731, %v3184
      %3274 = vst.msk [vmem:[#allocation3 + $0x38] sm:$0xff] %vm731, %v3186
      %3275 = vst.msk [vmem:[#allocation3 + $0x40] sm:$0xff] %vm731, %v3188
      %3276 = vst.msk [vmem:[#allocation3 + $0x48] sm:$0xff] %vm731, %v3190
      %3277 = vst.msk [vmem:[#allocation3 + $0x50] sm:$0xff] %vm731, %v3192
      %3278 = vst.msk [vmem:[#allocation3 + $0x58] sm:$0xff] %vm731, %v3194
      %3279 = vst.msk [vmem:[#allocation3 + $0x60] sm:$0xff] %vm731, %v3196
      %3280 = vst.msk [vmem:[#allocation3 + $0x68] sm:$0xff] %vm731, %v3198
      %3281 = vst.msk [vmem:[#allocation3 + $0x70] sm:$0xff] %vm731, %v3200
      %3282 = vst.msk [vmem:[#allocation3 + $0x78] sm:$0xff] %vm731, %v3202
      %3283 = vst.msk [vmem:[#allocation3 + $0x80] sm:$0xff] %vm731, %v3204
      %3284 = vst.msk [vmem:[#allocation3 + $0x88] sm:$0xff] %vm731, %v3206
      %3285 = vst.msk [vmem:[#allocation3 + $0x90] sm:$0xff] %vm731, %v3208
      %3286 = vst.msk [vmem:[#allocation3 + $0x98] sm:$0xff] %vm731, %v3210
      %3287 = vst.msk [vmem:[#allocation3 + $0xa0] sm:$0xff] %vm731, %v3212
      %3288 = vst.msk [vmem:[#allocation3 + $0xa8] sm:$0xff] %vm731, %v3214
      %3289 = vst.msk [vmem:[#allocation3 + $0xb0] sm:$0xff] %vm731, %v3216
      %3290 = vst.msk [vmem:[#allocation3 + $0xb8] sm:$0xff] %vm731, %v3218
      %3291 = vst.msk [vmem:[#allocation3 + $0xc0] sm:$0xff] %vm731, %v3220
      %3292 = vst.msk [vmem:[#allocation3 + $0xc8] sm:$0xff] %vm731, %v3222
      %3293 = vst.msk [vmem:[#allocation3 + $0xd0] sm:$0xff] %vm731, %v3224
      %3294 = vst.msk [vmem:[#allocation3 + $0xd8] sm:$0xff] %vm731, %v3226
      %3295 = vst.msk [vmem:[#allocation3 + $0xe0] sm:$0xff] %vm731, %v3228
      %3296 = vst.msk [vmem:[#allocation3 + $0xe8] sm:$0xff] %vm731, %v3230
      %3297 = vst.msk [vmem:[#allocation3 + $0xf0] sm:$0xff] %vm731, %v3232
      %3298 = vst.msk [vmem:[#allocation3 + $0xf8] sm:$0xff] %vm731, %v3234
      %v3299 = vld [vmem:[#allocation2 + $0x2] sm:$0xff]
      %v3300 = vld [vmem:[#allocation2 + $0xa] sm:$0xff]
      %v3301 = vld [vmem:[#allocation2 + $0x1a] sm:$0xff]
      %v3302 = vld [vmem:[#allocation2 + $0x22] sm:$0xff]
      %v3303 = vld [vmem:[#allocation2 + $0x32] sm:$0xff]
      %v3304 = vld [vmem:[#allocation2 + $0x3a] sm:$0xff]
      %v3305 = vld [vmem:[#allocation2 + $0x4a] sm:$0xff]
      %v3306 = vld [vmem:[#allocation2 + $0x52] sm:$0xff]
      %v3307 = vld [vmem:[#allocation2 + $0x62] sm:$0xff]
      %v3308 = vld [vmem:[#allocation2 + $0x6a] sm:$0xff]
      %v3309 = vld [vmem:[#allocation2 + $0x7a] sm:$0xff]
      %v3310 = vld [vmem:[#allocation2 + $0x82] sm:$0xff]
      %v3311 = vld [vmem:[#allocation2 + $0x92] sm:$0xff]
      %v3312 = vld [vmem:[#allocation2 + $0x9a] sm:$0xff]
      %v3313 = vld [vmem:[#allocation2 + $0xaa] sm:$0xff]
      %v3314 = vld [vmem:[#allocation2 + $0xb2] sm:$0xff]
      %v3315 = vld [vmem:[#allocation2 + $0xc2] sm:$0xff]
      %v3316 = vld [vmem:[#allocation2 + $0xca] sm:$0xff]
      %v3317 = vld [vmem:[#allocation2 + $0xda] sm:$0xff]
      %v3318 = vld [vmem:[#allocation2 + $0xe2] sm:$0xff]
      %v3319 = vld [vmem:[#allocation2 + $0xf2] sm:$0xff]
      %v3320 = vld [vmem:[#allocation2 + $0xfa] sm:$0xff]
      %v3321 = vld [vmem:[#allocation2 + $0x10a] sm:$0xff]
      %v3322 = vld [vmem:[#allocation2 + $0x112] sm:$0xff]
      %v3323 = vld [vmem:[#allocation2 + $0x122] sm:$0xff]
      %v3324 = vld [vmem:[#allocation2 + $0x12a] sm:$0xff]
      %v3325 = vld [vmem:[#allocation2 + $0x13a] sm:$0xff]
      %v3326 = vld [vmem:[#allocation2 + $0x142] sm:$0xff]
      %v3327 = vld [vmem:[#allocation2 + $0x152] sm:$0xff]
      %v3328 = vld [vmem:[#allocation2 + $0x15a] sm:$0xff]
      %v3329 = vld [vmem:[#allocation2 + $0x16a] sm:$0xff]
      %v3330 = vld [vmem:[#allocation2 + $0x172] sm:$0xff]
      %3363 = vrot.lane.b32.xlu0 %v3299, 8
      %v3364 = vpop.permute.xlu0 %3363
      %3365 = vrot.lane.b32.xlu0 %v3300, 8
      %v3366 = vpop.permute.xlu0 %3365
      %3367 = vrot.lane.b32.xlu0 %v3301, 8
      %v3368 = vpop.permute.xlu0 %3367
      %3369 = vrot.lane.b32.xlu0 %v3302, 8
      %v3370 = vpop.permute.xlu0 %3369
      %3371 = vrot.lane.b32.xlu0 %v3303, 8
      %v3372 = vpop.permute.xlu0 %3371
      %3373 = vrot.lane.b32.xlu0 %v3304, 8
      %v3374 = vpop.permute.xlu0 %3373
      %3375 = vrot.lane.b32.xlu0 %v3305, 8
      %v3376 = vpop.permute.xlu0 %3375
      %3377 = vrot.lane.b32.xlu0 %v3306, 8
      %v3378 = vpop.permute.xlu0 %3377
      %3379 = vrot.lane.b32.xlu0 %v3307, 8
      %v3380 = vpop.permute.xlu0 %3379
      %3381 = vrot.lane.b32.xlu0 %v3308, 8
      %v3382 = vpop.permute.xlu0 %3381
      %3383 = vrot.lane.b32.xlu0 %v3309, 8
      %v3384 = vpop.permute.xlu0 %3383
      %3385 = vrot.lane.b32.xlu0 %v3310, 8
      %v3386 = vpop.permute.xlu0 %3385
      %3387 = vrot.lane.b32.xlu0 %v3311, 8
      %v3388 = vpop.permute.xlu0 %3387
      %3389 = vrot.lane.b32.xlu0 %v3312, 8
      %v3390 = vpop.permute.xlu0 %3389
      %3391 = vrot.lane.b32.xlu0 %v3313, 8
      %v3392 = vpop.permute.xlu0 %3391
      %3393 = vrot.lane.b32.xlu0 %v3314, 8
      %v3394 = vpop.permute.xlu0 %3393
      %3395 = vrot.lane.b32.xlu0 %v3315, 8
      %v3396 = vpop.permute.xlu0 %3395
      %3397 = vrot.lane.b32.xlu0 %v3316, 8
      %v3398 = vpop.permute.xlu0 %3397
      %3399 = vrot.lane.b32.xlu0 %v3317, 8
      %v3400 = vpop.permute.xlu0 %3399
      %3401 = vrot.lane.b32.xlu0 %v3318, 8
      %v3402 = vpop.permute.xlu0 %3401
      %3403 = vrot.lane.b32.xlu0 %v3319, 8
      %v3404 = vpop.permute.xlu0 %3403
      %3405 = vrot.lane.b32.xlu0 %v3320, 8
      %v3406 = vpop.permute.xlu0 %3405
      %3407 = vrot.lane.b32.xlu0 %v3321, 8
      %v3408 = vpop.permute.xlu0 %3407
      %3409 = vrot.lane.b32.xlu0 %v3322, 8
      %v3410 = vpop.permute.xlu0 %3409
      %3411 = vrot.lane.b32.xlu0 %v3323, 8
      %v3412 = vpop.permute.xlu0 %3411
      %3413 = vrot.lane.b32.xlu0 %v3324, 8
      %v3414 = vpop.permute.xlu0 %3413
      %3415 = vrot.lane.b32.xlu0 %v3325, 8
      %v3416 = vpop.permute.xlu0 %3415
      %3417 = vrot.lane.b32.xlu0 %v3326, 8
      %v3418 = vpop.permute.xlu0 %3417
      %3419 = vrot.lane.b32.xlu0 %v3327, 8
      %v3420 = vpop.permute.xlu0 %3419
      %3421 = vrot.lane.b32.xlu0 %v3328, 8
      %v3422 = vpop.permute.xlu0 %3421
      %3423 = vrot.lane.b32.xlu0 %v3329, 8
      %v3424 = vpop.permute.xlu0 %3423
      %3425 = vrot.lane.b32.xlu0 %v3330, 8
      %v3426 = vpop.permute.xlu0 %3425
      %3459 = vst.msk [vmem:[#allocation3] sm:$0xff] %vm924, %v3364
      %3460 = vst.msk [vmem:[#allocation3 + $0x8] sm:$0xff] %vm924, %v3366
      %3461 = vst.msk [vmem:[#allocation3 + $0x10] sm:$0xff] %vm924, %v3368
      %3462 = vst.msk [vmem:[#allocation3 + $0x18] sm:$0xff] %vm924, %v3370
      %3463 = vst.msk [vmem:[#allocation3 + $0x20] sm:$0xff] %vm924, %v3372
      %3464 = vst.msk [vmem:[#allocation3 + $0x28] sm:$0xff] %vm924, %v3374
      %3465 = vst.msk [vmem:[#allocation3 + $0x30] sm:$0xff] %vm924, %v3376
      %3466 = vst.msk [vmem:[#allocation3 + $0x38] sm:$0xff] %vm924, %v3378
      %3467 = vst.msk [vmem:[#allocation3 + $0x40] sm:$0xff] %vm924, %v3380
      %3468 = vst.msk [vmem:[#allocation3 + $0x48] sm:$0xff] %vm924, %v3382
      %3469 = vst.msk [vmem:[#allocation3 + $0x50] sm:$0xff] %vm924, %v3384
      %3470 = vst.msk [vmem:[#allocation3 + $0x58] sm:$0xff] %vm924, %v3386
      %3471 = vst.msk [vmem:[#allocation3 + $0x60] sm:$0xff] %vm924, %v3388
      %3472 = vst.msk [vmem:[#allocation3 + $0x68] sm:$0xff] %vm924, %v3390
      %3473 = vst.msk [vmem:[#allocation3 + $0x70] sm:$0xff] %vm924, %v3392
      %3474 = vst.msk [vmem:[#allocation3 + $0x78] sm:$0xff] %vm924, %v3394
      %3475 = vst.msk [vmem:[#allocation3 + $0x80] sm:$0xff] %vm924, %v3396
      %3476 = vst.msk [vmem:[#allocation3 + $0x88] sm:$0xff] %vm924, %v3398
      %3477 = vst.msk [vmem:[#allocation3 + $0x90] sm:$0xff] %vm924, %v3400
      %3478 = vst.msk [vmem:[#allocation3 + $0x98] sm:$0xff] %vm924, %v3402
      %3479 = vst.msk [vmem:[#allocation3 + $0xa0] sm:$0xff] %vm924, %v3404
      %3480 = vst.msk [vmem:[#allocation3 + $0xa8] sm:$0xff] %vm924, %v3406
      %3481 = vst.msk [vmem:[#allocation3 + $0xb0] sm:$0xff] %vm924, %v3408
      %3482 = vst.msk [vmem:[#allocation3 + $0xb8] sm:$0xff] %vm924, %v3410
      %3483 = vst.msk [vmem:[#allocation3 + $0xc0] sm:$0xff] %vm924, %v3412
      %3484 = vst.msk [vmem:[#allocation3 + $0xc8] sm:$0xff] %vm924, %v3414
      %3485 = vst.msk [vmem:[#allocation3 + $0xd0] sm:$0xff] %vm924, %v3416
      %3486 = vst.msk [vmem:[#allocation3 + $0xd8] sm:$0xff] %vm924, %v3418
      %3487 = vst.msk [vmem:[#allocation3 + $0xe0] sm:$0xff] %vm924, %v3420
      %3488 = vst.msk [vmem:[#allocation3 + $0xe8] sm:$0xff] %vm924, %v3422
      %3489 = vst.msk [vmem:[#allocation3 + $0xf0] sm:$0xff] %vm924, %v3424
      %3490 = vst.msk [vmem:[#allocation3 + $0xf8] sm:$0xff] %vm924, %v3426
      %v3491 = vld [vmem:[%s369] sm:$0xff]
      %v3492 = vld [vmem:[%s369 + $0x8] sm:$0xff]
      %v3493 = vld [vmem:[%s369 + $0x18] sm:$0xff]
      %v3494 = vld [vmem:[%s369 + $0x20] sm:$0xff]
      %v3495 = vld [vmem:[%s369 + $0x30] sm:$0xff]
      %v3496 = vld [vmem:[%s369 + $0x38] sm:$0xff]
      %v3497 = vld [vmem:[%s369 + $0x48] sm:$0xff]
      %v3498 = vld [vmem:[%s369 + $0x50] sm:$0xff]
      %v3499 = vld [vmem:[%s369 + $0x60] sm:$0xff]
      %v3500 = vld [vmem:[%s369 + $0x68] sm:$0xff]
      %v3501 = vld [vmem:[%s369 + $0x78] sm:$0xff]
      %v3502 = vld [vmem:[%s369 + $0x80] sm:$0xff]
      %v3503 = vld [vmem:[%s369 + $0x90] sm:$0xff]
      %v3504 = vld [vmem:[%s369 + $0x98] sm:$0xff]
      %v3505 = vld [vmem:[%s369 + $0xa8] sm:$0xff]
      %v3506 = vld [vmem:[%s369 + $0xb0] sm:$0xff]
      %v3507 = vld [vmem:[%s369 + $0xc0] sm:$0xff]
      %v3508 = vld [vmem:[%s369 + $0xc8] sm:$0xff]
      %v3509 = vld [vmem:[%s369 + $0xd8] sm:$0xff]
      %v3510 = vld [vmem:[%s369 + $0xe0] sm:$0xff]
      %v3511 = vld [vmem:[%s369 + $0xf0] sm:$0xff]
      %v3512 = vld [vmem:[%s369 + $0xf8] sm:$0xff]
      %v3513 = vld [vmem:[%s369 + $0x108] sm:$0xff]
      %v3514 = vld [vmem:[%s369 + $0x110] sm:$0xff]
      %v3515 = vld [vmem:[%s369 + $0x120] sm:$0xff]
      %v3516 = vld [vmem:[%s369 + $0x128] sm:$0xff]
      %v3517 = vld [vmem:[%s369 + $0x138] sm:$0xff]
      %v3518 = vld [vmem:[%s369 + $0x140] sm:$0xff]
      %v3519 = vld [vmem:[%s369 + $0x150] sm:$0xff]
      %v3520 = vld [vmem:[%s369 + $0x158] sm:$0xff]
      %v3521 = vld [vmem:[%s369 + $0x168] sm:$0xff]
      %v3522 = vld [vmem:[%s369 + $0x170] sm:$0xff]
      %3555 = vrot.lane.b32.xlu0 %v3491, 12
      %v3556 = vpop.permute.xlu0 %3555
      %3557 = vrot.lane.b32.xlu0 %v3492, 12
      %v3558 = vpop.permute.xlu0 %3557
      %3559 = vrot.lane.b32.xlu0 %v3493, 12
      %v3560 = vpop.permute.xlu0 %3559
      %3561 = vrot.lane.b32.xlu0 %v3494, 12
      %v3562 = vpop.permute.xlu0 %3561
      %3563 = vrot.lane.b32.xlu0 %v3495, 12
      %v3564 = vpop.permute.xlu0 %3563
      %3565 = vrot.lane.b32.xlu0 %v3496, 12
      %v3566 = vpop.permute.xlu0 %3565
      %3567 = vrot.lane.b32.xlu0 %v3497, 12
      %v3568 = vpop.permute.xlu0 %3567
      %3569 = vrot.lane.b32.xlu0 %v3498, 12
      %v3570 = vpop.permute.xlu0 %3569
      %3571 = vrot.lane.b32.xlu0 %v3499, 12
      %v3572 = vpop.permute.xlu0 %3571
      %3573 = vrot.lane.b32.xlu0 %v3500, 12
      %v3574 = vpop.permute.xlu0 %3573
      %3575 = vrot.lane.b32.xlu0 %v3501, 12
      %v3576 = vpop.permute.xlu0 %3575
      %3577 = vrot.lane.b32.xlu0 %v3502, 12
      %v3578 = vpop.permute.xlu0 %3577
      %3579 = vrot.lane.b32.xlu0 %v3503, 12
      %v3580 = vpop.permute.xlu0 %3579
      %3581 = vrot.lane.b32.xlu0 %v3504, 12
      %v3582 = vpop.permute.xlu0 %3581
      %3583 = vrot.lane.b32.xlu0 %v3505, 12
      %v3584 = vpop.permute.xlu0 %3583
      %3585 = vrot.lane.b32.xlu0 %v3506, 12
      %v3586 = vpop.permute.xlu0 %3585
      %3587 = vrot.lane.b32.xlu0 %v3507, 12
      %v3588 = vpop.permute.xlu0 %3587
      %3589 = vrot.lane.b32.xlu0 %v3508, 12
      %v3590 = vpop.permute.xlu0 %3589
      %3591 = vrot.lane.b32.xlu0 %v3509, 12
      %v3592 = vpop.permute.xlu0 %3591
      %3593 = vrot.lane.b32.xlu0 %v3510, 12
      %v3594 = vpop.permute.xlu0 %3593
      %3595 = vrot.lane.b32.xlu0 %v3511, 12
      %v3596 = vpop.permute.xlu0 %3595
      %3597 = vrot.lane.b32.xlu0 %v3512, 12
      %v3598 = vpop.permute.xlu0 %3597
      %3599 = vrot.lane.b32.xlu0 %v3513, 12
      %v3600 = vpop.permute.xlu0 %3599
      %3601 = vrot.lane.b32.xlu0 %v3514, 12
      %v3602 = vpop.permute.xlu0 %3601
      %3603 = vrot.lane.b32.xlu0 %v3515, 12
      %v3604 = vpop.permute.xlu0 %3603
      %3605 = vrot.lane.b32.xlu0 %v3516, 12
      %v3606 = vpop.permute.xlu0 %3605
      %3607 = vrot.lane.b32.xlu0 %v3517, 12
      %v3608 = vpop.permute.xlu0 %3607
      %3609 = vrot.lane.b32.xlu0 %v3518, 12
      %v3610 = vpop.permute.xlu0 %3609
      %3611 = vrot.lane.b32.xlu0 %v3519, 12
      %v3612 = vpop.permute.xlu0 %3611
      %3613 = vrot.lane.b32.xlu0 %v3520, 12
      %v3614 = vpop.permute.xlu0 %3613
      %3615 = vrot.lane.b32.xlu0 %v3521, 12
      %v3616 = vpop.permute.xlu0 %3615
      %3617 = vrot.lane.b32.xlu0 %v3522, 12
      %v3618 = vpop.permute.xlu0 %3617
      %3651 = vst.msk [vmem:[#allocation3] sm:$0xff] %vm1117, %v3556
      %3652 = vst.msk [vmem:[#allocation3 + $0x8] sm:$0xff] %vm1117, %v3558
      %3653 = vst.msk [vmem:[#allocation3 + $0x10] sm:$0xff] %vm1117, %v3560
      %3654 = vst.msk [vmem:[#allocation3 + $0x18] sm:$0xff] %vm1117, %v3562
      %3655 = vst.msk [vmem:[#allocation3 + $0x20] sm:$0xff] %vm1117, %v3564
      %3656 = vst.msk [vmem:[#allocation3 + $0x28] sm:$0xff] %vm1117, %v3566
      %3657 = vst.msk [vmem:[#allocation3 + $0x30] sm:$0xff] %vm1117, %v3568
      %3658 = vst.msk [vmem:[#allocation3 + $0x38] sm:$0xff] %vm1117, %v3570
      %3659 = vst.msk [vmem:[#allocation3 + $0x40] sm:$0xff] %vm1117, %v3572
      %3660 = vst.msk [vmem:[#allocation3 + $0x48] sm:$0xff] %vm1117, %v3574
      %3661 = vst.msk [vmem:[#allocation3 + $0x50] sm:$0xff] %vm1117, %v3576
      %3662 = vst.msk [vmem:[#allocation3 + $0x58] sm:$0xff] %vm1117, %v3578
      %3663 = vst.msk [vmem:[#allocation3 + $0x60] sm:$0xff] %vm1117, %v3580
      %3664 = vst.msk [vmem:[#allocation3 + $0x68] sm:$0xff] %vm1117, %v3582
      %3665 = vst.msk [vmem:[#allocation3 + $0x70] sm:$0xff] %vm1117, %v3584
      %3666 = vst.msk [vmem:[#allocation3 + $0x78] sm:$0xff] %vm1117, %v3586
      %3667 = vst.msk [vmem:[#allocation3 + $0x80] sm:$0xff] %vm1117, %v3588
      %3668 = vst.msk [vmem:[#allocation3 + $0x88] sm:$0xff] %vm1117, %v3590
      %3669 = vst.msk [vmem:[#allocation3 + $0x90] sm:$0xff] %vm1117, %v3592
      %3670 = vst.msk [vmem:[#allocation3 + $0x98] sm:$0xff] %vm1117, %v3594
      %3671 = vst.msk [vmem:[#allocation3 + $0xa0] sm:$0xff] %vm1117, %v3596
      %3672 = vst.msk [vmem:[#allocation3 + $0xa8] sm:$0xff] %vm1117, %v3598
      %3673 = vst.msk [vmem:[#allocation3 + $0xb0] sm:$0xff] %vm1117, %v3600
      %3674 = vst.msk [vmem:[#allocation3 + $0xb8] sm:$0xff] %vm1117, %v3602
      %3675 = vst.msk [vmem:[#allocation3 + $0xc0] sm:$0xff] %vm1117, %v3604
      %3676 = vst.msk [vmem:[#allocation3 + $0xc8] sm:$0xff] %vm1117, %v3606
      %3677 = vst.msk [vmem:[#allocation3 + $0xd0] sm:$0xff] %vm1117, %v3608
      %3678 = vst.msk [vmem:[#allocation3 + $0xd8] sm:$0xff] %vm1117, %v3610
      %3679 = vst.msk [vmem:[#allocation3 + $0xe0] sm:$0xff] %vm1117, %v3612
      %3680 = vst.msk [vmem:[#allocation3 + $0xe8] sm:$0xff] %vm1117, %v3614
      %3681 = vst.msk [vmem:[#allocation3 + $0xf0] sm:$0xff] %vm1117, %v3616
      %3682 = vst.msk [vmem:[#allocation3 + $0xf8] sm:$0xff] %vm1117, %v3618
      %v3683 = vld [vmem:[%s369 + $0x1] sm:$0xff]
      %v3684 = vld [vmem:[%s369 + $0x9] sm:$0xff]
      %v3685 = vld [vmem:[%s369 + $0x19] sm:$0xff]
      %v3686 = vld [vmem:[%s369 + $0x21] sm:$0xff]
      %v3687 = vld [vmem:[%s369 + $0x31] sm:$0xff]
      %v3688 = vld [vmem:[%s369 + $0x39] sm:$0xff]
      %v3689 = vld [vmem:[%s369 + $0x49] sm:$0xff]
      %v3690 = vld [vmem:[%s369 + $0x51] sm:$0xff]
      %v3691 = vld [vmem:[%s369 + $0x61] sm:$0xff]
      %v3692 = vld [vmem:[%s369 + $0x69] sm:$0xff]
      %v3693 = vld [vmem:[%s369 + $0x79] sm:$0xff]
      %v3694 = vld [vmem:[%s369 + $0x81] sm:$0xff]
      %v3695 = vld [vmem:[%s369 + $0x91] sm:$0xff]
      %v3696 = vld [vmem:[%s369 + $0x99] sm:$0xff]
      %v3697 = vld [vmem:[%s369 + $0xa9] sm:$0xff]
      %v3698 = vld [vmem:[%s369 + $0xb1] sm:$0xff]
      %v3699 = vld [vmem:[%s369 + $0xc1] sm:$0xff]
      %v3700 = vld [vmem:[%s369 + $0xc9] sm:$0xff]
      %v3701 = vld [vmem:[%s369 + $0xd9] sm:$0xff]
      %v3702 = vld [vmem:[%s369 + $0xe1] sm:$0xff]
      %v3703 = vld [vmem:[%s369 + $0xf1] sm:$0xff]
      %v3704 = vld [vmem:[%s369 + $0xf9] sm:$0xff]
      %v3705 = vld [vmem:[%s369 + $0x109] sm:$0xff]
      %v3706 = vld [vmem:[%s369 + $0x111] sm:$0xff]
      %v3707 = vld [vmem:[%s369 + $0x121] sm:$0xff]
      %v3708 = vld [vmem:[%s369 + $0x129] sm:$0xff]
      %v3709 = vld [vmem:[%s369 + $0x139] sm:$0xff]
      %v3710 = vld [vmem:[%s369 + $0x141] sm:$0xff]
      %v3711 = vld [vmem:[%s369 + $0x151] sm:$0xff]
      %v3712 = vld [vmem:[%s369 + $0x159] sm:$0xff]
      %v3713 = vld [vmem:[%s369 + $0x169] sm:$0xff]
      %v3714 = vld [vmem:[%s369 + $0x171] sm:$0xff]
      %3747 = vrot.lane.b32.xlu0 %v3683, 16
      %v3748 = vpop.permute.xlu0 %3747
      %3749 = vrot.lane.b32.xlu0 %v3684, 16
      %v3750 = vpop.permute.xlu0 %3749
      %3751 = vrot.lane.b32.xlu0 %v3685, 16
      %v3752 = vpop.permute.xlu0 %3751
      %3753 = vrot.lane.b32.xlu0 %v3686, 16
      %v3754 = vpop.permute.xlu0 %3753
      %3755 = vrot.lane.b32.xlu0 %v3687, 16
      %v3756 = vpop.permute.xlu0 %3755
      %3757 = vrot.lane.b32.xlu0 %v3688, 16
      %v3758 = vpop.permute.xlu0 %3757
      %3759 = vrot.lane.b32.xlu0 %v3689, 16
      %v3760 = vpop.permute.xlu0 %3759
      %3761 = vrot.lane.b32.xlu0 %v3690, 16
      %v3762 = vpop.permute.xlu0 %3761
      %3763 = vrot.lane.b32.xlu0 %v3691, 16
      %v3764 = vpop.permute.xlu0 %3763
      %3765 = vrot.lane.b32.xlu0 %v3692, 16
      %v3766 = vpop.permute.xlu0 %3765
      %3767 = vrot.lane.b32.xlu0 %v3693, 16
      %v3768 = vpop.permute.xlu0 %3767
      %3769 = vrot.lane.b32.xlu0 %v3694, 16
      %v3770 = vpop.permute.xlu0 %3769
      %3771 = vrot.lane.b32.xlu0 %v3695, 16
      %v3772 = vpop.permute.xlu0 %3771
      %3773 = vrot.lane.b32.xlu0 %v3696, 16
      %v3774 = vpop.permute.xlu0 %3773
      %3775 = vrot.lane.b32.xlu0 %v3697, 16
      %v3776 = vpop.permute.xlu0 %3775
      %3777 = vrot.lane.b32.xlu0 %v3698, 16
      %v3778 = vpop.permute.xlu0 %3777
      %3779 = vrot.lane.b32.xlu0 %v3699, 16
      %v3780 = vpop.permute.xlu0 %3779
      %3781 = vrot.lane.b32.xlu0 %v3700, 16
      %v3782 = vpop.permute.xlu0 %3781
      %3783 = vrot.lane.b32.xlu0 %v3701, 16
      %v3784 = vpop.permute.xlu0 %3783
      %3785 = vrot.lane.b32.xlu0 %v3702, 16
      %v3786 = vpop.permute.xlu0 %3785
      %3787 = vrot.lane.b32.xlu0 %v3703, 16
      %v3788 = vpop.permute.xlu0 %3787
      %3789 = vrot.lane.b32.xlu0 %v3704, 16
      %v3790 = vpop.permute.xlu0 %3789
      %3791 = vrot.lane.b32.xlu0 %v3705, 16
      %v3792 = vpop.permute.xlu0 %3791
      %3793 = vrot.lane.b32.xlu0 %v3706, 16
      %v3794 = vpop.permute.xlu0 %3793
      %3795 = vrot.lane.b32.xlu0 %v3707, 16
      %v3796 = vpop.permute.xlu0 %3795
      %3797 = vrot.lane.b32.xlu0 %v3708, 16
      %v3798 = vpop.permute.xlu0 %3797
      %3799 = vrot.lane.b32.xlu0 %v3709, 16
      %v3800 = vpop.permute.xlu0 %3799
      %3801 = vrot.lane.b32.xlu0 %v3710, 16
      %v3802 = vpop.permute.xlu0 %3801
      %3803 = vrot.lane.b32.xlu0 %v3711, 16
      %v3804 = vpop.permute.xlu0 %3803
      %3805 = vrot.lane.b32.xlu0 %v3712, 16
      %v3806 = vpop.permute.xlu0 %3805
      %3807 = vrot.lane.b32.xlu0 %v3713, 16
      %v3808 = vpop.permute.xlu0 %3807
      %3809 = vrot.lane.b32.xlu0 %v3714, 16
      %v3810 = vpop.permute.xlu0 %3809
      %3843 = vst.msk [vmem:[#allocation3] sm:$0xff] %vm1310, %v3748
      %3844 = vst.msk [vmem:[#allocation3 + $0x8] sm:$0xff] %vm1310, %v3750
      %3845 = vst.msk [vmem:[#allocation3 + $0x10] sm:$0xff] %vm1310, %v3752
      %3846 = vst.msk [vmem:[#allocation3 + $0x18] sm:$0xff] %vm1310, %v3754
      %3847 = vst.msk [vmem:[#allocation3 + $0x20] sm:$0xff] %vm1310, %v3756
      %3848 = vst.msk [vmem:[#allocation3 + $0x28] sm:$0xff] %vm1310, %v3758
      %3849 = vst.msk [vmem:[#allocation3 + $0x30] sm:$0xff] %vm1310, %v3760
      %3850 = vst.msk [vmem:[#allocation3 + $0x38] sm:$0xff] %vm1310, %v3762
      %3851 = vst.msk [vmem:[#allocation3 + $0x40] sm:$0xff] %vm1310, %v3764
      %3852 = vst.msk [vmem:[#allocation3 + $0x48] sm:$0xff] %vm1310, %v3766
      %3853 = vst.msk [vmem:[#allocation3 + $0x50] sm:$0xff] %vm1310, %v3768
      %3854 = vst.msk [vmem:[#allocation3 + $0x58] sm:$0xff] %vm1310, %v3770
      %3855 = vst.msk [vmem:[#allocation3 + $0x60] sm:$0xff] %vm1310, %v3772
      %3856 = vst.msk [vmem:[#allocation3 + $0x68] sm:$0xff] %vm1310, %v3774
      %3857 = vst.msk [vmem:[#allocation3 + $0x70] sm:$0xff] %vm1310, %v3776
      %3858 = vst.msk [vmem:[#allocation3 + $0x78] sm:$0xff] %vm1310, %v3778
      %3859 = vst.msk [vmem:[#allocation3 + $0x80] sm:$0xff] %vm1310, %v3780
      %3860 = vst.msk [vmem:[#allocation3 + $0x88] sm:$0xff] %vm1310, %v3782
      %3861 = vst.msk [vmem:[#allocation3 + $0x90] sm:$0xff] %vm1310, %v3784
      %3862 = vst.msk [vmem:[#allocation3 + $0x98] sm:$0xff] %vm1310, %v3786
      %3863 = vst.msk [vmem:[#allocation3 + $0xa0] sm:$0xff] %vm1310, %v3788
      %3864 = vst.msk [vmem:[#allocation3 + $0xa8] sm:$0xff] %vm1310, %v3790
      %3865 = vst.msk [vmem:[#allocation3 + $0xb0] sm:$0xff] %vm1310, %v3792
      %3866 = vst.msk [vmem:[#allocation3 + $0xb8] sm:$0xff] %vm1310, %v3794
      %3867 = vst.msk [vmem:[#allocation3 + $0xc0] sm:$0xff] %vm1310, %v3796
      %3868 = vst.msk [vmem:[#allocation3 + $0xc8] sm:$0xff] %vm1310, %v3798
      %3869 = vst.msk [vmem:[#allocation3 + $0xd0] sm:$0xff] %vm1310, %v3800
      %3870 = vst.msk [vmem:[#allocation3 + $0xd8] sm:$0xff] %vm1310, %v3802
      %3871 = vst.msk [vmem:[#allocation3 + $0xe0] sm:$0xff] %vm1310, %v3804
      %3872 = vst.msk [vmem:[#allocation3 + $0xe8] sm:$0xff] %vm1310, %v3806
      %3873 = vst.msk [vmem:[#allocation3 + $0xf0] sm:$0xff] %vm1310, %v3808
      %3874 = vst.msk [vmem:[#allocation3 + $0xf8] sm:$0xff] %vm1310, %v3810
      %v3875 = vld [vmem:[%s369 + $0x2] sm:$0xff]
      %v3876 = vld [vmem:[%s369 + $0xa] sm:$0xff]
      %v3877 = vld [vmem:[%s369 + $0x1a] sm:$0xff]
      %v3878 = vld [vmem:[%s369 + $0x22] sm:$0xff]
      %v3879 = vld [vmem:[%s369 + $0x32] sm:$0xff]
      %v3880 = vld [vmem:[%s369 + $0x3a] sm:$0xff]
      %v3881 = vld [vmem:[%s369 + $0x4a] sm:$0xff]
      %v3882 = vld [vmem:[%s369 + $0x52] sm:$0xff]
      %v3883 = vld [vmem:[%s369 + $0x62] sm:$0xff]
      %v3884 = vld [vmem:[%s369 + $0x6a] sm:$0xff]
      %v3885 = vld [vmem:[%s369 + $0x7a] sm:$0xff]
      %v3886 = vld [vmem:[%s369 + $0x82] sm:$0xff]
      %v3887 = vld [vmem:[%s369 + $0x92] sm:$0xff]
      %v3888 = vld [vmem:[%s369 + $0x9a] sm:$0xff]
      %v3889 = vld [vmem:[%s369 + $0xaa] sm:$0xff]
      %v3890 = vld [vmem:[%s369 + $0xb2] sm:$0xff]
      %v3891 = vld [vmem:[%s369 + $0xc2] sm:$0xff]
      %v3892 = vld [vmem:[%s369 + $0xca] sm:$0xff]
      %v3893 = vld [vmem:[%s369 + $0xda] sm:$0xff]
      %v3894 = vld [vmem:[%s369 + $0xe2] sm:$0xff]
      %v3895 = vld [vmem:[%s369 + $0xf2] sm:$0xff]
      %v3896 = vld [vmem:[%s369 + $0xfa] sm:$0xff]
      %v3897 = vld [vmem:[%s369 + $0x10a] sm:$0xff]
      %v3898 = vld [vmem:[%s369 + $0x112] sm:$0xff]
      %v3899 = vld [vmem:[%s369 + $0x122] sm:$0xff]
      %v3900 = vld [vmem:[%s369 + $0x12a] sm:$0xff]
      %v3901 = vld [vmem:[%s369 + $0x13a] sm:$0xff]
      %v3902 = vld [vmem:[%s369 + $0x142] sm:$0xff]
      %v3903 = vld [vmem:[%s369 + $0x152] sm:$0xff]
      %v3904 = vld [vmem:[%s369 + $0x15a] sm:$0xff]
      %v3905 = vld [vmem:[%s369 + $0x16a] sm:$0xff]
      %v3906 = vld [vmem:[%s369 + $0x172] sm:$0xff]
      %3939 = vrot.lane.b32.xlu0 %v3875, 20
      %v3940 = vpop.permute.xlu0 %3939
      %3941 = vrot.lane.b32.xlu0 %v3876, 20
      %v3942 = vpop.permute.xlu0 %3941
      %3943 = vrot.lane.b32.xlu0 %v3877, 20
      %v3944 = vpop.permute.xlu0 %3943
      %3945 = vrot.lane.b32.xlu0 %v3878, 20
      %v3946 = vpop.permute.xlu0 %3945
      %3947 = vrot.lane.b32.xlu0 %v3879, 20
      %v3948 = vpop.permute.xlu0 %3947
      %3949 = vrot.lane.b32.xlu0 %v3880, 20
      %v3950 = vpop.permute.xlu0 %3949
      %3951 = vrot.lane.b32.xlu0 %v3881, 20
      %v3952 = vpop.permute.xlu0 %3951
      %3953 = vrot.lane.b32.xlu0 %v3882, 20
      %v3954 = vpop.permute.xlu0 %3953
      %3955 = vrot.lane.b32.xlu0 %v3883, 20
      %v3956 = vpop.permute.xlu0 %3955
      %3957 = vrot.lane.b32.xlu0 %v3884, 20
      %v3958 = vpop.permute.xlu0 %3957
      %3959 = vrot.lane.b32.xlu0 %v3885, 20
      %v3960 = vpop.permute.xlu0 %3959
      %3961 = vrot.lane.b32.xlu0 %v3886, 20
      %v3962 = vpop.permute.xlu0 %3961
      %3963 = vrot.lane.b32.xlu0 %v3887, 20
      %v3964 = vpop.permute.xlu0 %3963
      %3965 = vrot.lane.b32.xlu0 %v3888, 20
      %v3966 = vpop.permute.xlu0 %3965
      %3967 = vrot.lane.b32.xlu0 %v3889, 20
      %v3968 = vpop.permute.xlu0 %3967
      %3969 = vrot.lane.b32.xlu0 %v3890, 20
      %v3970 = vpop.permute.xlu0 %3969
      %3971 = vrot.lane.b32.xlu0 %v3891, 20
      %v3972 = vpop.permute.xlu0 %3971
      %3973 = vrot.lane.b32.xlu0 %v3892, 20
      %v3974 = vpop.permute.xlu0 %3973
      %3975 = vrot.lane.b32.xlu0 %v3893, 20
      %v3976 = vpop.permute.xlu0 %3975
      %3977 = vrot.lane.b32.xlu0 %v3894, 20
      %v3978 = vpop.permute.xlu0 %3977
      %3979 = vrot.lane.b32.xlu0 %v3895, 20
      %v3980 = vpop.permute.xlu0 %3979
      %3981 = vrot.lane.b32.xlu0 %v3896, 20
      %v3982 = vpop.permute.xlu0 %3981
      %3983 = vrot.lane.b32.xlu0 %v3897, 20
      %v3984 = vpop.permute.xlu0 %3983
      %3985 = vrot.lane.b32.xlu0 %v3898, 20
      %v3986 = vpop.permute.xlu0 %3985
      %3987 = vrot.lane.b32.xlu0 %v3899, 20
      %v3988 = vpop.permute.xlu0 %3987
      %3989 = vrot.lane.b32.xlu0 %v3900, 20
      %v3990 = vpop.permute.xlu0 %3989
      %3991 = vrot.lane.b32.xlu0 %v3901, 20
      %v3992 = vpop.permute.xlu0 %3991
      %3993 = vrot.lane.b32.xlu0 %v3902, 20
      %v3994 = vpop.permute.xlu0 %3993
      %3995 = vrot.lane.b32.xlu0 %v3903, 20
      %v3996 = vpop.permute.xlu0 %3995
      %3997 = vrot.lane.b32.xlu0 %v3904, 20
      %v3998 = vpop.permute.xlu0 %3997
      %3999 = vrot.lane.b32.xlu0 %v3905, 20
      %v4000 = vpop.permute.xlu0 %3999
      %4001 = vrot.lane.b32.xlu0 %v3906, 20
      %v4002 = vpop.permute.xlu0 %4001
      %4035 = vst.msk [vmem:[#allocation3] sm:$0xff] %vm1503, %v3940
      %4036 = vst.msk [vmem:[#allocation3 + $0x8] sm:$0xff] %vm1503, %v3942
      %4037 = vst.msk [vmem:[#allocation3 + $0x10] sm:$0xff] %vm1503, %v3944
      %4038 = vst.msk [vmem:[#allocation3 + $0x18] sm:$0xff] %vm1503, %v3946
      %4039 = vst.msk [vmem:[#allocation3 + $0x20] sm:$0xff] %vm1503, %v3948
      %4040 = vst.msk [vmem:[#allocation3 + $0x28] sm:$0xff] %vm1503, %v3950
      %4041 = vst.msk [vmem:[#allocation3 + $0x30] sm:$0xff] %vm1503, %v3952
      %4042 = vst.msk [vmem:[#allocation3 + $0x38] sm:$0xff] %vm1503, %v3954
      %4043 = vst.msk [vmem:[#allocation3 + $0x40] sm:$0xff] %vm1503, %v3956
      %4044 = vst.msk [vmem:[#allocation3 + $0x48] sm:$0xff] %vm1503, %v3958
      %4045 = vst.msk [vmem:[#allocation3 + $0x50] sm:$0xff] %vm1503, %v3960
      %4046 = vst.msk [vmem:[#allocation3 + $0x58] sm:$0xff] %vm1503, %v3962
      %4047 = vst.msk [vmem:[#allocation3 + $0x60] sm:$0xff] %vm1503, %v3964
      %4048 = vst.msk [vmem:[#allocation3 + $0x68] sm:$0xff] %vm1503, %v3966
      %4049 = vst.msk [vmem:[#allocation3 + $0x70] sm:$0xff] %vm1503, %v3968
      %4050 = vst.msk [vmem:[#allocation3 + $0x78] sm:$0xff] %vm1503, %v3970
      %4051 = vst.msk [vmem:[#allocation3 + $0x80] sm:$0xff] %vm1503, %v3972
      %4052 = vst.msk [vmem:[#allocation3 + $0x88] sm:$0xff] %vm1503, %v3974
      %4053 = vst.msk [vmem:[#allocation3 + $0x90] sm:$0xff] %vm1503, %v3976
      %4054 = vst.msk [vmem:[#allocation3 + $0x98] sm:$0xff] %vm1503, %v3978
      %4055 = vst.msk [vmem:[#allocation3 + $0xa0] sm:$0xff] %vm1503, %v3980
      %4056 = vst.msk [vmem:[#allocation3 + $0xa8] sm:$0xff] %vm1503, %v3982
      %4057 = vst.msk [vmem:[#allocation3 + $0xb0] sm:$0xff] %vm1503, %v3984
      %4058 = vst.msk [vmem:[#allocation3 + $0xb8] sm:$0xff] %vm1503, %v3986
      %4059 = vst.msk [vmem:[#allocation3 + $0xc0] sm:$0xff] %vm1503, %v3988
      %4060 = vst.msk [vmem:[#allocation3 + $0xc8] sm:$0xff] %vm1503, %v3990
      %4061 = vst.msk [vmem:[#allocation3 + $0xd0] sm:$0xff] %vm1503, %v3992
      %4062 = vst.msk [vmem:[#allocation3 + $0xd8] sm:$0xff] %vm1503, %v3994
      %4063 = vst.msk [vmem:[#allocation3 + $0xe0] sm:$0xff] %vm1503, %v3996
      %4064 = vst.msk [vmem:[#allocation3 + $0xe8] sm:$0xff] %vm1503, %v3998
      %4065 = vst.msk [vmem:[#allocation3 + $0xf0] sm:$0xff] %vm1503, %v4000
      %4066 = vst.msk [vmem:[#allocation3 + $0xf8] sm:$0xff] %vm1503, %v4002
      %v4067 = vld [vmem:[%s1536] sm:$0xff]
      %v4068 = vld [vmem:[%s1536 + $0x8] sm:$0xff]
      %v4069 = vld [vmem:[%s1536 + $0x18] sm:$0xff]
      %v4070 = vld [vmem:[%s1536 + $0x20] sm:$0xff]
      %v4071 = vld [vmem:[%s1536 + $0x30] sm:$0xff]
      %v4072 = vld [vmem:[%s1536 + $0x38] sm:$0xff]
      %v4073 = vld [vmem:[%s1536 + $0x48] sm:$0xff]
      %v4074 = vld [vmem:[%s1536 + $0x50] sm:$0xff]
      %v4075 = vld [vmem:[%s1536 + $0x60] sm:$0xff]
      %v4076 = vld [vmem:[%s1536 + $0x68] sm:$0xff]
      %v4077 = vld [vmem:[%s1536 + $0x78] sm:$0xff]
      %v4078 = vld [vmem:[%s1536 + $0x80] sm:$0xff]
      %v4079 = vld [vmem:[%s1536 + $0x90] sm:$0xff]
      %v4080 = vld [vmem:[%s1536 + $0x98] sm:$0xff]
      %v4081 = vld [vmem:[%s1536 + $0xa8] sm:$0xff]
      %v4082 = vld [vmem:[%s1536 + $0xb0] sm:$0xff]
      %v4083 = vld [vmem:[%s1536 + $0xc0] sm:$0xff]
      %v4084 = vld [vmem:[%s1536 + $0xc8] sm:$0xff]
      %v4085 = vld [vmem:[%s1536 + $0xd8] sm:$0xff]
      %v4086 = vld [vmem:[%s1536 + $0xe0] sm:$0xff]
      %v4087 = vld [vmem:[%s1536 + $0xf0] sm:$0xff]
      %v4088 = vld [vmem:[%s1536 + $0xf8] sm:$0xff]
      %v4089 = vld [vmem:[%s1536 + $0x108] sm:$0xff]
      %v4090 = vld [vmem:[%s1536 + $0x110] sm:$0xff]
      %v4091 = vld [vmem:[%s1536 + $0x120] sm:$0xff]
      %v4092 = vld [vmem:[%s1536 + $0x128] sm:$0xff]
      %v4093 = vld [vmem:[%s1536 + $0x138] sm:$0xff]
      %v4094 = vld [vmem:[%s1536 + $0x140] sm:$0xff]
      %v4095 = vld [vmem:[%s1536 + $0x150] sm:$0xff]
      %v4096 = vld [vmem:[%s1536 + $0x158] sm:$0xff]
      %v4097 = vld [vmem:[%s1536 + $0x168] sm:$0xff]
      %v4098 = vld [vmem:[%s1536 + $0x170] sm:$0xff]
      %4131 = vrot.lane.b32.xlu0 %v4067, 24
      %v4132 = vpop.permute.xlu0 %4131
      %4133 = vrot.lane.b32.xlu0 %v4068, 24
      %v4134 = vpop.permute.xlu0 %4133
      %4135 = vrot.lane.b32.xlu0 %v4069, 24
      %v4136 = vpop.permute.xlu0 %4135
      %4137 = vrot.lane.b32.xlu0 %v4070, 24
      %v4138 = vpop.permute.xlu0 %4137
      %4139 = vrot.lane.b32.xlu0 %v4071, 24
      %v4140 = vpop.permute.xlu0 %4139
      %4141 = vrot.lane.b32.xlu0 %v4072, 24
      %v4142 = vpop.permute.xlu0 %4141
      %4143 = vrot.lane.b32.xlu0 %v4073, 24
      %v4144 = vpop.permute.xlu0 %4143
      %4145 = vrot.lane.b32.xlu0 %v4074, 24
      %v4146 = vpop.permute.xlu0 %4145
      %4147 = vrot.lane.b32.xlu0 %v4075, 24
      %v4148 = vpop.permute.xlu0 %4147
      %4149 = vrot.lane.b32.xlu0 %v4076, 24
      %v4150 = vpop.permute.xlu0 %4149
      %4151 = vrot.lane.b32.xlu0 %v4077, 24
      %v4152 = vpop.permute.xlu0 %4151
      %4153 = vrot.lane.b32.xlu0 %v4078, 24
      %v4154 = vpop.permute.xlu0 %4153
      %4155 = vrot.lane.b32.xlu0 %v4079, 24
      %v4156 = vpop.permute.xlu0 %4155
      %4157 = vrot.lane.b32.xlu0 %v4080, 24
      %v4158 = vpop.permute.xlu0 %4157
      %4159 = vrot.lane.b32.xlu0 %v4081, 24
      %v4160 = vpop.permute.xlu0 %4159
      %4161 = vrot.lane.b32.xlu0 %v4082, 24
      %v4162 = vpop.permute.xlu0 %4161
      %4163 = vrot.lane.b32.xlu0 %v4083, 24
      %v4164 = vpop.permute.xlu0 %4163
      %4165 = vrot.lane.b32.xlu0 %v4084, 24
      %v4166 = vpop.permute.xlu0 %4165
      %4167 = vrot.lane.b32.xlu0 %v4085, 24
      %v4168 = vpop.permute.xlu0 %4167
      %4169 = vrot.lane.b32.xlu0 %v4086, 24
      %v4170 = vpop.permute.xlu0 %4169
      %4171 = vrot.lane.b32.xlu0 %v4087, 24
      %v4172 = vpop.permute.xlu0 %4171
      %4173 = vrot.lane.b32.xlu0 %v4088, 24
      %v4174 = vpop.permute.xlu0 %4173
      %4175 = vrot.lane.b32.xlu0 %v4089, 24
      %v4176 = vpop.permute.xlu0 %4175
      %4177 = vrot.lane.b32.xlu0 %v4090, 24
      %v4178 = vpop.permute.xlu0 %4177
      %4179 = vrot.lane.b32.xlu0 %v4091, 24
      %v4180 = vpop.permute.xlu0 %4179
      %4181 = vrot.lane.b32.xlu0 %v4092, 24
      %v4182 = vpop.permute.xlu0 %4181
      %4183 = vrot.lane.b32.xlu0 %v4093, 24
      %v4184 = vpop.permute.xlu0 %4183
      %4185 = vrot.lane.b32.xlu0 %v4094, 24
      %v4186 = vpop.permute.xlu0 %4185
      %4187 = vrot.lane.b32.xlu0 %v4095, 24
      %v4188 = vpop.permute.xlu0 %4187
      %4189 = vrot.lane.b32.xlu0 %v4096, 24
      %v4190 = vpop.permute.xlu0 %4189
      %4191 = vrot.lane.b32.xlu0 %v4097, 24
      %v4192 = vpop.permute.xlu0 %4191
      %4193 = vrot.lane.b32.xlu0 %v4098, 24
      %v4194 = vpop.permute.xlu0 %4193
      %4227 = vst.msk [vmem:[#allocation3] sm:$0xff] %vm1697, %v4132
      %4228 = vst.msk [vmem:[#allocation3 + $0x8] sm:$0xff] %vm1697, %v4134
      %4229 = vst.msk [vmem:[#allocation3 + $0x10] sm:$0xff] %vm1697, %v4136
      %4230 = vst.msk [vmem:[#allocation3 + $0x18] sm:$0xff] %vm1697, %v4138
      %4231 = vst.msk [vmem:[#allocation3 + $0x20] sm:$0xff] %vm1697, %v4140
      %4232 = vst.msk [vmem:[#allocation3 + $0x28] sm:$0xff] %vm1697, %v4142
      %4233 = vst.msk [vmem:[#allocation3 + $0x30] sm:$0xff] %vm1697, %v4144
      %4234 = vst.msk [vmem:[#allocation3 + $0x38] sm:$0xff] %vm1697, %v4146
      %4235 = vst.msk [vmem:[#allocation3 + $0x40] sm:$0xff] %vm1697, %v4148
      %4236 = vst.msk [vmem:[#allocation3 + $0x48] sm:$0xff] %vm1697, %v4150
      %4237 = vst.msk [vmem:[#allocation3 + $0x50] sm:$0xff] %vm1697, %v4152
      %4238 = vst.msk [vmem:[#allocation3 + $0x58] sm:$0xff] %vm1697, %v4154
      %4239 = vst.msk [vmem:[#allocation3 + $0x60] sm:$0xff] %vm1697, %v4156
      %4240 = vst.msk [vmem:[#allocation3 + $0x68] sm:$0xff] %vm1697, %v4158
      %4241 = vst.msk [vmem:[#allocation3 + $0x70] sm:$0xff] %vm1697, %v4160
      %4242 = vst.msk [vmem:[#allocation3 + $0x78] sm:$0xff] %vm1697, %v4162
      %4243 = vst.msk [vmem:[#allocation3 + $0x80] sm:$0xff] %vm1697, %v4164
      %4244 = vst.msk [vmem:[#allocation3 + $0x88] sm:$0xff] %vm1697, %v4166
      %4245 = vst.msk [vmem:[#allocation3 + $0x90] sm:$0xff] %vm1697, %v4168
      %4246 = vst.msk [vmem:[#allocation3 + $0x98] sm:$0xff] %vm1697, %v4170
      %4247 = vst.msk [vmem:[#allocation3 + $0xa0] sm:$0xff] %vm1697, %v4172
      %4248 = vst.msk [vmem:[#allocation3 + $0xa8] sm:$0xff] %vm1697, %v4174
      %4249 = vst.msk [vmem:[#allocation3 + $0xb0] sm:$0xff] %vm1697, %v4176
      %4250 = vst.msk [vmem:[#allocation3 + $0xb8] sm:$0xff] %vm1697, %v4178
      %4251 = vst.msk [vmem:[#allocation3 + $0xc0] sm:$0xff] %vm1697, %v4180
      %4252 = vst.msk [vmem:[#allocation3 + $0xc8] sm:$0xff] %vm1697, %v4182
      %4253 = vst.msk [vmem:[#allocation3 + $0xd0] sm:$0xff] %vm1697, %v4184
      %4254 = vst.msk [vmem:[#allocation3 + $0xd8] sm:$0xff] %vm1697, %v4186
      %4255 = vst.msk [vmem:[#allocation3 + $0xe0] sm:$0xff] %vm1697, %v4188
      %4256 = vst.msk [vmem:[#allocation3 + $0xe8] sm:$0xff] %vm1697, %v4190
      %4257 = vst.msk [vmem:[#allocation3 + $0xf0] sm:$0xff] %vm1697, %v4192
      %4258 = vst.msk [vmem:[#allocation3 + $0xf8] sm:$0xff] %vm1697, %v4194
      %v4259 = vld [vmem:[%s1536 + $0x1] sm:$0xff]
      %v4260 = vld [vmem:[%s1536 + $0x9] sm:$0xff]
      %v4261 = vld [vmem:[%s1536 + $0x19] sm:$0xff]
      %v4262 = vld [vmem:[%s1536 + $0x21] sm:$0xff]
      %v4263 = vld [vmem:[%s1536 + $0x31] sm:$0xff]
      %v4264 = vld [vmem:[%s1536 + $0x39] sm:$0xff]
      %v4265 = vld [vmem:[%s1536 + $0x49] sm:$0xff]
      %v4266 = vld [vmem:[%s1536 + $0x51] sm:$0xff]
      %v4267 = vld [vmem:[%s1536 + $0x61] sm:$0xff]
      %v4268 = vld [vmem:[%s1536 + $0x69] sm:$0xff]
      %v4269 = vld [vmem:[%s1536 + $0x79] sm:$0xff]
      %v4270 = vld [vmem:[%s1536 + $0x81] sm:$0xff]
      %v4271 = vld [vmem:[%s1536 + $0x91] sm:$0xff]
      %v4272 = vld [vmem:[%s1536 + $0x99] sm:$0xff]
      %v4273 = vld [vmem:[%s1536 + $0xa9] sm:$0xff]
      %v4274 = vld [vmem:[%s1536 + $0xb1] sm:$0xff]
      %v4275 = vld [vmem:[%s1536 + $0xc1] sm:$0xff]
      %v4276 = vld [vmem:[%s1536 + $0xc9] sm:$0xff]
      %v4277 = vld [vmem:[%s1536 + $0xd9] sm:$0xff]
      %v4278 = vld [vmem:[%s1536 + $0xe1] sm:$0xff]
      %v4279 = vld [vmem:[%s1536 + $0xf1] sm:$0xff]
      %v4280 = vld [vmem:[%s1536 + $0xf9] sm:$0xff]
      %v4281 = vld [vmem:[%s1536 + $0x109] sm:$0xff]
      %v4282 = vld [vmem:[%s1536 + $0x111] sm:$0xff]
      %v4283 = vld [vmem:[%s1536 + $0x121] sm:$0xff]
      %v4284 = vld [vmem:[%s1536 + $0x129] sm:$0xff]
      %v4285 = vld [vmem:[%s1536 + $0x139] sm:$0xff]
      %v4286 = vld [vmem:[%s1536 + $0x141] sm:$0xff]
      %v4287 = vld [vmem:[%s1536 + $0x151] sm:$0xff]
      %v4288 = vld [vmem:[%s1536 + $0x159] sm:$0xff]
      %v4289 = vld [vmem:[%s1536 + $0x169] sm:$0xff]
      %v4290 = vld [vmem:[%s1536 + $0x171] sm:$0xff]
      %4323 = vrot.lane.b32.xlu0 %v4259, 28
      %v4324 = vpop.permute.xlu0 %4323
      %4325 = vrot.lane.b32.xlu0 %v4260, 28
      %v4326 = vpop.permute.xlu0 %4325
      %4327 = vrot.lane.b32.xlu0 %v4261, 28
      %v4328 = vpop.permute.xlu0 %4327
      %4329 = vrot.lane.b32.xlu0 %v4262, 28
      %v4330 = vpop.permute.xlu0 %4329
      %4331 = vrot.lane.b32.xlu0 %v4263, 28
      %v4332 = vpop.permute.xlu0 %4331
      %4333 = vrot.lane.b32.xlu0 %v4264, 28
      %v4334 = vpop.permute.xlu0 %4333
      %4335 = vrot.lane.b32.xlu0 %v4265, 28
      %v4336 = vpop.permute.xlu0 %4335
      %4337 = vrot.lane.b32.xlu0 %v4266, 28
      %v4338 = vpop.permute.xlu0 %4337
      %4339 = vrot.lane.b32.xlu0 %v4267, 28
      %v4340 = vpop.permute.xlu0 %4339
      %4341 = vrot.lane.b32.xlu0 %v4268, 28
      %v4342 = vpop.permute.xlu0 %4341
      %4343 = vrot.lane.b32.xlu0 %v4269, 28
      %v4344 = vpop.permute.xlu0 %4343
      %4345 = vrot.lane.b32.xlu0 %v4270, 28
      %v4346 = vpop.permute.xlu0 %4345
      %4347 = vrot.lane.b32.xlu0 %v4271, 28
      %v4348 = vpop.permute.xlu0 %4347
      %4349 = vrot.lane.b32.xlu0 %v4272, 28
      %v4350 = vpop.permute.xlu0 %4349
      %4351 = vrot.lane.b32.xlu0 %v4273, 28
      %v4352 = vpop.permute.xlu0 %4351
      %4353 = vrot.lane.b32.xlu0 %v4274, 28
      %v4354 = vpop.permute.xlu0 %4353
      %4355 = vrot.lane.b32.xlu0 %v4275, 28
      %v4356 = vpop.permute.xlu0 %4355
      %4357 = vrot.lane.b32.xlu0 %v4276, 28
      %v4358 = vpop.permute.xlu0 %4357
      %4359 = vrot.lane.b32.xlu0 %v4277, 28
      %v4360 = vpop.permute.xlu0 %4359
      %4361 = vrot.lane.b32.xlu0 %v4278, 28
      %v4362 = vpop.permute.xlu0 %4361
      %4363 = vrot.lane.b32.xlu0 %v4279, 28
      %v4364 = vpop.permute.xlu0 %4363
      %4365 = vrot.lane.b32.xlu0 %v4280, 28
      %v4366 = vpop.permute.xlu0 %4365
      %4367 = vrot.lane.b32.xlu0 %v4281, 28
      %v4368 = vpop.permute.xlu0 %4367
      %4369 = vrot.lane.b32.xlu0 %v4282, 28
      %v4370 = vpop.permute.xlu0 %4369
      %4371 = vrot.lane.b32.xlu0 %v4283, 28
      %v4372 = vpop.permute.xlu0 %4371
      %4373 = vrot.lane.b32.xlu0 %v4284, 28
      %v4374 = vpop.permute.xlu0 %4373
      %4375 = vrot.lane.b32.xlu0 %v4285, 28
      %v4376 = vpop.permute.xlu0 %4375
      %4377 = vrot.lane.b32.xlu0 %v4286, 28
      %v4378 = vpop.permute.xlu0 %4377
      %4379 = vrot.lane.b32.xlu0 %v4287, 28
      %v4380 = vpop.permute.xlu0 %4379
      %4381 = vrot.lane.b32.xlu0 %v4288, 28
      %v4382 = vpop.permute.xlu0 %4381
      %4383 = vrot.lane.b32.xlu0 %v4289, 28
      %v4384 = vpop.permute.xlu0 %4383
      %4385 = vrot.lane.b32.xlu0 %v4290, 28
      %v4386 = vpop.permute.xlu0 %4385
      %4419 = vst.msk [vmem:[#allocation3] sm:$0xff] %vm1890, %v4324
      %4420 = vst.msk [vmem:[#allocation3 + $0x8] sm:$0xff] %vm1890, %v4326
      %4421 = vst.msk [vmem:[#allocation3 + $0x10] sm:$0xff] %vm1890, %v4328
      %4422 = vst.msk [vmem:[#allocation3 + $0x18] sm:$0xff] %vm1890, %v4330
      %4423 = vst.msk [vmem:[#allocation3 + $0x20] sm:$0xff] %vm1890, %v4332
      %4424 = vst.msk [vmem:[#allocation3 + $0x28] sm:$0xff] %vm1890, %v4334
      %4425 = vst.msk [vmem:[#allocation3 + $0x30] sm:$0xff] %vm1890, %v4336
      %4426 = vst.msk [vmem:[#allocation3 + $0x38] sm:$0xff] %vm1890, %v4338
      %4427 = vst.msk [vmem:[#allocation3 + $0x40] sm:$0xff] %vm1890, %v4340
      %4428 = vst.msk [vmem:[#allocation3 + $0x48] sm:$0xff] %vm1890, %v4342
      %4429 = vst.msk [vmem:[#allocation3 + $0x50] sm:$0xff] %vm1890, %v4344
      %4430 = vst.msk [vmem:[#allocation3 + $0x58] sm:$0xff] %vm1890, %v4346
      %4431 = vst.msk [vmem:[#allocation3 + $0x60] sm:$0xff] %vm1890, %v4348
      %4432 = vst.msk [vmem:[#allocation3 + $0x68] sm:$0xff] %vm1890, %v4350
      %4433 = vst.msk [vmem:[#allocation3 + $0x70] sm:$0xff] %vm1890, %v4352
      %4434 = vst.msk [vmem:[#allocation3 + $0x78] sm:$0xff] %vm1890, %v4354
      %4435 = vst.msk [vmem:[#allocation3 + $0x80] sm:$0xff] %vm1890, %v4356
      %4436 = vst.msk [vmem:[#allocation3 + $0x88] sm:$0xff] %vm1890, %v4358
      %4437 = vst.msk [vmem:[#allocation3 + $0x90] sm:$0xff] %vm1890, %v4360
      %4438 = vst.msk [vmem:[#allocation3 + $0x98] sm:$0xff] %vm1890, %v4362
      %4439 = vst.msk [vmem:[#allocation3 + $0xa0] sm:$0xff] %vm1890, %v4364
      %4440 = vst.msk [vmem:[#allocation3 + $0xa8] sm:$0xff] %vm1890, %v4366
      %4441 = vst.msk [vmem:[#allocation3 + $0xb0] sm:$0xff] %vm1890, %v4368
      %4442 = vst.msk [vmem:[#allocation3 + $0xb8] sm:$0xff] %vm1890, %v4370
      %4443 = vst.msk [vmem:[#allocation3 + $0xc0] sm:$0xff] %vm1890, %v4372
      %4444 = vst.msk [vmem:[#allocation3 + $0xc8] sm:$0xff] %vm1890, %v4374
      %4445 = vst.msk [vmem:[#allocation3 + $0xd0] sm:$0xff] %vm1890, %v4376
      %4446 = vst.msk [vmem:[#allocation3 + $0xd8] sm:$0xff] %vm1890, %v4378
      %4447 = vst.msk [vmem:[#allocation3 + $0xe0] sm:$0xff] %vm1890, %v4380
      %4448 = vst.msk [vmem:[#allocation3 + $0xe8] sm:$0xff] %vm1890, %v4382
      %4449 = vst.msk [vmem:[#allocation3 + $0xf0] sm:$0xff] %vm1890, %v4384
      %4450 = vst.msk [vmem:[#allocation3 + $0xf8] sm:$0xff] %vm1890, %v4386
      %v4451 = vld [vmem:[%s1536 + $0x2] sm:$0xff]
      %v4452 = vld [vmem:[%s1536 + $0xa] sm:$0xff]
      %v4453 = vld [vmem:[%s1536 + $0x1a] sm:$0xff]
      %v4454 = vld [vmem:[%s1536 + $0x22] sm:$0xff]
      %v4455 = vld [vmem:[%s1536 + $0x32] sm:$0xff]
      %v4456 = vld [vmem:[%s1536 + $0x3a] sm:$0xff]
      %v4457 = vld [vmem:[%s1536 + $0x4a] sm:$0xff]
      %v4458 = vld [vmem:[%s1536 + $0x52] sm:$0xff]
      %v4459 = vld [vmem:[%s1536 + $0x62] sm:$0xff]
      %v4460 = vld [vmem:[%s1536 + $0x6a] sm:$0xff]
      %v4461 = vld [vmem:[%s1536 + $0x7a] sm:$0xff]
      %v4462 = vld [vmem:[%s1536 + $0x82] sm:$0xff]
      %v4463 = vld [vmem:[%s1536 + $0x92] sm:$0xff]
      %v4464 = vld [vmem:[%s1536 + $0x9a] sm:$0xff]
      %v4465 = vld [vmem:[%s1536 + $0xaa] sm:$0xff]
      %v4466 = vld [vmem:[%s1536 + $0xb2] sm:$0xff]
      %v4467 = vld [vmem:[%s1536 + $0xc2] sm:$0xff]
      %v4468 = vld [vmem:[%s1536 + $0xca] sm:$0xff]
      %v4469 = vld [vmem:[%s1536 + $0xda] sm:$0xff]
      %v4470 = vld [vmem:[%s1536 + $0xe2] sm:$0xff]
      %v4471 = vld [vmem:[%s1536 + $0xf2] sm:$0xff]
      %v4472 = vld [vmem:[%s1536 + $0xfa] sm:$0xff]
      %v4473 = vld [vmem:[%s1536 + $0x10a] sm:$0xff]
      %v4474 = vld [vmem:[%s1536 + $0x112] sm:$0xff]
      %v4475 = vld [vmem:[%s1536 + $0x122] sm:$0xff]
      %v4476 = vld [vmem:[%s1536 + $0x12a] sm:$0xff]
      %v4477 = vld [vmem:[%s1536 + $0x13a] sm:$0xff]
      %v4478 = vld [vmem:[%s1536 + $0x142] sm:$0xff]
      %v4479 = vld [vmem:[%s1536 + $0x152] sm:$0xff]
      %v4480 = vld [vmem:[%s1536 + $0x15a] sm:$0xff]
      %v4481 = vld [vmem:[%s1536 + $0x16a] sm:$0xff]
      %v4482 = vld [vmem:[%s1536 + $0x172] sm:$0xff]
      %4515 = vrot.lane.b32.xlu0 %v4451, 32
      %v4516 = vpop.permute.xlu0 %4515
      %4517 = vrot.lane.b32.xlu0 %v4452, 32
      %v4518 = vpop.permute.xlu0 %4517
      %4519 = vrot.lane.b32.xlu0 %v4453, 32
      %v4520 = vpop.permute.xlu0 %4519
      %4521 = vrot.lane.b32.xlu0 %v4454, 32
      %v4522 = vpop.permute.xlu0 %4521
      %4523 = vrot.lane.b32.xlu0 %v4455, 32
      %v4524 = vpop.permute.xlu0 %4523
      %4525 = vrot.lane.b32.xlu0 %v4456, 32
      %v4526 = vpop.permute.xlu0 %4525
      %4527 = vrot.lane.b32.xlu0 %v4457, 32
      %v4528 = vpop.permute.xlu0 %4527
      %4529 = vrot.lane.b32.xlu0 %v4458, 32
      %v4530 = vpop.permute.xlu0 %4529
      %4531 = vrot.lane.b32.xlu0 %v4459, 32
      %v4532 = vpop.permute.xlu0 %4531
      %4533 = vrot.lane.b32.xlu0 %v4460, 32
      %v4534 = vpop.permute.xlu0 %4533
      %4535 = vrot.lane.b32.xlu0 %v4461, 32
      %v4536 = vpop.permute.xlu0 %4535
      %4537 = vrot.lane.b32.xlu0 %v4462, 32
      %v4538 = vpop.permute.xlu0 %4537
      %4539 = vrot.lane.b32.xlu0 %v4463, 32
      %v4540 = vpop.permute.xlu0 %4539
      %4541 = vrot.lane.b32.xlu0 %v4464, 32
      %v4542 = vpop.permute.xlu0 %4541
      %4543 = vrot.lane.b32.xlu0 %v4465, 32
      %v4544 = vpop.permute.xlu0 %4543
      %4545 = vrot.lane.b32.xlu0 %v4466, 32
      %v4546 = vpop.permute.xlu0 %4545
      %4547 = vrot.lane.b32.xlu0 %v4467, 32
      %v4548 = vpop.permute.xlu0 %4547
      %4549 = vrot.lane.b32.xlu0 %v4468, 32
      %v4550 = vpop.permute.xlu0 %4549
      %4551 = vrot.lane.b32.xlu0 %v4469, 32
      %v4552 = vpop.permute.xlu0 %4551
      %4553 = vrot.lane.b32.xlu0 %v4470, 32
      %v4554 = vpop.permute.xlu0 %4553
      %4555 = vrot.lane.b32.xlu0 %v4471, 32
      %v4556 = vpop.permute.xlu0 %4555
      %4557 = vrot.lane.b32.xlu0 %v4472, 32
      %v4558 = vpop.permute.xlu0 %4557
      %4559 = vrot.lane.b32.xlu0 %v4473, 32
      %v4560 = vpop.permute.xlu0 %4559
      %4561 = vrot.lane.b32.xlu0 %v4474, 32
      %v4562 = vpop.permute.xlu0 %4561
      %4563 = vrot.lane.b32.xlu0 %v4475, 32
      %v4564 = vpop.permute.xlu0 %4563
      %4565 = vrot.lane.b32.xlu0 %v4476, 32
      %v4566 = vpop.permute.xlu0 %4565
      %4567 = vrot.lane.b32.xlu0 %v4477, 32
      %v4568 = vpop.permute.xlu0 %4567
      %4569 = vrot.lane.b32.xlu0 %v4478, 32
      %v4570 = vpop.permute.xlu0 %4569
      %4571 = vrot.lane.b32.xlu0 %v4479, 32
      %v4572 = vpop.permute.xlu0 %4571
      %4573 = vrot.lane.b32.xlu0 %v4480, 32
      %v4574 = vpop.permute.xlu0 %4573
      %4575 = vrot.lane.b32.xlu0 %v4481, 32
      %v4576 = vpop.permute.xlu0 %4575
      %4577 = vrot.lane.b32.xlu0 %v4482, 32
      %v4578 = vpop.permute.xlu0 %4577
      %4611 = vst.msk [vmem:[#allocation3] sm:$0xff] %vm2083, %v4516
      %4612 = vst.msk [vmem:[#allocation3 + $0x8] sm:$0xff] %vm2083, %v4518
      %4613 = vst.msk [vmem:[#allocation3 + $0x10] sm:$0xff] %vm2083, %v4520
      %4614 = vst.msk [vmem:[#allocation3 + $0x18] sm:$0xff] %vm2083, %v4522
      %4615 = vst.msk [vmem:[#allocation3 + $0x20] sm:$0xff] %vm2083, %v4524
      %4616 = vst.msk [vmem:[#allocation3 + $0x28] sm:$0xff] %vm2083, %v4526
      %4617 = vst.msk [vmem:[#allocation3 + $0x30] sm:$0xff] %vm2083, %v4528
      %4618 = vst.msk [vmem:[#allocation3 + $0x38] sm:$0xff] %vm2083, %v4530
      %4619 = vst.msk [vmem:[#allocation3 + $0x40] sm:$0xff] %vm2083, %v4532
      %4620 = vst.msk [vmem:[#allocation3 + $0x48] sm:$0xff] %vm2083, %v4534
      %4621 = vst.msk [vmem:[#allocation3 + $0x50] sm:$0xff] %vm2083, %v4536
      %4622 = vst.msk [vmem:[#allocation3 + $0x58] sm:$0xff] %vm2083, %v4538
      %4623 = vst.msk [vmem:[#allocation3 + $0x60] sm:$0xff] %vm2083, %v4540
      %4624 = vst.msk [vmem:[#allocation3 + $0x68] sm:$0xff] %vm2083, %v4542
      %4625 = vst.msk [vmem:[#allocation3 + $0x70] sm:$0xff] %vm2083, %v4544
      %4626 = vst.msk [vmem:[#allocation3 + $0x78] sm:$0xff] %vm2083, %v4546
      %4627 = vst.msk [vmem:[#allocation3 + $0x80] sm:$0xff] %vm2083, %v4548
      %4628 = vst.msk [vmem:[#allocation3 + $0x88] sm:$0xff] %vm2083, %v4550
      %4629 = vst.msk [vmem:[#allocation3 + $0x90] sm:$0xff] %vm2083, %v4552
      %4630 = vst.msk [vmem:[#allocation3 + $0x98] sm:$0xff] %vm2083, %v4554
      %4631 = vst.msk [vmem:[#allocation3 + $0xa0] sm:$0xff] %vm2083, %v4556
      %4632 = vst.msk [vmem:[#allocation3 + $0xa8] sm:$0xff] %vm2083, %v4558
      %4633 = vst.msk [vmem:[#allocation3 + $0xb0] sm:$0xff] %vm2083, %v4560
      %4634 = vst.msk [vmem:[#allocation3 + $0xb8] sm:$0xff] %vm2083, %v4562
      %4635 = vst.msk [vmem:[#allocation3 + $0xc0] sm:$0xff] %vm2083, %v4564
      %4636 = vst.msk [vmem:[#allocation3 + $0xc8] sm:$0xff] %vm2083, %v4566
      %4637 = vst.msk [vmem:[#allocation3 + $0xd0] sm:$0xff] %vm2083, %v4568
      %4638 = vst.msk [vmem:[#allocation3 + $0xd8] sm:$0xff] %vm2083, %v4570
      %4639 = vst.msk [vmem:[#allocation3 + $0xe0] sm:$0xff] %vm2083, %v4572
      %4640 = vst.msk [vmem:[#allocation3 + $0xe8] sm:$0xff] %vm2083, %v4574
      %4641 = vst.msk [vmem:[#allocation3 + $0xf0] sm:$0xff] %vm2083, %v4576
      %4642 = vst.msk [vmem:[#allocation3 + $0xf8] sm:$0xff] %vm2083, %v4578
      %v4643 = vld [vmem:[#allocation3] sm:$0xff]
      %v4644 = vld [vmem:[#allocation3 + $0x8] sm:$0xff]
      %v4645 = vld [vmem:[#allocation3 + $0x10] sm:$0xff]
      %v4646 = vld [vmem:[#allocation3 + $0x18] sm:$0xff]
      %v4647 = vld [vmem:[#allocation3 + $0x20] sm:$0xff]
      %v4648 = vld [vmem:[#allocation3 + $0x28] sm:$0xff]
      %v4649 = vld [vmem:[#allocation3 + $0x30] sm:$0xff]
      %v4650 = vld [vmem:[#allocation3 + $0x38] sm:$0xff]
      %v4651 = vld [vmem:[#allocation3 + $0x40] sm:$0xff]
      %v4652 = vld [vmem:[#allocation3 + $0x48] sm:$0xff]
      %v4653 = vld [vmem:[#allocation3 + $0x50] sm:$0xff]
      %v4654 = vld [vmem:[#allocation3 + $0x58] sm:$0xff]
      %v4655 = vld [vmem:[#allocation3 + $0x60] sm:$0xff]
      %v4656 = vld [vmem:[#allocation3 + $0x68] sm:$0xff]
      %v4657 = vld [vmem:[#allocation3 + $0x70] sm:$0xff]
      %v4658 = vld [vmem:[#allocation3 + $0x78] sm:$0xff]
      %v4659 = vld [vmem:[#allocation3 + $0x80] sm:$0xff]
      %v4660 = vld [vmem:[#allocation3 + $0x88] sm:$0xff]
      %v4661 = vld [vmem:[#allocation3 + $0x90] sm:$0xff]
      %v4662 = vld [vmem:[#allocation3 + $0x98] sm:$0xff]
      %v4663 = vld [vmem:[#allocation3 + $0xa0] sm:$0xff]
      %v4664 = vld [vmem:[#allocation3 + $0xa8] sm:$0xff]
      %v4665 = vld [vmem:[#allocation3 + $0xb0] sm:$0xff]
      %v4666 = vld [vmem:[#allocation3 + $0xb8] sm:$0xff]
      %v4667 = vld [vmem:[#allocation3 + $0xc0] sm:$0xff]
      %v4668 = vld [vmem:[#allocation3 + $0xc8] sm:$0xff]
      %v4669 = vld [vmem:[#allocation3 + $0xd0] sm:$0xff]
      %v4670 = vld [vmem:[#allocation3 + $0xd8] sm:$0xff]
      %v4671 = vld [vmem:[#allocation3 + $0xe0] sm:$0xff]
      %v4672 = vld [vmem:[#allocation3 + $0xe8] sm:$0xff]
      %v4673 = vld [vmem:[#allocation3 + $0xf0] sm:$0xff]
      %v4674 = vld [vmem:[#allocation3 + $0xf8] sm:$0xff]
      %v4676 = vsel %vm2148, %v4643, 0
      %v4679 = vsel %vm2148, %v4644, 0
      %v4682 = vsel %vm2148, %v4645, 0
      %v4685 = vsel %vm2148, %v4646, 0
      %v4688 = vsel %vm2148, %v4647, 0
      %v4691 = vsel %vm2148, %v4648, 0
      %v4694 = vsel %vm2148, %v4649, 0
      %v4697 = vsel %vm2148, %v4650, 0
      %v4700 = vsel %vm2148, %v4651, 0
      %v4703 = vsel %vm2148, %v4652, 0
      %v4706 = vsel %vm2148, %v4653, 0
      %v4709 = vsel %vm2148, %v4654, 0
      %v4712 = vsel %vm2148, %v4655, 0
      %v4715 = vsel %vm2148, %v4656, 0
      %v4718 = vsel %vm2148, %v4657, 0
      %v4721 = vsel %vm2148, %v4658, 0
      %v4724 = vsel %vm2148, %v4659, 0
      %v4727 = vsel %vm2148, %v4660, 0
      %v4730 = vsel %vm2148, %v4661, 0
      %v4733 = vsel %vm2148, %v4662, 0
      %v4736 = vsel %vm2148, %v4663, 0
      %v4739 = vsel %vm2148, %v4664, 0
      %v4742 = vsel %vm2148, %v4665, 0
      %v4745 = vsel %vm2148, %v4666, 0
      %v4748 = vsel %vm2148, %v4667, 0
      %v4751 = vsel %vm2148, %v4668, 0
      %v4754 = vsel %vm2148, %v4669, 0
      %v4757 = vsel %vm2148, %v4670, 0
      %v4760 = vsel %vm2148, %v4671, 0
      %v4763 = vsel %vm2148, %v4672, 0
      %v4766 = vsel %vm2148, %v4673, 0
      %v4769 = vsel %vm2148, %v4674, 0
      %v4772 = vsel %vm2245, %v3008, 0
      %4774 = vmatprep.subr.mxu0 0.0
      %4775 = vmatpush1.msra.mxu0 0.0
      %4776 = vmatprep.subr.mxu0 0.0
      %4777 = vmatpush1.msra.mxu0 0.0
      %4778 = vmatprep.subr.mxu0 0.0
      %4779 = vmatpush1.msra.mxu0 0.0
      %4780 = vmatprep.subr.mxu0 0.0
      %4781 = vmatpush1.msra.mxu0 0.0
      %4782 = vmatprep.subr.mxu0 0.0
      %4783 = vmatpush1.msra.mxu0 0.0
      %4784 = vmatprep.subr.mxu0 0.0
      %4785 = vmatpush1.msra.mxu0 0.0
      %4786 = vmatprep.subr.mxu0 0.0
      %4787 = vmatpush1.msra.mxu0 0.0
      %4788 = vmatprep.subr.mxu0 0.0
      %4789 = vmatpush1.msra.mxu0 0.0
      %4790 = vmatprep.subr.mxu0 0.0
      %4791 = vmatpush1.msra.mxu0 0.0
      %4792 = vmatprep.subr.mxu0 0.0
      %4793 = vmatpush1.msra.mxu0 0.0
      %4794 = vmatprep.subr.mxu0 0.0
      %4795 = vmatpush1.msra.mxu0 0.0
      %4796 = vmatprep.subr.mxu0 0.0
      %4797 = vmatpush1.msra.mxu0 %v4772
      %4798 = vmatprep.subr.mxu0 0.0
      %4799 = vmatpush1.msra.mxu0 %v3007
      %4800 = vmatprep.subr.mxu0 0.0
      %4801 = vmatpush1.msra.mxu0 %v3006
      %4802 = vmatprep.subr.mxu0 0.0
      %4803 = vmatpush1.msra.mxu0 %v3005
      %4804 = vmatprep.subr.mxu0 0.0
      %4805 = vmatpush1.msra.mxu0 %v3004
      %4806 = vmatprep.subr.mxu0 0.0
      %4807 = vmatpush2.msra.mxu0 0.0
      %4808 = vmatprep.subr.mxu0 0.0
      %4809 = vmatpush2.msra.mxu0 0.0
      %4810 = vmatprep.subr.mxu0 0.0
      %4811 = vmatpush2.msra.mxu0 0.0
      %4812 = vmatprep.subr.mxu0 0.0
      %4813 = vmatpush2.msra.mxu0 0.0
      %4814 = vmatprep.subr.mxu0 0.0
      %4815 = vmatpush2.msra.mxu0 0.0
      %4816 = vmatprep.subr.mxu0 0.0
      %4817 = vmatpush2.msra.mxu0 0.0
      %4818 = vmatprep.subr.mxu0 0.0
      %4819 = vmatpush2.msra.mxu0 0.0
      %4820 = vmatprep.subr.mxu0 0.0
      %4821 = vmatpush2.msra.mxu0 0.0
      %4822 = vmatprep.subr.mxu0 0.0
      %4823 = vmatpush2.msra.mxu0 0.0
      %4824 = vmatprep.subr.mxu0 0.0
      %4825 = vmatpush2.msra.mxu0 0.0
      %4826 = vmatprep.subr.mxu0 0.0
      %4827 = vmatpush2.msra.mxu0 0.0
      %4828 = vmatprep.subr.mxu0 0.0
      %4829 = vmatpush2.msra.mxu0 0.0
      %4830 = vmatprep.subr.mxu0 0.0
      %4831 = vmatpush2.msra.mxu0 0.0
      %4832 = vmatprep.subr.mxu0 0.0
      %4833 = vmatpush2.msra.mxu0 0.0
      %4834 = vmatprep.subr.mxu0 0.0
      %4835 = vmatpush2.msra.mxu0 0.0
      %4836 = vmatprep.subr.mxu0 0.0
      %4837 = vmatpush2.msra.mxu0 0.0
      %4838 = vmatprep.mubr.f32.mxu0 0.0
      %4839 = vmatmul.mubr.f32.gmra.mxu0 %v4676
      %v4840 = vpop.f32.mrf.mxu0
      %v4841 = vadd.f32 0.0, %v4840
      %v4842 = vpop.f32.mrf.mxu0
      %4843 = vmatprep.mubr.f32.mxu0 0.0
      %4844 = vmatmul.mubr.f32.gmra.mxu0 %v4679
      %v4845 = vpop.f32.mrf.mxu0
      %v4846 = vadd.f32 0.0, %v4845
      %v4847 = vpop.f32.mrf.mxu0
      %4848 = vmatprep.mubr.f32.mxu0 0.0
      %4849 = vmatmul.mubr.f32.gmra.mxu0 %v4682
      %v4850 = vpop.f32.mrf.mxu0
      %v4851 = vadd.f32 0.0, %v4850
      %v4852 = vpop.f32.mrf.mxu0
      %4853 = vmatprep.mubr.f32.mxu0 0.0
      %4854 = vmatmul.mubr.f32.gmra.mxu0 %v4685
      %v4855 = vpop.f32.mrf.mxu0
      %v4856 = vadd.f32 0.0, %v4855
      %v4857 = vpop.f32.mrf.mxu0
      %4858 = vmatprep.mubr.f32.mxu0 0.0
      %4859 = vmatmul.mubr.f32.gmra.mxu0 %v4688
      %v4860 = vpop.f32.mrf.mxu0
      %v4861 = vadd.f32 0.0, %v4860
      %v4862 = vpop.f32.mrf.mxu0
      %4863 = vmatprep.mubr.f32.mxu0 0.0
      %4864 = vmatmul.mubr.f32.gmra.mxu0 %v4691
      %v4865 = vpop.f32.mrf.mxu0
      %v4866 = vadd.f32 0.0, %v4865
      %v4867 = vpop.f32.mrf.mxu0
      %4868 = vmatprep.mubr.f32.mxu0 0.0
      %4869 = vmatmul.mubr.f32.gmra.mxu0 %v4694
      %v4870 = vpop.f32.mrf.mxu0
      %v4871 = vadd.f32 0.0, %v4870
      %v4872 = vpop.f32.mrf.mxu0
      %4873 = vmatprep.mubr.f32.mxu0 0.0
      %4874 = vmatmul.mubr.f32.gmra.mxu0 %v4697
      %v4875 = vpop.f32.mrf.mxu0
      %v4876 = vadd.f32 0.0, %v4875
      %v4877 = vpop.f32.mrf.mxu0
      %4878 = vmatprep.mubr.f32.mxu0 0.0
      %4879 = vmatmul.mubr.f32.gmra.mxu0 %v4700
      %v4880 = vpop.f32.mrf.mxu0
      %v4881 = vadd.f32 0.0, %v4880
      %v4882 = vpop.f32.mrf.mxu0
      %4883 = vmatprep.mubr.f32.mxu0 0.0
      %4884 = vmatmul.mubr.f32.gmra.mxu0 %v4703
      %v4885 = vpop.f32.mrf.mxu0
      %v4886 = vadd.f32 0.0, %v4885
      %v4887 = vpop.f32.mrf.mxu0
      %4888 = vmatprep.mubr.f32.mxu0 0.0
      %4889 = vmatmul.mubr.f32.gmra.mxu0 %v4706
      %v4890 = vpop.f32.mrf.mxu0
      %v4891 = vadd.f32 0.0, %v4890
      %v4892 = vpop.f32.mrf.mxu0
      %4893 = vmatprep.mubr.f32.mxu0 0.0
      %4894 = vmatmul.mubr.f32.gmra.mxu0 %v4709
      %v4895 = vpop.f32.mrf.mxu0
      %v4896 = vadd.f32 0.0, %v4895
      %v4897 = vpop.f32.mrf.mxu0
      %4898 = vmatprep.mubr.f32.mxu0 0.0
      %4899 = vmatmul.mubr.f32.gmra.mxu0 %v4712
      %v4900 = vpop.f32.mrf.mxu0
      %v4901 = vadd.f32 0.0, %v4900
      %v4902 = vpop.f32.mrf.mxu0
      %4903 = vmatprep.mubr.f32.mxu0 0.0
      %4904 = vmatmul.mubr.f32.gmra.mxu0 %v4715
      %v4905 = vpop.f32.mrf.mxu0
      %v4906 = vadd.f32 0.0, %v4905
      %v4907 = vpop.f32.mrf.mxu0
      %4908 = vmatprep.mubr.f32.mxu0 0.0
      %4909 = vmatmul.mubr.f32.gmra.mxu0 %v4718
      %v4910 = vpop.f32.mrf.mxu0
      %v4911 = vadd.f32 0.0, %v4910
      %v4912 = vpop.f32.mrf.mxu0
      %4913 = vmatprep.mubr.f32.mxu0 0.0
      %4914 = vmatmul.mubr.f32.gmra.mxu0 %v4721
      %v4915 = vpop.f32.mrf.mxu0
      %v4916 = vadd.f32 0.0, %v4915
      %v4917 = vpop.f32.mrf.mxu0
      %4918 = vmatprep.mubr.f32.mxu0 0.0
      %4919 = vmatmul.mubr.f32.gmra.mxu0 %v4724
      %v4920 = vpop.f32.mrf.mxu0
      %v4921 = vadd.f32 0.0, %v4920
      %v4922 = vpop.f32.mrf.mxu0
      %4923 = vmatprep.mubr.f32.mxu0 0.0
      %4924 = vmatmul.mubr.f32.gmra.mxu0 %v4727
      %v4925 = vpop.f32.mrf.mxu0
      %v4926 = vadd.f32 0.0, %v4925
      %v4927 = vpop.f32.mrf.mxu0
      %4928 = vmatprep.mubr.f32.mxu0 0.0
      %4929 = vmatmul.mubr.f32.gmra.mxu0 %v4730
      %v4930 = vpop.f32.mrf.mxu0
      %v4931 = vadd.f32 0.0, %v4930
      %v4932 = vpop.f32.mrf.mxu0
      %4933 = vmatprep.mubr.f32.mxu0 0.0
      %4934 = vmatmul.mubr.f32.gmra.mxu0 %v4733
      %v4935 = vpop.f32.mrf.mxu0
      %v4936 = vadd.f32 0.0, %v4935
      %v4937 = vpop.f32.mrf.mxu0
      %4938 = vmatprep.mubr.f32.mxu0 0.0
      %4939 = vmatmul.mubr.f32.gmra.mxu0 %v4736
      %v4940 = vpop.f32.mrf.mxu0
      %v4941 = vadd.f32 0.0, %v4940
      %v4942 = vpop.f32.mrf.mxu0
      %4943 = vmatprep.mubr.f32.mxu0 0.0
      %4944 = vmatmul.mubr.f32.gmra.mxu0 %v4739
      %v4945 = vpop.f32.mrf.mxu0
      %v4946 = vadd.f32 0.0, %v4945
      %v4947 = vpop.f32.mrf.mxu0
      %4948 = vmatprep.mubr.f32.mxu0 0.0
      %4949 = vmatmul.mubr.f32.gmra.mxu0 %v4742
      %v4950 = vpop.f32.mrf.mxu0
      %v4951 = vadd.f32 0.0, %v4950
      %v4952 = vpop.f32.mrf.mxu0
      %4953 = vmatprep.mubr.f32.mxu0 0.0
      %4954 = vmatmul.mubr.f32.gmra.mxu0 %v4745
      %v4955 = vpop.f32.mrf.mxu0
      %v4956 = vadd.f32 0.0, %v4955
      %v4957 = vpop.f32.mrf.mxu0
      %4958 = vmatprep.mubr.f32.mxu0 0.0
      %4959 = vmatmul.mubr.f32.gmra.mxu0 %v4748
      %v4960 = vpop.f32.mrf.mxu0
      %v4961 = vadd.f32 0.0, %v4960
      %v4962 = vpop.f32.mrf.mxu0
      %4963 = vmatprep.mubr.f32.mxu0 0.0
      %4964 = vmatmul.mubr.f32.gmra.mxu0 %v4751
      %v4965 = vpop.f32.mrf.mxu0
      %v4966 = vadd.f32 0.0, %v4965
      %v4967 = vpop.f32.mrf.mxu0
      %4968 = vmatprep.mubr.f32.mxu0 0.0
      %4969 = vmatmul.mubr.f32.gmra.mxu0 %v4754
      %v4970 = vpop.f32.mrf.mxu0
      %v4971 = vadd.f32 0.0, %v4970
      %v4972 = vpop.f32.mrf.mxu0
      %4973 = vmatprep.mubr.f32.mxu0 0.0
      %4974 = vmatmul.mubr.f32.gmra.mxu0 %v4757
      %v4975 = vpop.f32.mrf.mxu0
      %v4976 = vadd.f32 0.0, %v4975
      %v4977 = vpop.f32.mrf.mxu0
      %4978 = vmatprep.mubr.f32.mxu0 0.0
      %4979 = vmatmul.mubr.f32.gmra.mxu0 %v4760
      %v4980 = vpop.f32.mrf.mxu0
      %v4981 = vadd.f32 0.0, %v4980
      %v4982 = vpop.f32.mrf.mxu0
      %4983 = vmatprep.mubr.f32.mxu0 0.0
      %4984 = vmatmul.mubr.f32.gmra.mxu0 %v4763
      %v4985 = vpop.f32.mrf.mxu0
      %v4986 = vadd.f32 0.0, %v4985
      %v4987 = vpop.f32.mrf.mxu0
      %4988 = vmatprep.mubr.f32.mxu0 0.0
      %4989 = vmatmul.mubr.f32.gmra.mxu0 %v4766
      %v4990 = vpop.f32.mrf.mxu0
      %v4991 = vadd.f32 0.0, %v4990
      %v4992 = vpop.f32.mrf.mxu0
      %4993 = vmatprep.mubr.f32.mxu0 0.0
      %4994 = vmatmul.mubr.f32.gmra.mxu0 %v4769
      %v4995 = vpop.f32.mrf.mxu0
      %v4996 = vadd.f32 0.0, %v4995
      %v4997 = vpop.f32.mrf.mxu0
      %4998 = vdwg.mxu0
      %v4999 = vadd.f32 %v4841, %v3009
      %v5000 = vadd.f32 %v4846, %v3010
      %v5001 = vadd.f32 %v4851, %v3011
      %v5002 = vadd.f32 %v4856, %v3012
      %v5003 = vadd.f32 %v4861, %v3013
      %v5004 = vadd.f32 %v4866, %v3014
      %v5005 = vadd.f32 %v4871, %v3015
      %v5006 = vadd.f32 %v4876, %v3016
      %v5007 = vadd.f32 %v4881, %v3017
      %v5008 = vadd.f32 %v4886, %v3018
      %v5009 = vadd.f32 %v4891, %v3019
      %v5010 = vadd.f32 %v4896, %v3020
      %v5011 = vadd.f32 %v4901, %v3021
      %v5012 = vadd.f32 %v4906, %v3022
      %v5013 = vadd.f32 %v4911, %v3023
      %v5014 = vadd.f32 %v4916, %v3024
      %v5015 = vadd.f32 %v4921, %v3025
      %v5016 = vadd.f32 %v4926, %v3026
      %v5017 = vadd.f32 %v4931, %v3027
      %v5018 = vadd.f32 %v4936, %v3028
      %v5019 = vadd.f32 %v4941, %v3029
      %v5020 = vadd.f32 %v4946, %v3030
      %v5021 = vadd.f32 %v4951, %v3031
      %v5022 = vadd.f32 %v4956, %v3032
      %v5023 = vadd.f32 %v4961, %v3033
      %v5024 = vadd.f32 %v4966, %v3034
      %v5025 = vadd.f32 %v4971, %v3035
      %v5026 = vadd.f32 %v4976, %v3036
      %v5027 = vadd.f32 %v4981, %v3037
      %v5028 = vadd.f32 %v4986, %v3038
      %v5029 = vadd.f32 %v4991, %v3039
      %v5030 = vadd.f32 %v4996, %v3040
      %v5031 = vsel %vm360, %v4999, 0.0
      %v5032 = vsel %vm360, %v5000, 0.0
      %v5033 = vadd.f32 %v5031, %v5032
      %v5034 = vsel %vm360, %v5001, 0.0
      %v5035 = vadd.f32 %v5033, %v5034
      %v5036 = vsel %vm360, %v5002, 0.0
      %v5037 = vadd.f32 %v5035, %v5036
      %v5038 = vsel %vm360, %v5003, 0.0
      %v5039 = vadd.f32 %v5037, %v5038
      %v5040 = vsel %vm360, %v5004, 0.0
      %v5041 = vadd.f32 %v5039, %v5040
      %v5042 = vsel %vm360, %v5005, 0.0
      %v5043 = vadd.f32 %v5041, %v5042
      %v5044 = vsel %vm360, %v5006, 0.0
      %v5045 = vadd.f32 %v5043, %v5044
      %v5046 = vsel %vm360, %v5007, 0.0
      %v5047 = vadd.f32 %v5045, %v5046
      %v5048 = vsel %vm360, %v5008, 0.0
      %v5049 = vadd.f32 %v5047, %v5048
      %v5050 = vsel %vm360, %v5009, 0.0
      %v5051 = vadd.f32 %v5049, %v5050
      %v5052 = vsel %vm360, %v5010, 0.0
      %v5053 = vadd.f32 %v5051, %v5052
      %v5054 = vsel %vm360, %v5011, 0.0
      %v5055 = vadd.f32 %v5053, %v5054
      %v5056 = vsel %vm360, %v5012, 0.0
      %v5057 = vadd.f32 %v5055, %v5056
      %v5058 = vsel %vm360, %v5013, 0.0
      %v5059 = vadd.f32 %v5057, %v5058
      %v5060 = vsel %vm360, %v5014, 0.0
      %v5061 = vadd.f32 %v5059, %v5060
      %v5062 = vsel %vm360, %v5015, 0.0
      %v5063 = vadd.f32 %v5061, %v5062
      %v5064 = vsel %vm360, %v5016, 0.0
      %v5065 = vadd.f32 %v5063, %v5064
      %v5066 = vsel %vm360, %v5017, 0.0
      %v5067 = vadd.f32 %v5065, %v5066
      %v5068 = vsel %vm360, %v5018, 0.0
      %v5069 = vadd.f32 %v5067, %v5068
      %v5070 = vsel %vm360, %v5019, 0.0
      %v5071 = vadd.f32 %v5069, %v5070
      %v5072 = vsel %vm360, %v5020, 0.0
      %v5073 = vadd.f32 %v5071, %v5072
      %v5074 = vsel %vm360, %v5021, 0.0
      %v5075 = vadd.f32 %v5073, %v5074
      %v5076 = vsel %vm360, %v5022, 0.0
      %v5077 = vadd.f32 %v5075, %v5076
      %v5078 = vsel %vm360, %v5023, 0.0
      %v5079 = vadd.f32 %v5077, %v5078
      %v5080 = vsel %vm360, %v5024, 0.0
      %v5081 = vadd.f32 %v5079, %v5080
      %v5082 = vsel %vm360, %v5025, 0.0
      %v5083 = vadd.f32 %v5081, %v5082
      %v5084 = vsel %vm360, %v5026, 0.0
      %v5085 = vadd.f32 %v5083, %v5084
      %v5086 = vsel %vm360, %v5027, 0.0
      %v5087 = vadd.f32 %v5085, %v5086
      %v5088 = vsel %vm360, %v5028, 0.0
      %v5089 = vadd.f32 %v5087, %v5088
      %v5090 = vsel %vm360, %v5029, 0.0
      %v5091 = vadd.f32 %v5089, %v5090
      %v5092 = vsel %vm360, %v5030, 0.0
      %v5093 = vadd.f32 %v5091, %v5092
      %v5094 = vrot.slane %v5093, 4
      %v5095 = vadd.f32 %v5093, %v5094
      %v5096 = vrot.slane %v5095, 2
      %v5097 = vadd.f32 %v5095, %v5096
      %v5098 = vrot.slane %v5097, 1
      %v5099 = vadd.f32 %v5097, %v5098
      %v5100 = vmul.f32 %v4999, %v4999
      %v5101 = vmul.f32 %v5000, %v5000
      %v5102 = vmul.f32 %v5001, %v5001
      %v5103 = vmul.f32 %v5002, %v5002
      %v5104 = vmul.f32 %v5003, %v5003
      %v5105 = vmul.f32 %v5004, %v5004
      %v5106 = vmul.f32 %v5005, %v5005
      %v5107 = vmul.f32 %v5006, %v5006
      %v5108 = vmul.f32 %v5007, %v5007
      %v5109 = vmul.f32 %v5008, %v5008
      %v5110 = vmul.f32 %v5009, %v5009
      %v5111 = vmul.f32 %v5010, %v5010
      %v5112 = vmul.f32 %v5011, %v5011
      %v5113 = vmul.f32 %v5012, %v5012
      %v5114 = vmul.f32 %v5013, %v5013
      %v5115 = vmul.f32 %v5014, %v5014
      %v5116 = vmul.f32 %v5015, %v5015
      %v5117 = vmul.f32 %v5016, %v5016
      %v5118 = vmul.f32 %v5017, %v5017
      %v5119 = vmul.f32 %v5018, %v5018
      %v5120 = vmul.f32 %v5019, %v5019
      %v5121 = vmul.f32 %v5020, %v5020
      %v5122 = vmul.f32 %v5021, %v5021
      %v5123 = vmul.f32 %v5022, %v5022
      %v5124 = vmul.f32 %v5023, %v5023
      %v5125 = vmul.f32 %v5024, %v5024
      %v5126 = vmul.f32 %v5025, %v5025
      %v5127 = vmul.f32 %v5026, %v5026
      %v5128 = vmul.f32 %v5027, %v5027
      %v5129 = vmul.f32 %v5028, %v5028
      %v5130 = vmul.f32 %v5029, %v5029
      %v5131 = vmul.f32 %v5030, %v5030
      %v5132 = vsel %vm360, %v5100, 0.0
      %v5133 = vsel %vm360, %v5101, 0.0
      %v5134 = vadd.f32 %v5132, %v5133
      %v5135 = vsel %vm360, %v5102, 0.0
      %v5136 = vadd.f32 %v5134, %v5135
      %v5137 = vsel %vm360, %v5103, 0.0
      %v5138 = vadd.f32 %v5136, %v5137
      %v5139 = vsel %vm360, %v5104, 0.0
      %v5140 = vadd.f32 %v5138, %v5139
      %v5141 = vsel %vm360, %v5105, 0.0
      %v5142 = vadd.f32 %v5140, %v5141
      %v5143 = vsel %vm360, %v5106, 0.0
      %v5144 = vadd.f32 %v5142, %v5143
      %v5145 = vsel %vm360, %v5107, 0.0
      %v5146 = vadd.f32 %v5144, %v5145
      %v5147 = vsel %vm360, %v5108, 0.0
      %v5148 = vadd.f32 %v5146, %v5147
      %v5149 = vsel %vm360, %v5109, 0.0
      %v5150 = vadd.f32 %v5148, %v5149
      %v5151 = vsel %vm360, %v5110, 0.0
      %v5152 = vadd.f32 %v5150, %v5151
      %v5153 = vsel %vm360, %v5111, 0.0
      %v5154 = vadd.f32 %v5152, %v5153
      %v5155 = vsel %vm360, %v5112, 0.0
      %v5156 = vadd.f32 %v5154, %v5155
      %v5157 = vsel %vm360, %v5113, 0.0
      %v5158 = vadd.f32 %v5156, %v5157
      %v5159 = vsel %vm360, %v5114, 0.0
      %v5160 = vadd.f32 %v5158, %v5159
      %v5161 = vsel %vm360, %v5115, 0.0
      %v5162 = vadd.f32 %v5160, %v5161
      %v5163 = vsel %vm360, %v5116, 0.0
      %v5164 = vadd.f32 %v5162, %v5163
      %v5165 = vsel %vm360, %v5117, 0.0
      %v5166 = vadd.f32 %v5164, %v5165
      %v5167 = vsel %vm360, %v5118, 0.0
      %v5168 = vadd.f32 %v5166, %v5167
      %v5169 = vsel %vm360, %v5119, 0.0
      %v5170 = vadd.f32 %v5168, %v5169
      %v5171 = vsel %vm360, %v5120, 0.0
      %v5172 = vadd.f32 %v5170, %v5171
      %v5173 = vsel %vm360, %v5121, 0.0
      %v5174 = vadd.f32 %v5172, %v5173
      %v5175 = vsel %vm360, %v5122, 0.0
      %v5176 = vadd.f32 %v5174, %v5175
      %v5177 = vsel %vm360, %v5123, 0.0
      %v5178 = vadd.f32 %v5176, %v5177
      %v5179 = vsel %vm360, %v5124, 0.0
      %v5180 = vadd.f32 %v5178, %v5179
      %v5181 = vsel %vm360, %v5125, 0.0
      %v5182 = vadd.f32 %v5180, %v5181
      %v5183 = vsel %vm360, %v5126, 0.0
      %v5184 = vadd.f32 %v5182, %v5183
      %v5185 = vsel %vm360, %v5127, 0.0
      %v5186 = vadd.f32 %v5184, %v5185
      %v5187 = vsel %vm360, %v5128, 0.0
      %v5188 = vadd.f32 %v5186, %v5187
      %v5189 = vsel %vm360, %v5129, 0.0
      %v5190 = vadd.f32 %v5188, %v5189
      %v5191 = vsel %vm360, %v5130, 0.0
      %v5192 = vadd.f32 %v5190, %v5191
      %v5193 = vsel %vm360, %v5131, 0.0
      %v5194 = vadd.f32 %v5192, %v5193
      %v5195 = vrot.slane %v5194, 4
      %v5196 = vadd.f32 %v5194, %v5195
      %v5197 = vrot.slane %v5196, 2
      %v5198 = vadd.f32 %v5196, %v5197
      %v5199 = vrot.slane %v5198, 1
      %v5200 = vadd.f32 %v5198, %v5199
      %v5202 = vsel %vm360, %v5099, 0
      %5204 = vmatprep.subr.mxu0 0.0
      %5205 = vmatpush1.msra.mxu0 0.0
      %5206 = vmatprep.subr.mxu0 0.0
      %5207 = vmatpush1.msra.mxu0 0.0
      %5208 = vmatprep.subr.mxu0 0.0
      %5209 = vmatpush1.msra.mxu0 0.0
      %5210 = vmatprep.subr.mxu0 0.0
      %5211 = vmatpush1.msra.mxu0 0.0
      %5212 = vmatprep.subr.mxu0 0.0
      %5213 = vmatpush1.msra.mxu0 0.0
      %5214 = vmatprep.subr.mxu0 0.0
      %5215 = vmatpush1.msra.mxu0 0.0
      %5216 = vmatprep.subr.mxu0 0.0
      %5217 = vmatpush1.msra.mxu0 0.0
      %5218 = vmatprep.subr.mxu0 0.0
      %5219 = vmatpush1.msra.mxu0 0.0
      %5220 = vmatprep.subr.mxu0 0.0
      %5221 = vmatpush1.msra.mxu0 0.0
      %5222 = vmatprep.subr.mxu0 0.0
      %5223 = vmatpush1.msra.mxu0 0.0
      %5224 = vmatprep.subr.mxu0 0.0
      %5225 = vmatpush1.msra.mxu0 0.0
      %5226 = vmatprep.subr.mxu0 0.0
      %5227 = vmatpush1.msra.mxu0 0.0
      %5228 = vmatprep.subr.mxu0 0.0
      %5229 = vmatpush1.msra.mxu0 0.0
      %5230 = vmatprep.subr.mxu0 0.0
      %5231 = vmatpush1.msra.mxu0 0.0
      %5232 = vmatprep.subr.mxu0 0.0
      %5233 = vmatpush1.msra.mxu0 0.0
      %5234 = vmatprep.subr.mxu0 0.0
      %5235 = vmatpush1.msra.mxu0 %v2680
      %5236 = vmatprep.subr.mxu0 0.0
      %5237 = vmatpush2.msra.mxu0 0.0
      %5238 = vmatprep.subr.mxu0 0.0
      %5239 = vmatpush2.msra.mxu0 0.0
      %5240 = vmatprep.subr.mxu0 0.0
      %5241 = vmatpush2.msra.mxu0 0.0
      %5242 = vmatprep.subr.mxu0 0.0
      %5243 = vmatpush2.msra.mxu0 0.0
      %5244 = vmatprep.subr.mxu0 0.0
      %5245 = vmatpush2.msra.mxu0 0.0
      %5246 = vmatprep.subr.mxu0 0.0
      %5247 = vmatpush2.msra.mxu0 0.0
      %5248 = vmatprep.subr.mxu0 0.0
      %5249 = vmatpush2.msra.mxu0 0.0
      %5250 = vmatprep.subr.mxu0 0.0
      %5251 = vmatpush2.msra.mxu0 0.0
      %5252 = vmatprep.subr.mxu0 0.0
      %5253 = vmatpush2.msra.mxu0 0.0
      %5254 = vmatprep.subr.mxu0 0.0
      %5255 = vmatpush2.msra.mxu0 0.0
      %5256 = vmatprep.subr.mxu0 0.0
      %5257 = vmatpush2.msra.mxu0 0.0
      %5258 = vmatprep.subr.mxu0 0.0
      %5259 = vmatpush2.msra.mxu0 0.0
      %5260 = vmatprep.subr.mxu0 0.0
      %5261 = vmatpush2.msra.mxu0 0.0
      %5262 = vmatprep.subr.mxu0 0.0
      %5263 = vmatpush2.msra.mxu0 0.0
      %5264 = vmatprep.subr.mxu0 0.0
      %5265 = vmatpush2.msra.mxu0 0.0
      %5266 = vmatprep.subr.mxu0 0.0
      %5267 = vmatpush2.msra.mxu0 0.0
      %5268 = vmatprep.mubr.f32.mxu0 0.0
      %5269 = vmatmul.mubr.f32.gmra.mxu0 %v5202
      %v5270 = vpop.f32.mrf.mxu0
      %v5271 = vadd.f32 0.0, %v5270
      %v5272 = vpop.f32.mrf.mxu0
      %5273 = vdwg.mxu0
      %v5275 = vsel %vm360, %v5200, 0
      %5277 = vmatprep.subr.mxu0 0.0
      %5278 = vmatpush1.msra.mxu0 0.0
      %5279 = vmatprep.subr.mxu0 0.0
      %5280 = vmatpush1.msra.mxu0 0.0
      %5281 = vmatprep.subr.mxu0 0.0
      %5282 = vmatpush1.msra.mxu0 0.0
      %5283 = vmatprep.subr.mxu0 0.0
      %5284 = vmatpush1.msra.mxu0 0.0
      %5285 = vmatprep.subr.mxu0 0.0
      %5286 = vmatpush1.msra.mxu0 0.0
      %5287 = vmatprep.subr.mxu0 0.0
      %5288 = vmatpush1.msra.mxu0 0.0
      %5289 = vmatprep.subr.mxu0 0.0
      %5290 = vmatpush1.msra.mxu0 0.0
      %5291 = vmatprep.subr.mxu0 0.0
      %5292 = vmatpush1.msra.mxu0 0.0
      %5293 = vmatprep.subr.mxu0 0.0
      %5294 = vmatpush1.msra.mxu0 0.0
      %5295 = vmatprep.subr.mxu0 0.0
      %5296 = vmatpush1.msra.mxu0 0.0
      %5297 = vmatprep.subr.mxu0 0.0
      %5298 = vmatpush1.msra.mxu0 0.0
      %5299 = vmatprep.subr.mxu0 0.0
      %5300 = vmatpush1.msra.mxu0 0.0
      %5301 = vmatprep.subr.mxu0 0.0
      %5302 = vmatpush1.msra.mxu0 0.0
      %5303 = vmatprep.subr.mxu0 0.0
      %5304 = vmatpush1.msra.mxu0 0.0
      %5305 = vmatprep.subr.mxu0 0.0
      %5306 = vmatpush1.msra.mxu0 0.0
      %5307 = vmatprep.subr.mxu0 0.0
      %5308 = vmatpush1.msra.mxu0 %v2680
      %5309 = vmatprep.subr.mxu0 0.0
      %5310 = vmatpush2.msra.mxu0 0.0
      %5311 = vmatprep.subr.mxu0 0.0
      %5312 = vmatpush2.msra.mxu0 0.0
      %5313 = vmatprep.subr.mxu0 0.0
      %5314 = vmatpush2.msra.mxu0 0.0
      %5315 = vmatprep.subr.mxu0 0.0
      %5316 = vmatpush2.msra.mxu0 0.0
      %5317 = vmatprep.subr.mxu0 0.0
      %5318 = vmatpush2.msra.mxu0 0.0
      %5319 = vmatprep.subr.mxu0 0.0
      %5320 = vmatpush2.msra.mxu0 0.0
      %5321 = vmatprep.subr.mxu0 0.0
      %5322 = vmatpush2.msra.mxu0 0.0
      %5323 = vmatprep.subr.mxu0 0.0
      %5324 = vmatpush2.msra.mxu0 0.0
      %5325 = vmatprep.subr.mxu0 0.0
      %5326 = vmatpush2.msra.mxu0 0.0
      %5327 = vmatprep.subr.mxu0 0.0
      %5328 = vmatpush2.msra.mxu0 0.0
      %5329 = vmatprep.subr.mxu0 0.0
      %5330 = vmatpush2.msra.mxu0 0.0
      %5331 = vmatprep.subr.mxu0 0.0
      %5332 = vmatpush2.msra.mxu0 0.0
      %5333 = vmatprep.subr.mxu0 0.0
      %5334 = vmatpush2.msra.mxu0 0.0
      %5335 = vmatprep.subr.mxu0 0.0
      %5336 = vmatpush2.msra.mxu0 0.0
      %5337 = vmatprep.subr.mxu0 0.0
      %5338 = vmatpush2.msra.mxu0 0.0
      %5339 = vmatprep.subr.mxu0 0.0
      %5340 = vmatpush2.msra.mxu0 0.0
      %5341 = vmatprep.mubr.f32.mxu0 0.0
      %5342 = vmatmul.mubr.f32.gmra.mxu0 %v5275
      %v5343 = vpop.f32.mrf.mxu0
      %v5344 = vadd.f32 0.0, %v5343
      %v5345 = vpop.f32.mrf.mxu0
      %5346 = vdwg.mxu0
      %v5347 = vmul.f32 %v5271, %v5271
      %v5348 = vsub.f32 %v5344, %v5347
      %v5349 = vadd.f32 %v5348, 1e-05
      %v5350 = vrsqrt.pop %v5349
      %v5351 = vmul.f32 %v5350, %v3041
      %v5352 = vlaneseq
      %v5353 = vshrl.u32 %v5352, 7
      %v5354 = vsub.s32 0, %v5353
      %v5355 = vrot.slane %v5271, %v5354
      %v5356 = vsub.f32 %v4999, %v5355
      %v5357 = vsub.f32 %v5000, %v5355
      %v5358 = vsub.f32 %v5001, %v5355
      %v5359 = vsub.f32 %v5002, %v5355
      %v5360 = vsub.f32 %v5003, %v5355
      %v5361 = vsub.f32 %v5004, %v5355
      %v5362 = vsub.f32 %v5005, %v5355
      %v5363 = vsub.f32 %v5006, %v5355
      %v5364 = vsub.f32 %v5007, %v5355
      %v5365 = vsub.f32 %v5008, %v5355
      %v5366 = vsub.f32 %v5009, %v5355
      %v5367 = vsub.f32 %v5010, %v5355
      %v5368 = vsub.f32 %v5011, %v5355
      %v5369 = vsub.f32 %v5012, %v5355
      %v5370 = vsub.f32 %v5013, %v5355
      %v5371 = vsub.f32 %v5014, %v5355
      %v5372 = vsub.f32 %v5015, %v5355
      %v5373 = vsub.f32 %v5016, %v5355
      %v5374 = vsub.f32 %v5017, %v5355
      %v5375 = vsub.f32 %v5018, %v5355
      %v5376 = vsub.f32 %v5019, %v5355
      %v5377 = vsub.f32 %v5020, %v5355
      %v5378 = vsub.f32 %v5021, %v5355
      %v5379 = vsub.f32 %v5022, %v5355
      %v5380 = vsub.f32 %v5023, %v5355
      %v5381 = vsub.f32 %v5024, %v5355
      %v5382 = vsub.f32 %v5025, %v5355
      %v5383 = vsub.f32 %v5026, %v5355
      %v5384 = vsub.f32 %v5027, %v5355
      %v5385 = vsub.f32 %v5028, %v5355
      %v5386 = vsub.f32 %v5029, %v5355
      %v5387 = vsub.f32 %v5030, %v5355
      %v5388 = vlaneseq
      %v5389 = vshrl.u32 %v5388, 7
      %v5390 = vsub.s32 0, %v5389
      %v5391 = vrot.slane %v5351, %v5390
      %v5392 = vmul.f32 %v5356, %v5391
      %v5393 = vmul.f32 %v5357, %v5391
      %v5394 = vmul.f32 %v5358, %v5391
      %v5395 = vmul.f32 %v5359, %v5391
      %v5396 = vmul.f32 %v5360, %v5391
      %v5397 = vmul.f32 %v5361, %v5391
      %v5398 = vmul.f32 %v5362, %v5391
      %v5399 = vmul.f32 %v5363, %v5391
      %v5400 = vmul.f32 %v5364, %v5391
      %v5401 = vmul.f32 %v5365, %v5391
      %v5402 = vmul.f32 %v5366, %v5391
      %v5403 = vmul.f32 %v5367, %v5391
      %v5404 = vmul.f32 %v5368, %v5391
      %v5405 = vmul.f32 %v5369, %v5391
      %v5406 = vmul.f32 %v5370, %v5391
      %v5407 = vmul.f32 %v5371, %v5391
      %v5408 = vmul.f32 %v5372, %v5391
      %v5409 = vmul.f32 %v5373, %v5391
      %v5410 = vmul.f32 %v5374, %v5391
      %v5411 = vmul.f32 %v5375, %v5391
      %v5412 = vmul.f32 %v5376, %v5391
      %v5413 = vmul.f32 %v5377, %v5391
      %v5414 = vmul.f32 %v5378, %v5391
      %v5415 = vmul.f32 %v5379, %v5391
      %v5416 = vmul.f32 %v5380, %v5391
      %v5417 = vmul.f32 %v5381, %v5391
      %v5418 = vmul.f32 %v5382, %v5391
      %v5419 = vmul.f32 %v5383, %v5391
      %v5420 = vmul.f32 %v5384, %v5391
      %v5421 = vmul.f32 %v5385, %v5391
      %v5422 = vmul.f32 %v5386, %v5391
      %v5423 = vmul.f32 %v5387, %v5391
      %v5425 = vlaneseq
      %v5426 = vshrl.u32 %v5425, 7
      %v5427 = vsub.s32 0, %v5426
      %v5428 = vrot.slane %v3042, %v5427
      %v5430 = vadd.f32 %v5392, %v5428
      %v5431 = vadd.f32 %v5393, %v5428
      %v5432 = vadd.f32 %v5394, %v5428
      %v5433 = vadd.f32 %v5395, %v5428
      %v5434 = vadd.f32 %v5396, %v5428
      %v5435 = vadd.f32 %v5397, %v5428
      %v5436 = vadd.f32 %v5398, %v5428
      %v5437 = vadd.f32 %v5399, %v5428
      %v5438 = vadd.f32 %v5400, %v5428
      %v5439 = vadd.f32 %v5401, %v5428
      %v5440 = vadd.f32 %v5402, %v5428
      %v5441 = vadd.f32 %v5403, %v5428
      %v5442 = vadd.f32 %v5404, %v5428
      %v5443 = vadd.f32 %v5405, %v5428
      %v5444 = vadd.f32 %v5406, %v5428
      %v5445 = vadd.f32 %v5407, %v5428
      %v5446 = vadd.f32 %v5408, %v5428
      %v5447 = vadd.f32 %v5409, %v5428
      %v5448 = vadd.f32 %v5410, %v5428
      %v5449 = vadd.f32 %v5411, %v5428
      %v5450 = vadd.f32 %v5412, %v5428
      %v5451 = vadd.f32 %v5413, %v5428
      %v5452 = vadd.f32 %v5414, %v5428
      %v5453 = vadd.f32 %v5415, %v5428
      %v5454 = vadd.f32 %v5416, %v5428
      %v5455 = vadd.f32 %v5417, %v5428
      %v5456 = vadd.f32 %v5418, %v5428
      %v5457 = vadd.f32 %v5419, %v5428
      %v5458 = vadd.f32 %v5420, %v5428
      %v5459 = vadd.f32 %v5421, %v5428
      %v5460 = vadd.f32 %v5422, %v5428
      %v5461 = vadd.f32 %v5423, %v5428
      %v5462 = vmax.f32 %v5430, 0.0
      %v5463 = vmax.f32 %v5431, 0.0
      %v5464 = vmax.f32 %v5432, 0.0
      %v5465 = vmax.f32 %v5433, 0.0
      %v5466 = vmax.f32 %v5434, 0.0
      %v5467 = vmax.f32 %v5435, 0.0
      %v5468 = vmax.f32 %v5436, 0.0
      %v5469 = vmax.f32 %v5437, 0.0
      %v5470 = vmax.f32 %v5438, 0.0
      %v5471 = vmax.f32 %v5439, 0.0
      %v5472 = vmax.f32 %v5440, 0.0
      %v5473 = vmax.f32 %v5441, 0.0
      %v5474 = vmax.f32 %v5442, 0.0
      %v5475 = vmax.f32 %v5443, 0.0
      %v5476 = vmax.f32 %v5444, 0.0
      %v5477 = vmax.f32 %v5445, 0.0
      %v5478 = vmax.f32 %v5446, 0.0
      %v5479 = vmax.f32 %v5447, 0.0
      %v5480 = vmax.f32 %v5448, 0.0
      %v5481 = vmax.f32 %v5449, 0.0
      %v5482 = vmax.f32 %v5450, 0.0
      %v5483 = vmax.f32 %v5451, 0.0
      %v5484 = vmax.f32 %v5452, 0.0
      %v5485 = vmax.f32 %v5453, 0.0
      %v5486 = vmax.f32 %v5454, 0.0
      %v5487 = vmax.f32 %v5455, 0.0
      %v5488 = vmax.f32 %v5456, 0.0
      %v5489 = vmax.f32 %v5457, 0.0
      %v5490 = vmax.f32 %v5458, 0.0
      %v5491 = vmax.f32 %v5459, 0.0
      %v5492 = vmax.f32 %v5460, 0.0
      %v5493 = vmax.f32 %v5461, 0.0
      %5494 = vst.msk [vmem:[%s359] sm:$0xff] %vm360, %v5462
      %5495 = vst.msk [vmem:[%s359 + $0x8] sm:$0xff] %vm360, %v5463
      %5496 = vst.msk [vmem:[%s359 + $0x10] sm:$0xff] %vm360, %v5464
      %5497 = vst.msk [vmem:[%s359 + $0x18] sm:$0xff] %vm360, %v5465
      %5498 = vst.msk [vmem:[%s359 + $0x20] sm:$0xff] %vm360, %v5466
      %5499 = vst.msk [vmem:[%s359 + $0x28] sm:$0xff] %vm360, %v5467
      %5500 = vst.msk [vmem:[%s359 + $0x30] sm:$0xff] %vm360, %v5468
      %5501 = vst.msk [vmem:[%s359 + $0x38] sm:$0xff] %vm360, %v5469
      %5502 = vst.msk [vmem:[%s359 + $0x40] sm:$0xff] %vm360, %v5470
      %5503 = vst.msk [vmem:[%s359 + $0x48] sm:$0xff] %vm360, %v5471
      %5504 = vst.msk [vmem:[%s359 + $0x50] sm:$0xff] %vm360, %v5472
      %5505 = vst.msk [vmem:[%s359 + $0x58] sm:$0xff] %vm360, %v5473
      %5506 = vst.msk [vmem:[%s359 + $0x60] sm:$0xff] %vm360, %v5474
      %5507 = vst.msk [vmem:[%s359 + $0x68] sm:$0xff] %vm360, %v5475
      %5508 = vst.msk [vmem:[%s359 + $0x70] sm:$0xff] %vm360, %v5476
      %5509 = vst.msk [vmem:[%s359 + $0x78] sm:$0xff] %vm360, %v5477
      %5510 = vst.msk [vmem:[%s359 + $0x80] sm:$0xff] %vm360, %v5478
      %5511 = vst.msk [vmem:[%s359 + $0x88] sm:$0xff] %vm360, %v5479
      %5512 = vst.msk [vmem:[%s359 + $0x90] sm:$0xff] %vm360, %v5480
      %5513 = vst.msk [vmem:[%s359 + $0x98] sm:$0xff] %vm360, %v5481
      %5514 = vst.msk [vmem:[%s359 + $0xa0] sm:$0xff] %vm360, %v5482
      %5515 = vst.msk [vmem:[%s359 + $0xa8] sm:$0xff] %vm360, %v5483
      %5516 = vst.msk [vmem:[%s359 + $0xb0] sm:$0xff] %vm360, %v5484
      %5517 = vst.msk [vmem:[%s359 + $0xb8] sm:$0xff] %vm360, %v5485
      %5518 = vst.msk [vmem:[%s359 + $0xc0] sm:$0xff] %vm360, %v5486
      %5519 = vst.msk [vmem:[%s359 + $0xc8] sm:$0xff] %vm360, %v5487
      %5520 = vst.msk [vmem:[%s359 + $0xd0] sm:$0xff] %vm360, %v5488
      %5521 = vst.msk [vmem:[%s359 + $0xd8] sm:$0xff] %vm360, %v5489
      %5522 = vst.msk [vmem:[%s359 + $0xe0] sm:$0xff] %vm360, %v5490
      %5523 = vst.msk [vmem:[%s359 + $0xe8] sm:$0xff] %vm360, %v5491
      %5524 = vst.msk [vmem:[%s359 + $0xf0] sm:$0xff] %vm360, %v5492
      %5525 = vst.msk [vmem:[%s359 + $0xf8] sm:$0xff] %vm360, %v5493
      %p5526 = scmp.lt.s32.totalorder %s21, 1
      %s5527 = scalar_select %p5526, %s21, 1
      %s5528 = smul.addr %s5527, 32
      %s5529 = smul.addr %s5528, 8
      %s5530 = scalar_lea.vmem %s10, %s5529
      // Predicated region
      $region61: #{tpu_custom_call.1} parent=59 // pred_check
        %p5531 = pneg %p254
      $region62: #{tpu_custom_call.1} parent=59 // pred_check_branch
        %5533 = sbr.rel (%p5531) target = $region64
      $region63: #{tpu_custom_call.1} parent=59 // pred_region
        _
      $region64: #{tpu_custom_call.1} parent=59 // pred_fallthru
        _
    $region60: #{tpu_custom_call.1} parent=5 // pred_fallthru
      _
    %p5534 = scmp.le.s32.totalorder 2, %s16
    // Predicated region
    $region65: #{tpu_custom_call.1} parent=5 // pred_check
      %p5535 = pneg %p5534
    $region66: #{tpu_custom_call.1} parent=5 // pred_check_branch
      %5537 = sbr.rel (%p5535) target = $region68
    $region67: #{tpu_custom_call.1} parent=5 // pred_region
      %s5538 = ssub.s32 %s16, 2
      // Predicated region
      $region69: #{tpu_custom_call.1} parent=67 // pred_check
        %p5539 = pneg %p260
      $region70: #{tpu_custom_call.1} parent=67 // pred_check_branch
        %5541 = sbr.rel (%p5539) target = $region72
      $region71: #{tpu_custom_call.1} parent=67 // pred_region
        %p5542 = scmp.lt.s32.totalorder %s22, 1
        %s5543 = scalar_select %p5542, %s22, 1
        %s5544 = smul.addr %s5543, 32
        %s5545 = smul.addr %s5544, 8
        %s5546 = scalar_lea.vmem %s10, %s5545
      $region72: #{tpu_custom_call.1} parent=67 // pred_fallthru
        _
    $region68: #{tpu_custom_call.1} parent=5 // pred_fallthru
      _
  $region6: #{tpu_custom_call.1} parent=0 // loop_footer
    %s20 = sadd.s32 1, %s16
  $region7: #{tpu_custom_call.1} parent=0 // loop_footer_branch
    %15 = sbr.rel target = $region3
  $region8: #{tpu_custom_call.1} parent=0 // loop_exit
    _

</llo_original>
